<compile_context>
chip_gen: v6e
topology: v6e:2x2x1
jax: 0.10.0
libtpu: 0.0.40
codegen_flags: <defaults>
</compile_context>

<pallas_src>
import functools
import math

import jax
import jax.numpy as jnp
from jax import lax
from jax.experimental import pallas as pl
from jax.experimental.pallas import tpu as pltpu


# ----------------------------------------------------------------------------
# Pallas kernel (one batch tile per grid step)
# ----------------------------------------------------------------------------
def answer_layer_kernel(me_ref, vhW_ref, vhb_ref, waW_ref, wab_ref, vW_ref,
                        WihT_ref, bf_ref, logits_ref, *, p_valid):
    # me_ref:     (TB, Pp, 2Hp)  match encoders, batch-major, bf16, zero-padded
    # vhW_ref:    (2Hp, Hp)      vh_net weight (transposed for x @ W), bf16
    # vhb_ref:    (1, Hp)        f32
    # waW_ref:    (Hp, Hp)       wa_net weight, bf16
    # wab_ref:    (1, Hp)        f32
    # vW_ref:     (1, Hp)        v_net weight row, f32 (v_b dropped: shift-inv.)
    # WihT_ref:   (2Hp, 4Hp)     LSTMCell input weights, gates i,f,g,o, bf16
    # bf_ref:     (1, 4Hp)       b_ih + b_hh (pre-summed in glue), f32
    # logits_ref: (2, TB, Pp)    [beta1 ; beta2], f32
    TB, Pp, H2p = me_ref.shape
    Hp = H2p // 2

    me = me_ref[...]                                  # bf16
    vhW = vhW_ref[...]
    vhb = vhb_ref[...]
    waW = waW_ref[...]
    wab = wab_ref[...]
    vW3 = vW_ref[...].reshape(1, 1, Hp)               # hoisted broadcast operand
    WihT = WihT_ref[...]
    bf = bf_ref[...]

    # vh_net over all TB*Pp rows: one MXU matmul, f32 accumulation.
    vh3 = (jnp.dot(me.reshape(TB * Pp, H2p), vhW,
                   preferred_element_type=jnp.float32)
           .reshape(TB, Pp, Hp) + vhb)                # (TB, Pp, Hp) f32

    # Padded passage lanes must not leak into softmax / pooling.
    pmask = lax.broadcasted_iota(jnp.int32, (1, Pp), 1) < p_valid

    def masked_softmax(x, *, approx):
        x = jnp.where(pmask, x, -jnp.inf)
        x = x - jnp.max(x, axis=-1, keepdims=True)
        e = jnp.exp(x)                                # exp(-inf)==0 on pad lanes
        s = jnp.sum(e, axis=-1, keepdims=True)
        if approx:
            return e * pl.reciprocal(s, approx=True)  # internal use only
        return e / s                                  # user-visible logits: exact

    def sigmoid(x):                                   # exact sigmoid via EUP tanh
        return 0.5 * (jnp.tanh(0.5 * x) + 1.0)

    # ---- Step 1 (specialized for h0 = c0 = 0) ----
    f1 = jnp.tanh(vh3 + wab.reshape(1, 1, Hp))        # wa_net(h0) == wa_b
    vf1 = jnp.sum(f1 * vW3, axis=-1)                  # (TB, Pp) VPU mul + lane reduce
    beta1 = masked_softmax(vf1, approx=False)
    sbeta1 = masked_softmax(beta1, approx=True)       # reference applies softmax twice
    inp1 = jnp.sum(sbeta1[:, :, None] * me, axis=1)   # (TB, 2Hp) attention pooling, f32
    gates1 = jnp.dot(inp1.astype(jnp.bfloat16), WihT,
                     preferred_element_type=jnp.float32) + bf   # h0 @ Whh_T == 0
    i1 = sigmoid(gates1[:, 0 * Hp:1 * Hp])
    g1 = jnp.tanh(gates1[:, 2 * Hp:3 * Hp])
    o1 = sigmoid(gates1[:, 3 * Hp:4 * Hp])
    c1 = i1 * g1                                      # forget gate * c0 == 0
    h1 = o1 * jnp.tanh(c1)

    # ---- Step 2 (only beta2 is observable; h2/c2 are dead in the reference) ----
    wha2 = jnp.dot(h1.astype(jnp.bfloat16), waW,
                   preferred_element_type=jnp.float32) + wab    # (TB, Hp)
    f2 = jnp.tanh(vh3 + wha2[:, None, :])
    vf2 = jnp.sum(f2 * vW3, axis=-1)
    beta2 = masked_softmax(vf2, approx=False)

    # Lane-dense whole-slab stores (Pp is a multiple of 128).
    logits_ref[0] = beta1.astype(logits_ref.dtype)
    logits_ref[1] = beta2.astype(logits_ref.dtype)


# ----------------------------------------------------------------------------
# Wrapper (glue): layout, padding, dtype plumbing, weight fusion
# ----------------------------------------------------------------------------
def _round_up(x, m):
    return ((x + m - 1) // m) * m


def _pad_to(x, shape):
    return jnp.pad(x, [(0, t - s) for s, t in zip(x.shape, shape)])


def _pad_gate_cols(w, h, hp):
    """(rows, 4h) -> (rows, 4hp): zero-pad each h-wide i/f/g/o gate block to hp."""
    rows = w.shape[0]
    w4 = w.reshape(rows, 4, h)
    w4 = jnp.pad(w4, ((0, 0), (0, 0), (0, hp - h)))
    return w4.reshape(rows, 4 * hp)


def answer_layer(match_encoders, params, *, batch_tile=8):
    """match_encoders: (P, B, 2H) float32, like the PyTorch module."""
    P, B, H2 = match_encoders.shape
    H = H2 // 2

    Hp = _round_up(H, 128)
    Pp = _round_up(P, 128)
    Bp = _round_up(B, batch_tile)
    H2p, H4p = 2 * Hp, 4 * Hp

    # Batch-major, zero-padded, bf16 HBM/MXU operand.
    me = jnp.transpose(match_encoders, (1, 0, 2)).astype(jnp.float32)   # (B, P, 2H)
    me = _pad_to(me, (Bp, Pp, H2p)).astype(jnp.bfloat16)

    vhW = _pad_to(params["vh_W"], (H2p, Hp)).astype(jnp.bfloat16)
    vhb = _pad_to(params["vh_b"], (1, Hp))
    waW = _pad_to(params["wa_W"], (Hp, Hp)).astype(jnp.bfloat16)
    wab = _pad_to(params["wa_b"], (1, Hp))
    vW = _pad_to(params["v_W"], (1, Hp))            # f32: used on the VPU reduce path
    WihT = _pad_to(_pad_gate_cols(params["Wih_T"], H, Hp),
                   (H2p, H4p)).astype(jnp.bfloat16)
    bf = _pad_gate_cols(params["b_ih"] + params["b_hh"], H, Hp)         # (1, 4Hp) f32
    # Whh_T never affects the returned logits (step-1 uses h0=0; step-2 hidden
    # state is discarded), so it is not shipped to the kernel at all.

    inputs = (me, vhW, vhb, waW, wab, vW, WihT, bf)

    def pinned(x):
        zeros = (0,) * x.ndim
        return pl.BlockSpec(x.shape, lambda i, zeros=zeros: zeros)

    grid = (Bp // batch_tile,)
    logits_pad = pl.pallas_call(
        functools.partial(answer_layer_kernel, p_valid=P),
        grid=grid,
        in_specs=[pl.BlockSpec((batch_tile, Pp, H2p), lambda i: (i, 0, 0))]
                 + [pinned(x) for x in inputs[1:]],
        out_specs=pl.BlockSpec((2, batch_tile, Pp), lambda i: (0, i, 0)),
        out_shape=jax.ShapeDtypeStruct((2, Bp, Pp), jnp.float32),
        compiler_params=pltpu.CompilerParams(
            dimension_semantics=("parallel",)),
    )(*inputs)

    logits = logits_pad[:, :B, :P]
    # prediction = argmax over the passage dim (torch.max(beta, 1)), shape (B, 2)
    start = jnp.argmax(logits[0], axis=1)
    end = jnp.argmax(logits[1], axis=1)
    prediction = jnp.stack([start, end], axis=1)
    return logits, prediction


# ----------------------------------------------------------------------------
# Pure-JAX reference (mirrors the PyTorch forward) for a correctness check
# ----------------------------------------------------------------------------
def answer_layer_ref(match_encoders, p):
    P, B, H2 = match_encoders.shape
    H = H2 // 2
    me = match_encoders.astype(jnp.float32)
    vh = me @ p["vh_W"] + p["vh_b"]                       # (P, B, H)
    h = jnp.zeros((B, H), jnp.float32)
    c = jnp.zeros((B, H), jnp.float32)

    def step(h, c):
        wha = h @ p["wa_W"] + p["wa_b"]                   # (B, H)
        f = jnp.tanh(vh + wha[None])                      # (P, B, H)
        vf = jnp.einsum("pbh,h->bp", f, p["v_W"][0]) + p["v_b"][0, 0]
        beta = jax.nn.softmax(vf, axis=1)
        sbeta = jax.nn.softmax(beta, axis=1)
        inp = jnp.einsum("bp,pbk->bk", sbeta, me)
        gates = inp @ p["Wih_T"] + p["b_ih"] + h @ p["Whh_T"] + p["b_hh"]
        i_g = jax.nn.sigmoid(gates[:, 0:H])
        f_g = jax.nn.sigmoid(gates[:, H:2 * H])
        g_g = jnp.tanh(gates[:, 2 * H:3 * H])
        o_g = jax.nn.sigmoid(gates[:, 3 * H:4 * H])
        c2 = f_g * c + i_g * g_g
        h2 = o_g * jnp.tanh(c2)
        return beta, h2, c2

    beta1, h1, c1 = step(h, c)
    beta2, _, _ = step(h1, c1)
    logits = jnp.stack([beta1, beta2])                    # (2, B, P)
    pred = jnp.stack([jnp.argmax(beta1, 1), jnp.argmax(beta2, 1)], axis=1)
    return logits, pred


# ----------------------------------------------------------------------------
# Deterministic parameter init (shapes from AnswerLayer.__init__)
# ----------------------------------------------------------------------------
def init_params(key, hidden_size):
    H = hidden_size
    ks = jax.random.split(key, 10)

    def u(k, shape, fan_in):
        bound = 1.0 / math.sqrt(fan_in)
        return jax.random.uniform(k, shape, jnp.float32, -bound, bound)

    return {
        "vh_W": u(ks[0], (2 * H, H), 2 * H),   # vh_net: Linear(2H -> H)
        "vh_b": u(ks[1], (1, H), 2 * H),
        "wa_W": u(ks[2], (H, H), H),           # wa_net: Linear(H -> H)
        "wa_b": u(ks[3], (1, H), H),
        "v_W": u(ks[4], (1, H), H),            # v_net: Linear(H -> 1)
        "v_b": u(ks[5], (1, 1), H),            # kept for the ref; no-op under softmax
        "Wih_T": u(ks[6], (2 * H, 4 * H), H),  # LSTMCell(2H -> H), gates i,f,g,o
        "Whh_T": u(ks[7], (H, 4 * H), H),      # dead for the returned outputs
        "b_ih": u(ks[8], (1, 4 * H), H),
        "b_hh": u(ks[9], (1, 4 * H), H),
    }


if __name__ == "__main__":
    hidden_size = 32     # H
    batch = 8            # B
    passage_len = 16     # P (pn_steps)

    key = jax.random.PRNGKey(0)
    k_x, k_p = jax.random.split(key)
    match_encoders = jax.random.normal(
        k_x, (passage_len, batch, 2 * hidden_size), jnp.float32)
    params = init_params(k_p, hidden_size)

    logits, prediction = answer_layer(match_encoders, params)
    logits, prediction = jax.block_until_ready((logits, prediction))

    assert logits.shape == (2, batch, passage_len)
    assert prediction.shape == (batch, 2)
    # Each beta row is a softmax over the real passage positions.
    assert jnp.allclose(jnp.sum(logits, axis=-1), 1.0, atol=1e-3)

    ref_logits, ref_pred = answer_layer_ref(match_encoders, params)
    assert jnp.allclose(logits, ref_logits, atol=5e-3, rtol=5e-3), (
        "kernel logits diverge from pure-JAX reference")

    print("KERNEL_OK")
</pallas_src>

<mosaic_0001>
module attributes {stable_mosaic.version = 11 : i64} {
  func.func @answer_layer_kernel(%arg0: i32, %arg1: memref<8x128x256xbf16, #tpu.memory_space<vmem>>, %arg2: memref<256x128xbf16, #tpu.memory_space<vmem>>, %arg3: memref<1x128xf32, #tpu.memory_space<vmem>>, %arg4: memref<128x128xbf16, #tpu.memory_space<vmem>>, %arg5: memref<1x128xf32, #tpu.memory_space<vmem>>, %arg6: memref<1x128xf32, #tpu.memory_space<vmem>>, %arg7: memref<256x512xbf16, #tpu.memory_space<vmem>>, %arg8: memref<1x512xf32, #tpu.memory_space<vmem>>, %arg9: memref<2x8x128xf32, #tpu.memory_space<vmem>>) attributes {dimension_semantics = [#tpu.dimension_semantics<parallel>], iteration_bounds = array<i64: 1>, scalar_prefetch = 0 : i64, scratch_operands = 0 : i64, tpu.core_type = #tpu.core_type<tc>, window_params = [{transform_indices = @transform_0, window_bounds = array<i64: 8, 128, 256>}, {pipeline_mode = #tpu.pipeline_mode<synchronous>, transform_indices = @transform_1, window_bounds = array<i64: 256, 128>}, {pipeline_mode = #tpu.pipeline_mode<synchronous>, transform_indices = @transform_2, window_bounds = array<i64: 1, 128>}, {pipeline_mode = #tpu.pipeline_mode<synchronous>, transform_indices = @transform_3, window_bounds = array<i64: 128, 128>}, {pipeline_mode = #tpu.pipeline_mode<synchronous>, transform_indices = @transform_4, window_bounds = array<i64: 1, 128>}, {pipeline_mode = #tpu.pipeline_mode<synchronous>, transform_indices = @transform_5, window_bounds = array<i64: 1, 128>}, {pipeline_mode = #tpu.pipeline_mode<synchronous>, transform_indices = @transform_6, window_bounds = array<i64: 256, 512>}, {pipeline_mode = #tpu.pipeline_mode<synchronous>, transform_indices = @transform_7, window_bounds = array<i64: 1, 512>}, {transform_indices = @transform_8, window_bounds = array<i64: 2, 8, 128>}]} {
    %c0 = arith.constant 0 : index
    %c0_0 = arith.constant 0 : index
    %c0_1 = arith.constant 0 : index
    %0 = vector.load %arg1[%c0, %c0_0, %c0_1] : memref<8x128x256xbf16, #tpu.memory_space<vmem>>, vector<8x128x256xbf16>
    %c0_2 = arith.constant 0 : index
    %c0_3 = arith.constant 0 : index
    %1 = vector.load %arg2[%c0_2, %c0_3] : memref<256x128xbf16, #tpu.memory_space<vmem>>, vector<256x128xbf16>
    %c0_4 = arith.constant 0 : index
    %c0_5 = arith.constant 0 : index
    %2 = vector.load %arg3[%c0_4, %c0_5] : memref<1x128xf32, #tpu.memory_space<vmem>>, vector<1x128xf32>
    %c0_6 = arith.constant 0 : index
    %c0_7 = arith.constant 0 : index
    %3 = vector.load %arg4[%c0_6, %c0_7] : memref<128x128xbf16, #tpu.memory_space<vmem>>, vector<128x128xbf16>
    %c0_8 = arith.constant 0 : index
    %c0_9 = arith.constant 0 : index
    %4 = vector.load %arg5[%c0_8, %c0_9] : memref<1x128xf32, #tpu.memory_space<vmem>>, vector<1x128xf32>
    %c0_10 = arith.constant 0 : index
    %c0_11 = arith.constant 0 : index
    %5 = vector.load %arg6[%c0_10, %c0_11] : memref<1x128xf32, #tpu.memory_space<vmem>>, vector<1x128xf32>
    %6 = vector.shape_cast %5 : vector<1x128xf32> to vector<1x1x128xf32>
    %c0_12 = arith.constant 0 : index
    %c0_13 = arith.constant 0 : index
    %7 = vector.load %arg7[%c0_12, %c0_13] : memref<256x512xbf16, #tpu.memory_space<vmem>>, vector<256x512xbf16>
    %c0_14 = arith.constant 0 : index
    %c0_15 = arith.constant 0 : index
    %8 = vector.load %arg8[%c0_14, %c0_15] : memref<1x512xf32, #tpu.memory_space<vmem>>, vector<1x512xf32>
    %9 = vector.shape_cast %0 : vector<8x128x256xbf16> to vector<1024x256xbf16>
    %cst = arith.constant dense<0.000000e+00> : vector<1024x128xf32>
    %10 = tpu.matmul %9, %1, %cst {dimension_numbers = #tpu.dot_dimension_numbers<[1], [0], [0], [1], [0, 0, 1, 1], [], []>} : vector<1024x256xbf16>, vector<256x128xbf16>, vector<1024x128xf32> -> vector<1024x128xf32>
    %11 = vector.shape_cast %10 : vector<1024x128xf32> to vector<8x128x128xf32>
    %12 = vector.shape_cast %2 : vector<1x128xf32> to vector<1x1x128xf32>
    %13 = vector.broadcast %12 : vector<1x1x128xf32> to vector<8x128x128xf32>
    %14 = arith.addf %11, %13 : vector<8x128x128xf32>
    %15 = tpu.iota {dimensions = array<i32: 1>} : vector<1x128xi32>
    %c16_i32 = arith.constant 16 : i32
    %16 = vector.broadcast %c16_i32 : i32 to vector<1x128xi32>
    %17 = arith.cmpi slt, %15, %16 : vector<1x128xi32>
    %18 = vector.shape_cast %4 : vector<1x128xf32> to vector<1x1x128xf32>
    %19 = vector.broadcast %18 : vector<1x1x128xf32> to vector<8x128x128xf32>
    %20 = arith.addf %14, %19 : vector<8x128x128xf32>
    %21 = math.tanh %20 : vector<8x128x128xf32>
    %22 = vector.broadcast %6 : vector<1x1x128xf32> to vector<8x128x128xf32>
    %23 = arith.mulf %21, %22 : vector<8x128x128xf32>
    %cst_16 = arith.constant dense<0.000000e+00> : vector<8x128xf32>
    %24 = vector.multi_reduction <add>, %23, %cst_16 [2] : vector<8x128x128xf32> to vector<8x128xf32>
    %cst_17 = arith.constant 0xFF800000 : f32
    %25 = vector.shape_cast %17 : vector<1x128xi1> to vector<1x128xi1>
    %26 = vector.broadcast %25 : vector<1x128xi1> to vector<8x128xi1>
    %27 = vector.broadcast %cst_17 : f32 to vector<8x128xf32>
    %28 = arith.select %26, %24, %27 : vector<8x128xi1>, vector<8x128xf32>
    %cst_18 = arith.constant dense<0xFF800000> : vector<8xf32>
    %29 = vector.multi_reduction <maximumf>, %28, %cst_18 [1] : vector<8x128xf32> to vector<8xf32>
    %30 = vector.shape_cast %29 : vector<8xf32> to vector<8x1xf32>
    %31 = vector.broadcast %30 : vector<8x1xf32> to vector<8x128xf32>
    %32 = arith.subf %28, %31 : vector<8x128xf32>
    %33 = math.exp %32 : vector<8x128xf32>
    %cst_19 = arith.constant dense<0.000000e+00> : vector<8xf32>
    %34 = vector.multi_reduction <add>, %33, %cst_19 [1] : vector<8x128xf32> to vector<8xf32>
    %35 = vector.shape_cast %34 : vector<8xf32> to vector<8x1xf32>
    %36 = vector.broadcast %35 : vector<8x1xf32> to vector<8x128xf32>
    %37 = arith.divf %33, %36 : vector<8x128xf32>
    %cst_20 = arith.constant 0xFF800000 : f32
    %38 = vector.shape_cast %17 : vector<1x128xi1> to vector<1x128xi1>
    %39 = vector.broadcast %38 : vector<1x128xi1> to vector<8x128xi1>
    %40 = vector.broadcast %cst_20 : f32 to vector<8x128xf32>
    %41 = arith.select %39, %37, %40 : vector<8x128xi1>, vector<8x128xf32>
    %cst_21 = arith.constant dense<0xFF800000> : vector<8xf32>
    %42 = vector.multi_reduction <maximumf>, %41, %cst_21 [1] : vector<8x128xf32> to vector<8xf32>
    %43 = vector.shape_cast %42 : vector<8xf32> to vector<8x1xf32>
    %44 = vector.broadcast %43 : vector<8x1xf32> to vector<8x128xf32>
    %45 = arith.subf %41, %44 : vector<8x128xf32>
    %46 = math.exp %45 : vector<8x128xf32>
    %cst_22 = arith.constant dense<0.000000e+00> : vector<8xf32>
    %47 = vector.multi_reduction <add>, %46, %cst_22 [1] : vector<8x128xf32> to vector<8xf32>
    %48 = vector.shape_cast %47 : vector<8xf32> to vector<8x1xf32>
    %49 = tpu.reciprocal %48 {approx = true} : vector<8x1xf32> -> vector<8x1xf32>
    %50 = vector.broadcast %49 : vector<8x1xf32> to vector<8x128xf32>
    %51 = arith.mulf %46, %50 : vector<8x128xf32>
    %52 = vector.shape_cast %51 : vector<8x128xf32> to vector<8x128x1xf32>
    %53 = arith.extf %0 : vector<8x128x256xbf16> to vector<8x128x256xf32>
    %54 = vector.broadcast %52 : vector<8x128x1xf32> to vector<8x128x256xf32>
    %55 = arith.mulf %54, %53 : vector<8x128x256xf32>
    %cst_23 = arith.constant dense<0.000000e+00> : vector<8x256xf32>
    %56 = vector.multi_reduction <add>, %55, %cst_23 [1] : vector<8x128x256xf32> to vector<8x256xf32>
    %57 = arith.truncf %56 : vector<8x256xf32> to vector<8x256xbf16>
    %cst_24 = arith.constant dense<0.000000e+00> : vector<8x512xf32>
    %58 = tpu.matmul %57, %7, %cst_24 {dimension_numbers = #tpu.dot_dimension_numbers<[1], [0], [0], [1], [0, 0, 1, 1], [], []>} : vector<8x256xbf16>, vector<256x512xbf16>, vector<8x512xf32> -> vector<8x512xf32>
    %59 = vector.broadcast %8 : vector<1x512xf32> to vector<8x512xf32>
    %60 = arith.addf %58, %59 : vector<8x512xf32>
    %61 = vector.extract_strided_slice %60 {offsets = [0, 0], sizes = [8, 128], strides = [1, 1]} : vector<8x512xf32> to vector<8x128xf32>
    %cst_25 = arith.constant 5.000000e-01 : f32
    %62 = vector.broadcast %cst_25 : f32 to vector<8x128xf32>
    %63 = arith.mulf %62, %61 : vector<8x128xf32>
    %64 = math.tanh %63 : vector<8x128xf32>
    %cst_26 = arith.constant 1.000000e+00 : f32
    %65 = vector.broadcast %cst_26 : f32 to vector<8x128xf32>
    %66 = arith.addf %64, %65 : vector<8x128xf32>
    %cst_27 = arith.constant 5.000000e-01 : f32
    %67 = vector.broadcast %cst_27 : f32 to vector<8x128xf32>
    %68 = arith.mulf %67, %66 : vector<8x128xf32>
    %69 = vector.extract_strided_slice %60 {offsets = [0, 256], sizes = [8, 128], strides = [1, 1]} : vector<8x512xf32> to vector<8x128xf32>
    %70 = math.tanh %69 : vector<8x128xf32>
    %71 = vector.extract_strided_slice %60 {offsets = [0, 384], sizes = [8, 128], strides = [1, 1]} : vector<8x512xf32> to vector<8x128xf32>
    %cst_28 = arith.constant 5.000000e-01 : f32
    %72 = vector.broadcast %cst_28 : f32 to vector<8x128xf32>
    %73 = arith.mulf %72, %71 : vector<8x128xf32>
    %74 = math.tanh %73 : vector<8x128xf32>
    %cst_29 = arith.constant 1.000000e+00 : f32
    %75 = vector.broadcast %cst_29 : f32 to vector<8x128xf32>
    %76 = arith.addf %74, %75 : vector<8x128xf32>
    %cst_30 = arith.constant 5.000000e-01 : f32
    %77 = vector.broadcast %cst_30 : f32 to vector<8x128xf32>
    %78 = arith.mulf %77, %76 : vector<8x128xf32>
    %79 = arith.mulf %68, %70 : vector<8x128xf32>
    %80 = math.tanh %79 : vector<8x128xf32>
    %81 = arith.mulf %78, %80 : vector<8x128xf32>
    %82 = arith.truncf %81 : vector<8x128xf32> to vector<8x128xbf16>
    %cst_31 = arith.constant dense<0.000000e+00> : vector<8x128xf32>
    %83 = tpu.matmul %82, %3, %cst_31 {dimension_numbers = #tpu.dot_dimension_numbers<[1], [0], [0], [1], [0, 0, 1, 1], [], []>} : vector<8x128xbf16>, vector<128x128xbf16>, vector<8x128xf32> -> vector<8x128xf32>
    %84 = vector.broadcast %4 : vector<1x128xf32> to vector<8x128xf32>
    %85 = arith.addf %83, %84 : vector<8x128xf32>
    %86 = vector.shape_cast %85 : vector<8x128xf32> to vector<8x1x128xf32>
    %87 = vector.broadcast %86 : vector<8x1x128xf32> to vector<8x128x128xf32>
    %88 = arith.addf %14, %87 : vector<8x128x128xf32>
    %89 = math.tanh %88 : vector<8x128x128xf32>
    %90 = vector.broadcast %6 : vector<1x1x128xf32> to vector<8x128x128xf32>
    %91 = arith.mulf %89, %90 : vector<8x128x128xf32>
    %cst_32 = arith.constant dense<0.000000e+00> : vector<8x128xf32>
    %92 = vector.multi_reduction <add>, %91, %cst_32 [2] : vector<8x128x128xf32> to vector<8x128xf32>
    %cst_33 = arith.constant 0xFF800000 : f32
    %93 = vector.shape_cast %17 : vector<1x128xi1> to vector<1x128xi1>
    %94 = vector.broadcast %93 : vector<1x128xi1> to vector<8x128xi1>
    %95 = vector.broadcast %cst_33 : f32 to vector<8x128xf32>
    %96 = arith.select %94, %92, %95 : vector<8x128xi1>, vector<8x128xf32>
    %cst_34 = arith.constant dense<0xFF800000> : vector<8xf32>
    %97 = vector.multi_reduction <maximumf>, %96, %cst_34 [1] : vector<8x128xf32> to vector<8xf32>
    %98 = vector.shape_cast %97 : vector<8xf32> to vector<8x1xf32>
    %99 = vector.broadcast %98 : vector<8x1xf32> to vector<8x128xf32>
    %100 = arith.subf %96, %99 : vector<8x128xf32>
    %101 = math.exp %100 : vector<8x128xf32>
    %cst_35 = arith.constant dense<0.000000e+00> : vector<8xf32>
    %102 = vector.multi_reduction <add>, %101, %cst_35 [1] : vector<8x128xf32> to vector<8xf32>
    %103 = vector.shape_cast %102 : vector<8xf32> to vector<8x1xf32>
    %104 = vector.broadcast %103 : vector<8x1xf32> to vector<8x128xf32>
    %105 = arith.divf %101, %104 : vector<8x128xf32>
    %c0_36 = arith.constant 0 : index
    %c0_37 = arith.constant 0 : index
    %c0_38 = arith.constant 0 : index
    %106 = vector.load %arg9[%c0_36, %c0_37, %c0_38] : memref<2x8x128xf32, #tpu.memory_space<vmem>>, vector<1x8x128xf32>
    %107 = vector.shape_cast %106 : vector<1x8x128xf32> to vector<8x128xf32>
    %108 = vector.shape_cast %37 : vector<8x128xf32> to vector<1x8x128xf32>
    tpu.vector_store %arg9[%c0_36, %c0_37, %c0_38], %108 {strides = array<i32>} : memref<2x8x128xf32, #tpu.memory_space<vmem>>, vector<1x8x128xf32>,
    %c1 = arith.constant 1 : index
    %c0_39 = arith.constant 0 : index
    %c0_40 = arith.constant 0 : index
    %109 = vector.load %arg9[%c1, %c0_39, %c0_40] : memref<2x8x128xf32, #tpu.memory_space<vmem>>, vector<1x8x128xf32>
    %110 = vector.shape_cast %109 : vector<1x8x128xf32> to vector<8x128xf32>
    %111 = vector.shape_cast %105 : vector<8x128xf32> to vector<1x8x128xf32>
    tpu.vector_store %arg9[%c1, %c0_39, %c0_40], %111 {strides = array<i32>} : memref<2x8x128xf32, #tpu.memory_space<vmem>>, vector<1x8x128xf32>,
    return
  }
  func.func @transform_0(%arg0: i32) -> (i32, i32, i32) {
    %c0_i32 = arith.constant 0 : i32
    %c0_i32_0 = arith.constant 0 : i32
    %c0_i32_1 = arith.constant 0 : i32
    return %arg0, %c0_i32, %c0_i32_0 : i32, i32, i32
  }
  func.func @transform_1(%arg0: i32) -> (i32, i32) {
    %c0_i32 = arith.constant 0 : i32
    %c0_i32_0 = arith.constant 0 : i32
    %c0_i32_1 = arith.constant 0 : i32
    return %c0_i32, %c0_i32_0 : i32, i32
  }
  func.func @transform_2(%arg0: i32) -> (i32, i32) {
    %c0_i32 = arith.constant 0 : i32
    %c0_i32_0 = arith.constant 0 : i32
    %c0_i32_1 = arith.constant 0 : i32
    return %c0_i32, %c0_i32_0 : i32, i32
  }
  func.func @transform_3(%arg0: i32) -> (i32, i32) {
    %c0_i32 = arith.constant 0 : i32
    %c0_i32_0 = arith.constant 0 : i32
    %c0_i32_1 = arith.constant 0 : i32
    return %c0_i32, %c0_i32_0 : i32, i32
  }
  func.func @transform_4(%arg0: i32) -> (i32, i32) {
    %c0_i32 = arith.constant 0 : i32
    %c0_i32_0 = arith.constant 0 : i32
    %c0_i32_1 = arith.constant 0 : i32
    return %c0_i32, %c0_i32_0 : i32, i32
  }
  func.func @transform_5(%arg0: i32) -> (i32, i32) {
    %c0_i32 = arith.constant 0 : i32
    %c0_i32_0 = arith.constant 0 : i32
    %c0_i32_1 = arith.constant 0 : i32
    return %c0_i32, %c0_i32_0 : i32, i32
  }
  func.func @transform_6(%arg0: i32) -> (i32, i32) {
    %c0_i32 = arith.constant 0 : i32
    %c0_i32_0 = arith.constant 0 : i32
    %c0_i32_1 = arith.constant 0 : i32
    return %c0_i32, %c0_i32_0 : i32, i32
  }
  func.func @transform_7(%arg0: i32) -> (i32, i32) {
    %c0_i32 = arith.constant 0 : i32
    %c0_i32_0 = arith.constant 0 : i32
    %c0_i32_1 = arith.constant 0 : i32
    return %c0_i32, %c0_i32_0 : i32, i32
  }
  func.func @transform_8(%arg0: i32) -> (i32, i32, i32) {
    %c0_i32 = arith.constant 0 : i32
    %c0_i32_0 = arith.constant 0 : i32
    %c0_i32_1 = arith.constant 0 : i32
    return %c0_i32, %arg0, %c0_i32_0 : i32, i32, i32
  }
}

</mosaic_0001>

<llo_original>
// kernel: tpu_custom_call.1
$region0: #{tpu_custom_call.1}
  #allocation0 [shape = 'u32[]', space=smem, size = 0x4, offset = 0x4, fixed_abs, tag = 'smem constant byte address 0x4 - core index']
  #allocation1 [shape = 'u32[144,128]{1,0:T(1,128)}', space=vmem, size = 0x12000, scoped, tag = 'internal scratch']
  %s0 = inlined_call_operand.hbm [shape: bf16[8,128,256], index: 0, kind: input, shape index: {}]
  %s1 = inlined_call_operand.hbm [shape: bf16[256,128], index: 1, kind: input, shape index: {}]
  %s2 = inlined_call_operand.vmem [shape: f32[1,128], index: 2, kind: input, shape index: {}]
  %s3 = inlined_call_operand.hbm [shape: bf16[128,128], index: 3, kind: input, shape index: {}]
  %s4 = inlined_call_operand.vmem [shape: f32[1,128], index: 4, kind: input, shape index: {}]
  %s5 = inlined_call_operand.vmem [shape: f32[1,128], index: 5, kind: input, shape index: {}]
  %s6 = inlined_call_operand.hbm [shape: bf16[256,512], index: 6, kind: input, shape index: {}]
  %s7 = inlined_call_operand.vmem [shape: f32[1,512], index: 7, kind: input, shape index: {}]
  %s8 = inlined_call_operand.hbm [shape: f32[2,8,128], index: 8, kind: output, shape index: {}]
  %s9 = sld [smem:[#allocation0]]
  $region58: #{tpu_custom_call.1} parent=0
    _
  %s11 = ssub.s32 1, %s9
  %s12 = scalar_select 0, %s11, %s9
  $region1: #{tpu_custom_call.1} parent=0
    #allocation2 [shape = 'u8[524288]{0}', space=vmem, size = 0x80000, scoped, tag = 'input window, operand 0, single buffered']
    #allocation3 [shape = 's32[1]{0}', space=sflag, size = 0x4, scoped, tag = 'scoped memory for tpu_custom_call.1']
    #allocation4 [shape = 's32[1]{0}', space=sflag, size = 0x4, scoped, tag = 'scoped memory for tpu_custom_call.1']
    #allocation5 [shape = 'u8[65536]{0}', space=vmem, size = 0x10000, scoped, tag = 'input window, operand 1, single buffered']
    #allocation6 [shape = 's32[1]{0}', space=sflag, size = 0x4, scoped, tag = 'scoped memory for tpu_custom_call.1']
    #allocation7 [shape = 'u8[32768]{0}', space=vmem, size = 0x8000, scoped, tag = 'input window, operand 3, single buffered']
    #allocation8 [shape = 'u8[262144]{0}', space=vmem, size = 0x40000, scoped, tag = 'input window, operand 6, single buffered']
    #allocation9 [shape = 's32[1]{0}', space=sflag, size = 0x4, scoped, tag = 'scoped memory for tpu_custom_call.1']
    #allocation10 [shape = 'u8[8192]{0}', space=vmem, size = 0x2000, scoped, tag = 'output window, operand 0, single buffered']
    %13 = vsyncpa [#allocation3], 0
    %14 = vsyncpa [#allocation6], 0
    %15 = vsyncpa [#allocation9], 0
    %16 = vsyncpa [#allocation4], 0
    // Predicated region
    $region2: #{tpu_custom_call.1} parent=1 // pred_check
      _
    $region3: #{tpu_custom_call.1} parent=1 // pred_check_branch
      %18 = sbr.rel (0) target = $region5
    $region4: #{tpu_custom_call.1} parent=1 // pred_region
      %s20 = ssub.s32 16384, 16384
      %21 = vsyncadd [#allocation3], %s20
      %s22 = sshll.u32 [#allocation2], 4
      %s23 = int_to_ptr.vmem [resolvable:$true] %s22
      %28 = dma.hbm_to_vmem [thread:$0]  %s0, 16384, %s23, [#allocation3], 128, 128, 8
    $region5: #{tpu_custom_call.1} parent=1 // pred_fallthru
      _
    // Predicated region
    $region6: #{tpu_custom_call.1} parent=1 // pred_check
      _
    $region7: #{tpu_custom_call.1} parent=1 // pred_check_branch
      %30 = sbr.rel (0) target = $region9
    $region8: #{tpu_custom_call.1} parent=1 // pred_region
      %s32 = ssub.s32 2048, 2048
      %33 = vsyncadd [#allocation6], %s32
      %s34 = sshll.u32 [#allocation5], 4
      %s35 = int_to_ptr.vmem [resolvable:$true] %s34
      %40 = dma.hbm_to_vmem [thread:$0]  %s1, 2048, %s35, [#allocation6], 64, 64, 4
    $region9: #{tpu_custom_call.1} parent=1 // pred_fallthru
      _
    // Predicated region
    $region10: #{tpu_custom_call.1} parent=1 // pred_check
      _
    $region11: #{tpu_custom_call.1} parent=1 // pred_check_branch
      %42 = sbr.rel (0) target = $region13
    $region12: #{tpu_custom_call.1} parent=1 // pred_region
      _
    $region13: #{tpu_custom_call.1} parent=1 // pred_fallthru
      _
    // Predicated region
    $region14: #{tpu_custom_call.1} parent=1 // pred_check
      _
    $region15: #{tpu_custom_call.1} parent=1 // pred_check_branch
      %44 = sbr.rel (0) target = $region17
    $region16: #{tpu_custom_call.1} parent=1 // pred_region
      %s46 = ssub.s32 1024, 1024
      %47 = vsyncadd [#allocation6], %s46
      %s48 = sshll.u32 [#allocation7], 4
      %s49 = int_to_ptr.vmem [resolvable:$true] %s48
      %54 = dma.hbm_to_vmem [thread:$0]  %s3, 1024, %s49, [#allocation6], 64, 64, 4
    $region17: #{tpu_custom_call.1} parent=1 // pred_fallthru
      _
    // Predicated region
    $region18: #{tpu_custom_call.1} parent=1 // pred_check
      _
    $region19: #{tpu_custom_call.1} parent=1 // pred_check_branch
      %56 = sbr.rel (0) target = $region21
    $region20: #{tpu_custom_call.1} parent=1 // pred_region
      _
    $region21: #{tpu_custom_call.1} parent=1 // pred_fallthru
      _
    // Predicated region
    $region22: #{tpu_custom_call.1} parent=1 // pred_check
      _
    $region23: #{tpu_custom_call.1} parent=1 // pred_check_branch
      %58 = sbr.rel (0) target = $region25
    $region24: #{tpu_custom_call.1} parent=1 // pred_region
      _
    $region25: #{tpu_custom_call.1} parent=1 // pred_fallthru
      _
    // Predicated region
    $region26: #{tpu_custom_call.1} parent=1 // pred_check
      _
    $region27: #{tpu_custom_call.1} parent=1 // pred_check_branch
      %60 = sbr.rel (0) target = $region29
    $region28: #{tpu_custom_call.1} parent=1 // pred_region
      %s62 = ssub.s32 8192, 8192
      %63 = vsyncadd [#allocation9], %s62
      %s64 = sshll.u32 [#allocation8], 4
      %s65 = int_to_ptr.vmem [resolvable:$true] %s64
      %70 = dma.hbm_to_vmem [thread:$0]  %s6, 8192, %s65, [#allocation9], 256, 256, 16
    $region29: #{tpu_custom_call.1} parent=1 // pred_fallthru
      _
    // Predicated region
    $region30: #{tpu_custom_call.1} parent=1 // pred_check
      _
    $region31: #{tpu_custom_call.1} parent=1 // pred_check_branch
      %72 = sbr.rel (0) target = $region33
    $region32: #{tpu_custom_call.1} parent=1 // pred_region
      _
    $region33: #{tpu_custom_call.1} parent=1 // pred_fallthru
      _
    // Predicated region
    $region34: #{tpu_custom_call.1} parent=1 // pred_check
      _
    $region35: #{tpu_custom_call.1} parent=1 // pred_check_branch
      %74 = sbr.rel (0) target = $region37
    $region36: #{tpu_custom_call.1} parent=1 // pred_region
      %75 = dma.done [#allocation3], 16384
    $region37: #{tpu_custom_call.1} parent=1 // pred_fallthru
      _
    // Predicated region
    $region38: #{tpu_custom_call.1} parent=1 // pred_check
      _
    $region39: #{tpu_custom_call.1} parent=1 // pred_check_branch
      %77 = sbr.rel (0) target = $region41
    $region40: #{tpu_custom_call.1} parent=1 // pred_region
      %78 = dma.done [#allocation6], 2048
    $region41: #{tpu_custom_call.1} parent=1 // pred_fallthru
      _
    // Predicated region
    $region42: #{tpu_custom_call.1} parent=1 // pred_check
      _
    $region43: #{tpu_custom_call.1} parent=1 // pred_check_branch
      %80 = sbr.rel (0) target = $region45
    $region44: #{tpu_custom_call.1} parent=1 // pred_region
      %81 = dma.done [#allocation6], 1024
    $region45: #{tpu_custom_call.1} parent=1 // pred_fallthru
      _
    // Predicated region
    $region46: #{tpu_custom_call.1} parent=1 // pred_check
      _
    $region47: #{tpu_custom_call.1} parent=1 // pred_check_branch
      %83 = sbr.rel (0) target = $region49
    $region48: #{tpu_custom_call.1} parent=1 // pred_region
      %84 = dma.done [#allocation9], 8192
    $region49: #{tpu_custom_call.1} parent=1 // pred_fallthru
      _
    %v86 = vld [vmem:[#allocation2] sm:$0xff]
    %v87 = vld [vmem:[#allocation2 + $0x8] sm:$0xff]
    %v88 = vld [vmem:[#allocation2 + $0x10] sm:$0xff]
    %v89 = vld [vmem:[#allocation2 + $0x18] sm:$0xff]
    %v90 = vld [vmem:[#allocation2 + $0x20] sm:$0xff]
    %v91 = vld [vmem:[#allocation2 + $0x28] sm:$0xff]
    %v92 = vld [vmem:[#allocation2 + $0x30] sm:$0xff]
    %v93 = vld [vmem:[#allocation2 + $0x38] sm:$0xff]
    %v94 = vld [vmem:[#allocation2 + $0x40] sm:$0xff]
    %v95 = vld [vmem:[#allocation2 + $0x48] sm:$0xff]
    %v96 = vld [vmem:[#allocation2 + $0x50] sm:$0xff]
    %v97 = vld [vmem:[#allocation2 + $0x58] sm:$0xff]
    %v98 = vld [vmem:[#allocation2 + $0x60] sm:$0xff]
    %v99 = vld [vmem:[#allocation2 + $0x68] sm:$0xff]
    %v100 = vld [vmem:[#allocation2 + $0x70] sm:$0xff]
    %v101 = vld [vmem:[#allocation2 + $0x78] sm:$0xff]
    %v102 = vld [vmem:[#allocation2 + $0x80] sm:$0xff]
    %v103 = vld [vmem:[#allocation2 + $0x88] sm:$0xff]
    %v104 = vld [vmem:[#allocation2 + $0x90] sm:$0xff]
    %v105 = vld [vmem:[#allocation2 + $0x98] sm:$0xff]
    %v106 = vld [vmem:[#allocation2 + $0xa0] sm:$0xff]
    %v107 = vld [vmem:[#allocation2 + $0xa8] sm:$0xff]
    %v108 = vld [vmem:[#allocation2 + $0xb0] sm:$0xff]
    %v109 = vld [vmem:[#allocation2 + $0xb8] sm:$0xff]
    %v110 = vld [vmem:[#allocation2 + $0xc0] sm:$0xff]
    %v111 = vld [vmem:[#allocation2 + $0xc8] sm:$0xff]
    %v112 = vld [vmem:[#allocation2 + $0xd0] sm:$0xff]
    %v113 = vld [vmem:[#allocation2 + $0xd8] sm:$0xff]
    %v114 = vld [vmem:[#allocation2 + $0xe0] sm:$0xff]
    %v115 = vld [vmem:[#allocation2 + $0xe8] sm:$0xff]
    %v116 = vld [vmem:[#allocation2 + $0xf0] sm:$0xff]
    %v117 = vld [vmem:[#allocation2 + $0xf8] sm:$0xff]
    %v118 = vld [vmem:[#allocation2 + $0x100] sm:$0xff]
    %v119 = vld [vmem:[#allocation2 + $0x108] sm:$0xff]
    %v120 = vld [vmem:[#allocation2 + $0x110] sm:$0xff]
    %v121 = vld [vmem:[#allocation2 + $0x118] sm:$0xff]
    %v122 = vld [vmem:[#allocation2 + $0x120] sm:$0xff]
    %v123 = vld [vmem:[#allocation2 + $0x128] sm:$0xff]
    %v124 = vld [vmem:[#allocation2 + $0x130] sm:$0xff]
    %v125 = vld [vmem:[#allocation2 + $0x138] sm:$0xff]
    %v126 = vld [vmem:[#allocation2 + $0x140] sm:$0xff]
    %v127 = vld [vmem:[#allocation2 + $0x148] sm:$0xff]
    %v128 = vld [vmem:[#allocation2 + $0x150] sm:$0xff]
    %v129 = vld [vmem:[#allocation2 + $0x158] sm:$0xff]
    %v130 = vld [vmem:[#allocation2 + $0x160] sm:$0xff]
    %v131 = vld [vmem:[#allocation2 + $0x168] sm:$0xff]
    %v132 = vld [vmem:[#allocation2 + $0x170] sm:$0xff]
    %v133 = vld [vmem:[#allocation2 + $0x178] sm:$0xff]
    %v134 = vld [vmem:[#allocation2 + $0x180] sm:$0xff]
    %v135 = vld [vmem:[#allocation2 + $0x188] sm:$0xff]
    %v136 = vld [vmem:[#allocation2 + $0x190] sm:$0xff]
    %v137 = vld [vmem:[#allocation2 + $0x198] sm:$0xff]
    %v138 = vld [vmem:[#allocation2 + $0x1a0] sm:$0xff]
    %v139 = vld [vmem:[#allocation2 + $0x1a8] sm:$0xff]
    %v140 = vld [vmem:[#allocation2 + $0x1b0] sm:$0xff]
    %v141 = vld [vmem:[#allocation2 + $0x1b8] sm:$0xff]
    %v142 = vld [vmem:[#allocation2 + $0x1c0] sm:$0xff]
    %v143 = vld [vmem:[#allocation2 + $0x1c8] sm:$0xff]
    %v144 = vld [vmem:[#allocation2 + $0x1d0] sm:$0xff]
    %v145 = vld [vmem:[#allocation2 + $0x1d8] sm:$0xff]
    %v146 = vld [vmem:[#allocation2 + $0x1e0] sm:$0xff]
    %v147 = vld [vmem:[#allocation2 + $0x1e8] sm:$0xff]
    %v148 = vld [vmem:[#allocation2 + $0x1f0] sm:$0xff]
    %v149 = vld [vmem:[#allocation2 + $0x1f8] sm:$0xff]
    %v150 = vld [vmem:[#allocation2 + $0x200] sm:$0xff]
    %v151 = vld [vmem:[#allocation2 + $0x208] sm:$0xff]
    %v152 = vld [vmem:[#allocation2 + $0x210] sm:$0xff]
    %v153 = vld [vmem:[#allocation2 + $0x218] sm:$0xff]
    %v154 = vld [vmem:[#allocation2 + $0x220] sm:$0xff]
    %v155 = vld [vmem:[#allocation2 + $0x228] sm:$0xff]
    %v156 = vld [vmem:[#allocation2 + $0x230] sm:$0xff]
    %v157 = vld [vmem:[#allocation2 + $0x238] sm:$0xff]
    %v158 = vld [vmem:[#allocation2 + $0x240] sm:$0xff]
    %v159 = vld [vmem:[#allocation2 + $0x248] sm:$0xff]
    %v160 = vld [vmem:[#allocation2 + $0x250] sm:$0xff]
    %v161 = vld [vmem:[#allocation2 + $0x258] sm:$0xff]
    %v162 = vld [vmem:[#allocation2 + $0x260] sm:$0xff]
    %v163 = vld [vmem:[#allocation2 + $0x268] sm:$0xff]
    %v164 = vld [vmem:[#allocation2 + $0x270] sm:$0xff]
    %v165 = vld [vmem:[#allocation2 + $0x278] sm:$0xff]
    %v166 = vld [vmem:[#allocation2 + $0x280] sm:$0xff]
    %v167 = vld [vmem:[#allocation2 + $0x288] sm:$0xff]
    %v168 = vld [vmem:[#allocation2 + $0x290] sm:$0xff]
    %v169 = vld [vmem:[#allocation2 + $0x298] sm:$0xff]
    %v170 = vld [vmem:[#allocation2 + $0x2a0] sm:$0xff]
    %v171 = vld [vmem:[#allocation2 + $0x2a8] sm:$0xff]
    %v172 = vld [vmem:[#allocation2 + $0x2b0] sm:$0xff]
    %v173 = vld [vmem:[#allocation2 + $0x2b8] sm:$0xff]
    %v174 = vld [vmem:[#allocation2 + $0x2c0] sm:$0xff]
    %v175 = vld [vmem:[#allocation2 + $0x2c8] sm:$0xff]
    %v176 = vld [vmem:[#allocation2 + $0x2d0] sm:$0xff]
    %v177 = vld [vmem:[#allocation2 + $0x2d8] sm:$0xff]
    %v178 = vld [vmem:[#allocation2 + $0x2e0] sm:$0xff]
    %v179 = vld [vmem:[#allocation2 + $0x2e8] sm:$0xff]
    %v180 = vld [vmem:[#allocation2 + $0x2f0] sm:$0xff]
    %v181 = vld [vmem:[#allocation2 + $0x2f8] sm:$0xff]
    %v182 = vld [vmem:[#allocation2 + $0x300] sm:$0xff]
    %v183 = vld [vmem:[#allocation2 + $0x308] sm:$0xff]
    %v184 = vld [vmem:[#allocation2 + $0x310] sm:$0xff]
    %v185 = vld [vmem:[#allocation2 + $0x318] sm:$0xff]
    %v186 = vld [vmem:[#allocation2 + $0x320] sm:$0xff]
    %v187 = vld [vmem:[#allocation2 + $0x328] sm:$0xff]
    %v188 = vld [vmem:[#allocation2 + $0x330] sm:$0xff]
    %v189 = vld [vmem:[#allocation2 + $0x338] sm:$0xff]
    %v190 = vld [vmem:[#allocation2 + $0x340] sm:$0xff]
    %v191 = vld [vmem:[#allocation2 + $0x348] sm:$0xff]
    %v192 = vld [vmem:[#allocation2 + $0x350] sm:$0xff]
    %v193 = vld [vmem:[#allocation2 + $0x358] sm:$0xff]
    %v194 = vld [vmem:[#allocation2 + $0x360] sm:$0xff]
    %v195 = vld [vmem:[#allocation2 + $0x368] sm:$0xff]
    %v196 = vld [vmem:[#allocation2 + $0x370] sm:$0xff]
    %v197 = vld [vmem:[#allocation2 + $0x378] sm:$0xff]
    %v198 = vld [vmem:[#allocation2 + $0x380] sm:$0xff]
    %v199 = vld [vmem:[#allocation2 + $0x388] sm:$0xff]
    %v200 = vld [vmem:[#allocation2 + $0x390] sm:$0xff]
    %v201 = vld [vmem:[#allocation2 + $0x398] sm:$0xff]
    %v202 = vld [vmem:[#allocation2 + $0x3a0] sm:$0xff]
    %v203 = vld [vmem:[#allocation2 + $0x3a8] sm:$0xff]
    %v204 = vld [vmem:[#allocation2 + $0x3b0] sm:$0xff]
    %v205 = vld [vmem:[#allocation2 + $0x3b8] sm:$0xff]
    %v206 = vld [vmem:[#allocation2 + $0x3c0] sm:$0xff]
    %v207 = vld [vmem:[#allocation2 + $0x3c8] sm:$0xff]
    %v208 = vld [vmem:[#allocation2 + $0x3d0] sm:$0xff]
    %v209 = vld [vmem:[#allocation2 + $0x3d8] sm:$0xff]
    %v210 = vld [vmem:[#allocation2 + $0x3e0] sm:$0xff]
    %v211 = vld [vmem:[#allocation2 + $0x3e8] sm:$0xff]
    %v212 = vld [vmem:[#allocation2 + $0x3f0] sm:$0xff]
    %v213 = vld [vmem:[#allocation2 + $0x3f8] sm:$0xff]
    %v214 = vld [vmem:[#allocation5] sm:$0xf]
    %v215 = vld [vmem:[#allocation5 + $0x4] sm:$0xf]
    %v216 = vld [vmem:[#allocation5 + $0x8] sm:$0xf]
    %v217 = vld [vmem:[#allocation5 + $0xc] sm:$0xf]
    %v218 = vld [vmem:[#allocation5 + $0x10] sm:$0xf]
    %v219 = vld [vmem:[#allocation5 + $0x14] sm:$0xf]
    %v220 = vld [vmem:[#allocation5 + $0x18] sm:$0xf]
    %v221 = vld [vmem:[#allocation5 + $0x1c] sm:$0xf]
    %v222 = vld [vmem:[#allocation5 + $0x20] sm:$0xf]
    %v223 = vld [vmem:[#allocation5 + $0x24] sm:$0xf]
    %v224 = vld [vmem:[#allocation5 + $0x28] sm:$0xf]
    %v225 = vld [vmem:[#allocation5 + $0x2c] sm:$0xf]
    %v226 = vld [vmem:[#allocation5 + $0x30] sm:$0xf]
    %v227 = vld [vmem:[#allocation5 + $0x34] sm:$0xf]
    %v228 = vld [vmem:[#allocation5 + $0x38] sm:$0xf]
    %v229 = vld [vmem:[#allocation5 + $0x3c] sm:$0xf]
    %v230 = vld [vmem:[#allocation5 + $0x40] sm:$0xf]
    %v231 = vld [vmem:[#allocation5 + $0x44] sm:$0xf]
    %v232 = vld [vmem:[#allocation5 + $0x48] sm:$0xf]
    %v233 = vld [vmem:[#allocation5 + $0x4c] sm:$0xf]
    %v234 = vld [vmem:[#allocation5 + $0x50] sm:$0xf]
    %v235 = vld [vmem:[#allocation5 + $0x54] sm:$0xf]
    %v236 = vld [vmem:[#allocation5 + $0x58] sm:$0xf]
    %v237 = vld [vmem:[#allocation5 + $0x5c] sm:$0xf]
    %v238 = vld [vmem:[#allocation5 + $0x60] sm:$0xf]
    %v239 = vld [vmem:[#allocation5 + $0x64] sm:$0xf]
    %v240 = vld [vmem:[#allocation5 + $0x68] sm:$0xf]
    %v241 = vld [vmem:[#allocation5 + $0x6c] sm:$0xf]
    %v242 = vld [vmem:[#allocation5 + $0x70] sm:$0xf]
    %v243 = vld [vmem:[#allocation5 + $0x74] sm:$0xf]
    %v244 = vld [vmem:[#allocation5 + $0x78] sm:$0xf]
    %v245 = vld [vmem:[#allocation5 + $0x7c] sm:$0xf]
    %v246 = vld [vmem:[%s2] sm:$0x1]
    %v247 = vld [vmem:[#allocation7] sm:$0xf]
    %v248 = vld [vmem:[#allocation7 + $0x4] sm:$0xf]
    %v249 = vld [vmem:[#allocation7 + $0x8] sm:$0xf]
    %v250 = vld [vmem:[#allocation7 + $0xc] sm:$0xf]
    %v251 = vld [vmem:[#allocation7 + $0x10] sm:$0xf]
    %v252 = vld [vmem:[#allocation7 + $0x14] sm:$0xf]
    %v253 = vld [vmem:[#allocation7 + $0x18] sm:$0xf]
    %v254 = vld [vmem:[#allocation7 + $0x1c] sm:$0xf]
    %v255 = vld [vmem:[#allocation7 + $0x20] sm:$0xf]
    %v256 = vld [vmem:[#allocation7 + $0x24] sm:$0xf]
    %v257 = vld [vmem:[#allocation7 + $0x28] sm:$0xf]
    %v258 = vld [vmem:[#allocation7 + $0x2c] sm:$0xf]
    %v259 = vld [vmem:[#allocation7 + $0x30] sm:$0xf]
    %v260 = vld [vmem:[#allocation7 + $0x34] sm:$0xf]
    %v261 = vld [vmem:[#allocation7 + $0x38] sm:$0xf]
    %v262 = vld [vmem:[#allocation7 + $0x3c] sm:$0xf]
    %v263 = vld [vmem:[%s4] sm:$0x1]
    %v264 = vld [vmem:[%s5] sm:$0x1]
    %v265 = vld [vmem:[#allocation8] sm:$0xff]
    %v266 = vld [vmem:[#allocation8 + $0x8] sm:$0xff]
    %v267 = vld [vmem:[#allocation8 + $0x10] sm:$0xff]
    %v268 = vld [vmem:[#allocation8 + $0x18] sm:$0xff]
    %v269 = vld [vmem:[#allocation8 + $0x20] sm:$0xff]
    %v270 = vld [vmem:[#allocation8 + $0x28] sm:$0xff]
    %v271 = vld [vmem:[#allocation8 + $0x30] sm:$0xff]
    %v272 = vld [vmem:[#allocation8 + $0x38] sm:$0xff]
    %v273 = vld [vmem:[#allocation8 + $0x40] sm:$0xff]
    %v274 = vld [vmem:[#allocation8 + $0x48] sm:$0xff]
    %v275 = vld [vmem:[#allocation8 + $0x50] sm:$0xff]
    %v276 = vld [vmem:[#allocation8 + $0x58] sm:$0xff]
    %v277 = vld [vmem:[#allocation8 + $0x60] sm:$0xff]
    %v278 = vld [vmem:[#allocation8 + $0x68] sm:$0xff]
    %v279 = vld [vmem:[#allocation8 + $0x70] sm:$0xff]
    %v280 = vld [vmem:[#allocation8 + $0x78] sm:$0xff]
    %v281 = vld [vmem:[#allocation8 + $0x80] sm:$0xff]
    %v282 = vld [vmem:[#allocation8 + $0x88] sm:$0xff]
    %v283 = vld [vmem:[#allocation8 + $0x90] sm:$0xff]
    %v284 = vld [vmem:[#allocation8 + $0x98] sm:$0xff]
    %v285 = vld [vmem:[#allocation8 + $0xa0] sm:$0xff]
    %v286 = vld [vmem:[#allocation8 + $0xa8] sm:$0xff]
    %v287 = vld [vmem:[#allocation8 + $0xb0] sm:$0xff]
    %v288 = vld [vmem:[#allocation8 + $0xb8] sm:$0xff]
    %v289 = vld [vmem:[#allocation8 + $0xc0] sm:$0xff]
    %v290 = vld [vmem:[#allocation8 + $0xc8] sm:$0xff]
    %v291 = vld [vmem:[#allocation8 + $0xd0] sm:$0xff]
    %v292 = vld [vmem:[#allocation8 + $0xd8] sm:$0xff]
    %v293 = vld [vmem:[#allocation8 + $0xe0] sm:$0xff]
    %v294 = vld [vmem:[#allocation8 + $0xe8] sm:$0xff]
    %v295 = vld [vmem:[#allocation8 + $0xf0] sm:$0xff]
    %v296 = vld [vmem:[#allocation8 + $0xf8] sm:$0xff]
    %v297 = vld [vmem:[#allocation8 + $0x100] sm:$0xff]
    %v298 = vld [vmem:[#allocation8 + $0x108] sm:$0xff]
    %v299 = vld [vmem:[#allocation8 + $0x110] sm:$0xff]
    %v300 = vld [vmem:[#allocation8 + $0x118] sm:$0xff]
    %v301 = vld [vmem:[#allocation8 + $0x120] sm:$0xff]
    %v302 = vld [vmem:[#allocation8 + $0x128] sm:$0xff]
    %v303 = vld [vmem:[#allocation8 + $0x130] sm:$0xff]
    %v304 = vld [vmem:[#allocation8 + $0x138] sm:$0xff]
    %v305 = vld [vmem:[#allocation8 + $0x140] sm:$0xff]
    %v306 = vld [vmem:[#allocation8 + $0x148] sm:$0xff]
    %v307 = vld [vmem:[#allocation8 + $0x150] sm:$0xff]
    %v308 = vld [vmem:[#allocation8 + $0x158] sm:$0xff]
    %v309 = vld [vmem:[#allocation8 + $0x160] sm:$0xff]
    %v310 = vld [vmem:[#allocation8 + $0x168] sm:$0xff]
    %v311 = vld [vmem:[#allocation8 + $0x170] sm:$0xff]
    %v312 = vld [vmem:[#allocation8 + $0x178] sm:$0xff]
    %v313 = vld [vmem:[#allocation8 + $0x180] sm:$0xff]
    %v314 = vld [vmem:[#allocation8 + $0x188] sm:$0xff]
    %v315 = vld [vmem:[#allocation8 + $0x190] sm:$0xff]
    %v316 = vld [vmem:[#allocation8 + $0x198] sm:$0xff]
    %v317 = vld [vmem:[#allocation8 + $0x1a0] sm:$0xff]
    %v318 = vld [vmem:[#allocation8 + $0x1a8] sm:$0xff]
    %v319 = vld [vmem:[#allocation8 + $0x1b0] sm:$0xff]
    %v320 = vld [vmem:[#allocation8 + $0x1b8] sm:$0xff]
    %v321 = vld [vmem:[#allocation8 + $0x1c0] sm:$0xff]
    %v322 = vld [vmem:[#allocation8 + $0x1c8] sm:$0xff]
    %v323 = vld [vmem:[#allocation8 + $0x1d0] sm:$0xff]
    %v324 = vld [vmem:[#allocation8 + $0x1d8] sm:$0xff]
    %v325 = vld [vmem:[#allocation8 + $0x1e0] sm:$0xff]
    %v326 = vld [vmem:[#allocation8 + $0x1e8] sm:$0xff]
    %v327 = vld [vmem:[#allocation8 + $0x1f0] sm:$0xff]
    %v328 = vld [vmem:[#allocation8 + $0x1f8] sm:$0xff]
    %v329 = vld [vmem:[%s7] sm:$0xf]
    %v458 = vunpack.c.l.b16 %v86
    %v459 = vunpack.c.h.b16 %v86
    %v460 = vunpack.c.l.b16 %v87
    %v461 = vunpack.c.h.b16 %v87
    %v462 = vunpack.c.l.b16 %v88
    %v463 = vunpack.c.h.b16 %v88
    %v464 = vunpack.c.l.b16 %v89
    %v465 = vunpack.c.h.b16 %v89
    %v466 = vunpack.c.l.b16 %v90
    %v467 = vunpack.c.h.b16 %v90
    %v468 = vunpack.c.l.b16 %v91
    %v469 = vunpack.c.h.b16 %v91
    %v470 = vunpack.c.l.b16 %v92
    %v471 = vunpack.c.h.b16 %v92
    %v472 = vunpack.c.l.b16 %v93
    %v473 = vunpack.c.h.b16 %v93
    %v474 = vunpack.c.l.b16 %v94
    %v475 = vunpack.c.h.b16 %v94
    %v476 = vunpack.c.l.b16 %v95
    %v477 = vunpack.c.h.b16 %v95
    %v478 = vunpack.c.l.b16 %v96
    %v479 = vunpack.c.h.b16 %v96
    %v480 = vunpack.c.l.b16 %v97
    %v481 = vunpack.c.h.b16 %v97
    %v482 = vunpack.c.l.b16 %v98
    %v483 = vunpack.c.h.b16 %v98
    %v484 = vunpack.c.l.b16 %v99
    %v485 = vunpack.c.h.b16 %v99
    %v486 = vunpack.c.l.b16 %v100
    %v487 = vunpack.c.h.b16 %v100
    %v488 = vunpack.c.l.b16 %v101
    %v489 = vunpack.c.h.b16 %v101
    %v490 = vunpack.c.l.b16 %v102
    %v491 = vunpack.c.h.b16 %v102
    %v492 = vunpack.c.l.b16 %v103
    %v493 = vunpack.c.h.b16 %v103
    %v494 = vunpack.c.l.b16 %v104
    %v495 = vunpack.c.h.b16 %v104
    %v496 = vunpack.c.l.b16 %v105
    %v497 = vunpack.c.h.b16 %v105
    %v498 = vunpack.c.l.b16 %v106
    %v499 = vunpack.c.h.b16 %v106
    %v500 = vunpack.c.l.b16 %v107
    %v501 = vunpack.c.h.b16 %v107
    %v502 = vunpack.c.l.b16 %v108
    %v503 = vunpack.c.h.b16 %v108
    %v504 = vunpack.c.l.b16 %v109
    %v505 = vunpack.c.h.b16 %v109
    %v506 = vunpack.c.l.b16 %v110
    %v507 = vunpack.c.h.b16 %v110
    %v508 = vunpack.c.l.b16 %v111
    %v509 = vunpack.c.h.b16 %v111
    %v510 = vunpack.c.l.b16 %v112
    %v511 = vunpack.c.h.b16 %v112
    %v512 = vunpack.c.l.b16 %v113
    %v513 = vunpack.c.h.b16 %v113
    %v514 = vunpack.c.l.b16 %v114
    %v515 = vunpack.c.h.b16 %v114
    %v516 = vunpack.c.l.b16 %v115
    %v517 = vunpack.c.h.b16 %v115
    %v518 = vunpack.c.l.b16 %v116
    %v519 = vunpack.c.h.b16 %v116
    %v520 = vunpack.c.l.b16 %v117
    %v521 = vunpack.c.h.b16 %v117
    %v522 = vunpack.c.l.b16 %v118
    %v523 = vunpack.c.h.b16 %v118
    %v524 = vunpack.c.l.b16 %v119
    %v525 = vunpack.c.h.b16 %v119
    %v526 = vunpack.c.l.b16 %v120
    %v527 = vunpack.c.h.b16 %v120
    %v528 = vunpack.c.l.b16 %v121
    %v529 = vunpack.c.h.b16 %v121
    %v530 = vunpack.c.l.b16 %v122
    %v531 = vunpack.c.h.b16 %v122
    %v532 = vunpack.c.l.b16 %v123
    %v533 = vunpack.c.h.b16 %v123
    %v534 = vunpack.c.l.b16 %v124
    %v535 = vunpack.c.h.b16 %v124
    %v536 = vunpack.c.l.b16 %v125
    %v537 = vunpack.c.h.b16 %v125
    %v538 = vunpack.c.l.b16 %v126
    %v539 = vunpack.c.h.b16 %v126
    %v540 = vunpack.c.l.b16 %v127
    %v541 = vunpack.c.h.b16 %v127
    %v542 = vunpack.c.l.b16 %v128
    %v543 = vunpack.c.h.b16 %v128
    %v544 = vunpack.c.l.b16 %v129
    %v545 = vunpack.c.h.b16 %v129
    %v546 = vunpack.c.l.b16 %v130
    %v547 = vunpack.c.h.b16 %v130
    %v548 = vunpack.c.l.b16 %v131
    %v549 = vunpack.c.h.b16 %v131
    %v550 = vunpack.c.l.b16 %v132
    %v551 = vunpack.c.h.b16 %v132
    %v552 = vunpack.c.l.b16 %v133
    %v553 = vunpack.c.h.b16 %v133
    %v554 = vunpack.c.l.b16 %v134
    %v555 = vunpack.c.h.b16 %v134
    %v556 = vunpack.c.l.b16 %v135
    %v557 = vunpack.c.h.b16 %v135
    %v558 = vunpack.c.l.b16 %v136
    %v559 = vunpack.c.h.b16 %v136
    %v560 = vunpack.c.l.b16 %v137
    %v561 = vunpack.c.h.b16 %v137
    %v562 = vunpack.c.l.b16 %v138
    %v563 = vunpack.c.h.b16 %v138
    %v564 = vunpack.c.l.b16 %v139
    %v565 = vunpack.c.h.b16 %v139
    %v566 = vunpack.c.l.b16 %v140
    %v567 = vunpack.c.h.b16 %v140
    %v568 = vunpack.c.l.b16 %v141
    %v569 = vunpack.c.h.b16 %v141
    %v570 = vunpack.c.l.b16 %v142
    %v571 = vunpack.c.h.b16 %v142
    %v572 = vunpack.c.l.b16 %v143
    %v573 = vunpack.c.h.b16 %v143
    %v574 = vunpack.c.l.b16 %v144
    %v575 = vunpack.c.h.b16 %v144
    %v576 = vunpack.c.l.b16 %v145
    %v577 = vunpack.c.h.b16 %v145
    %v578 = vunpack.c.l.b16 %v146
    %v579 = vunpack.c.h.b16 %v146
    %v580 = vunpack.c.l.b16 %v147
    %v581 = vunpack.c.h.b16 %v147
    %v582 = vunpack.c.l.b16 %v148
    %v583 = vunpack.c.h.b16 %v148
    %v584 = vunpack.c.l.b16 %v149
    %v585 = vunpack.c.h.b16 %v149
    %v586 = vunpack.c.l.b16 %v150
    %v587 = vunpack.c.h.b16 %v150
    %v588 = vunpack.c.l.b16 %v151
    %v589 = vunpack.c.h.b16 %v151
    %v590 = vunpack.c.l.b16 %v152
    %v591 = vunpack.c.h.b16 %v152
    %v592 = vunpack.c.l.b16 %v153
    %v593 = vunpack.c.h.b16 %v153
    %v594 = vunpack.c.l.b16 %v154
    %v595 = vunpack.c.h.b16 %v154
    %v596 = vunpack.c.l.b16 %v155
    %v597 = vunpack.c.h.b16 %v155
    %v598 = vunpack.c.l.b16 %v156
    %v599 = vunpack.c.h.b16 %v156
    %v600 = vunpack.c.l.b16 %v157
    %v601 = vunpack.c.h.b16 %v157
    %v602 = vunpack.c.l.b16 %v158
    %v603 = vunpack.c.h.b16 %v158
    %v604 = vunpack.c.l.b16 %v159
    %v605 = vunpack.c.h.b16 %v159
    %v606 = vunpack.c.l.b16 %v160
    %v607 = vunpack.c.h.b16 %v160
    %v608 = vunpack.c.l.b16 %v161
    %v609 = vunpack.c.h.b16 %v161
    %v610 = vunpack.c.l.b16 %v162
    %v611 = vunpack.c.h.b16 %v162
    %v612 = vunpack.c.l.b16 %v163
    %v613 = vunpack.c.h.b16 %v163
    %v614 = vunpack.c.l.b16 %v164
    %v615 = vunpack.c.h.b16 %v164
    %v616 = vunpack.c.l.b16 %v165
    %v617 = vunpack.c.h.b16 %v165
    %v618 = vunpack.c.l.b16 %v166
    %v619 = vunpack.c.h.b16 %v166
    %v620 = vunpack.c.l.b16 %v167
    %v621 = vunpack.c.h.b16 %v167
    %v622 = vunpack.c.l.b16 %v168
    %v623 = vunpack.c.h.b16 %v168
    %v624 = vunpack.c.l.b16 %v169
    %v625 = vunpack.c.h.b16 %v169
    %v626 = vunpack.c.l.b16 %v170
    %v627 = vunpack.c.h.b16 %v170
    %v628 = vunpack.c.l.b16 %v171
    %v629 = vunpack.c.h.b16 %v171
    %v630 = vunpack.c.l.b16 %v172
    %v631 = vunpack.c.h.b16 %v172
    %v632 = vunpack.c.l.b16 %v173
    %v633 = vunpack.c.h.b16 %v173
    %v634 = vunpack.c.l.b16 %v174
    %v635 = vunpack.c.h.b16 %v174
    %v636 = vunpack.c.l.b16 %v175
    %v637 = vunpack.c.h.b16 %v175
    %v638 = vunpack.c.l.b16 %v176
    %v639 = vunpack.c.h.b16 %v176
    %v640 = vunpack.c.l.b16 %v177
    %v641 = vunpack.c.h.b16 %v177
    %v642 = vunpack.c.l.b16 %v178
    %v643 = vunpack.c.h.b16 %v178
    %v644 = vunpack.c.l.b16 %v179
    %v645 = vunpack.c.h.b16 %v179
    %v646 = vunpack.c.l.b16 %v180
    %v647 = vunpack.c.h.b16 %v180
    %v648 = vunpack.c.l.b16 %v181
    %v649 = vunpack.c.h.b16 %v181
    %v650 = vunpack.c.l.b16 %v182
    %v651 = vunpack.c.h.b16 %v182
    %v652 = vunpack.c.l.b16 %v183
    %v653 = vunpack.c.h.b16 %v183
    %v654 = vunpack.c.l.b16 %v184
    %v655 = vunpack.c.h.b16 %v184
    %v656 = vunpack.c.l.b16 %v185
    %v657 = vunpack.c.h.b16 %v185
    %v658 = vunpack.c.l.b16 %v186
    %v659 = vunpack.c.h.b16 %v186
    %v660 = vunpack.c.l.b16 %v187
    %v661 = vunpack.c.h.b16 %v187
    %v662 = vunpack.c.l.b16 %v188
    %v663 = vunpack.c.h.b16 %v188
    %v664 = vunpack.c.l.b16 %v189
    %v665 = vunpack.c.h.b16 %v189
    %v666 = vunpack.c.l.b16 %v190
    %v667 = vunpack.c.h.b16 %v190
    %v668 = vunpack.c.l.b16 %v191
    %v669 = vunpack.c.h.b16 %v191
    %v670 = vunpack.c.l.b16 %v192
    %v671 = vunpack.c.h.b16 %v192
    %v672 = vunpack.c.l.b16 %v193
    %v673 = vunpack.c.h.b16 %v193
    %v674 = vunpack.c.l.b16 %v194
    %v675 = vunpack.c.h.b16 %v194
    %v676 = vunpack.c.l.b16 %v195
    %v677 = vunpack.c.h.b16 %v195
    %v678 = vunpack.c.l.b16 %v196
    %v679 = vunpack.c.h.b16 %v196
    %v680 = vunpack.c.l.b16 %v197
    %v681 = vunpack.c.h.b16 %v197
    %v682 = vunpack.c.l.b16 %v198
    %v683 = vunpack.c.h.b16 %v198
    %v684 = vunpack.c.l.b16 %v199
    %v685 = vunpack.c.h.b16 %v199
    %v686 = vunpack.c.l.b16 %v200
    %v687 = vunpack.c.h.b16 %v200
    %v688 = vunpack.c.l.b16 %v201
    %v689 = vunpack.c.h.b16 %v201
    %v690 = vunpack.c.l.b16 %v202
    %v691 = vunpack.c.h.b16 %v202
    %v692 = vunpack.c.l.b16 %v203
    %v693 = vunpack.c.h.b16 %v203
    %v694 = vunpack.c.l.b16 %v204
    %v695 = vunpack.c.h.b16 %v204
    %v696 = vunpack.c.l.b16 %v205
    %v697 = vunpack.c.h.b16 %v205
    %v698 = vunpack.c.l.b16 %v206
    %v699 = vunpack.c.h.b16 %v206
    %v700 = vunpack.c.l.b16 %v207
    %v701 = vunpack.c.h.b16 %v207
    %v702 = vunpack.c.l.b16 %v208
    %v703 = vunpack.c.h.b16 %v208
    %v704 = vunpack.c.l.b16 %v209
    %v705 = vunpack.c.h.b16 %v209
    %v706 = vunpack.c.l.b16 %v210
    %v707 = vunpack.c.h.b16 %v210
    %v708 = vunpack.c.l.b16 %v211
    %v709 = vunpack.c.h.b16 %v211
    %v710 = vunpack.c.l.b16 %v212
    %v711 = vunpack.c.h.b16 %v212
    %v712 = vunpack.c.l.b16 %v213
    %v713 = vunpack.c.h.b16 %v213
    %v714 = vpack.c.b16 %v460, %v458
    %v715 = vpack.c.b16 %v461, %v459
    %v716 = vpack.c.b16 %v464, %v462
    %v717 = vpack.c.b16 %v465, %v463
    %v718 = vpack.c.b16 %v468, %v466
    %v719 = vpack.c.b16 %v469, %v467
    %v720 = vpack.c.b16 %v472, %v470
    %v721 = vpack.c.b16 %v473, %v471
    %v722 = vpack.c.b16 %v476, %v474
    %v723 = vpack.c.b16 %v477, %v475
    %v724 = vpack.c.b16 %v480, %v478
    %v725 = vpack.c.b16 %v481, %v479
    %v726 = vpack.c.b16 %v484, %v482
    %v727 = vpack.c.b16 %v485, %v483
    %v728 = vpack.c.b16 %v488, %v486
    %v729 = vpack.c.b16 %v489, %v487
    %v730 = vpack.c.b16 %v492, %v490
    %v731 = vpack.c.b16 %v493, %v491
    %v732 = vpack.c.b16 %v496, %v494
    %v733 = vpack.c.b16 %v497, %v495
    %v734 = vpack.c.b16 %v500, %v498
    %v735 = vpack.c.b16 %v501, %v499
    %v736 = vpack.c.b16 %v504, %v502
    %v737 = vpack.c.b16 %v505, %v503
    %v738 = vpack.c.b16 %v508, %v506
    %v739 = vpack.c.b16 %v509, %v507
    %v740 = vpack.c.b16 %v512, %v510
    %v741 = vpack.c.b16 %v513, %v511
    %v742 = vpack.c.b16 %v516, %v514
    %v743 = vpack.c.b16 %v517, %v515
    %v744 = vpack.c.b16 %v520, %v518
    %v745 = vpack.c.b16 %v521, %v519
    %v746 = vpack.c.b16 %v524, %v522
    %v747 = vpack.c.b16 %v525, %v523
    %v748 = vpack.c.b16 %v528, %v526
    %v749 = vpack.c.b16 %v529, %v527
    %v750 = vpack.c.b16 %v532, %v530
    %v751 = vpack.c.b16 %v533, %v531
    %v752 = vpack.c.b16 %v536, %v534
    %v753 = vpack.c.b16 %v537, %v535
    %v754 = vpack.c.b16 %v540, %v538
    %v755 = vpack.c.b16 %v541, %v539
    %v756 = vpack.c.b16 %v544, %v542
    %v757 = vpack.c.b16 %v545, %v543
    %v758 = vpack.c.b16 %v548, %v546
    %v759 = vpack.c.b16 %v549, %v547
    %v760 = vpack.c.b16 %v552, %v550
    %v761 = vpack.c.b16 %v553, %v551
    %v762 = vpack.c.b16 %v556, %v554
    %v763 = vpack.c.b16 %v557, %v555
    %v764 = vpack.c.b16 %v560, %v558
    %v765 = vpack.c.b16 %v561, %v559
    %v766 = vpack.c.b16 %v564, %v562
    %v767 = vpack.c.b16 %v565, %v563
    %v768 = vpack.c.b16 %v568, %v566
    %v769 = vpack.c.b16 %v569, %v567
    %v770 = vpack.c.b16 %v572, %v570
    %v771 = vpack.c.b16 %v573, %v571
    %v772 = vpack.c.b16 %v576, %v574
    %v773 = vpack.c.b16 %v577, %v575
    %v774 = vpack.c.b16 %v580, %v578
    %v775 = vpack.c.b16 %v581, %v579
    %v776 = vpack.c.b16 %v584, %v582
    %v777 = vpack.c.b16 %v585, %v583
    %v778 = vpack.c.b16 %v588, %v586
    %v779 = vpack.c.b16 %v589, %v587
    %v780 = vpack.c.b16 %v592, %v590
    %v781 = vpack.c.b16 %v593, %v591
    %v782 = vpack.c.b16 %v596, %v594
    %v783 = vpack.c.b16 %v597, %v595
    %v784 = vpack.c.b16 %v600, %v598
    %v785 = vpack.c.b16 %v601, %v599
    %v786 = vpack.c.b16 %v604, %v602
    %v787 = vpack.c.b16 %v605, %v603
    %v788 = vpack.c.b16 %v608, %v606
    %v789 = vpack.c.b16 %v609, %v607
    %v790 = vpack.c.b16 %v612, %v610
    %v791 = vpack.c.b16 %v613, %v611
    %v792 = vpack.c.b16 %v616, %v614
    %v793 = vpack.c.b16 %v617, %v615
    %v794 = vpack.c.b16 %v620, %v618
    %v795 = vpack.c.b16 %v621, %v619
    %v796 = vpack.c.b16 %v624, %v622
    %v797 = vpack.c.b16 %v625, %v623
    %v798 = vpack.c.b16 %v628, %v626
    %v799 = vpack.c.b16 %v629, %v627
    %v800 = vpack.c.b16 %v632, %v630
    %v801 = vpack.c.b16 %v633, %v631
    %v802 = vpack.c.b16 %v636, %v634
    %v803 = vpack.c.b16 %v637, %v635
    %v804 = vpack.c.b16 %v640, %v638
    %v805 = vpack.c.b16 %v641, %v639
    %v806 = vpack.c.b16 %v644, %v642
    %v807 = vpack.c.b16 %v645, %v643
    %v808 = vpack.c.b16 %v648, %v646
    %v809 = vpack.c.b16 %v649, %v647
    %v810 = vpack.c.b16 %v652, %v650
    %v811 = vpack.c.b16 %v653, %v651
    %v812 = vpack.c.b16 %v656, %v654
    %v813 = vpack.c.b16 %v657, %v655
    %v814 = vpack.c.b16 %v660, %v658
    %v815 = vpack.c.b16 %v661, %v659
    %v816 = vpack.c.b16 %v664, %v662
    %v817 = vpack.c.b16 %v665, %v663
    %v818 = vpack.c.b16 %v668, %v666
    %v819 = vpack.c.b16 %v669, %v667
    %v820 = vpack.c.b16 %v672, %v670
    %v821 = vpack.c.b16 %v673, %v671
    %v822 = vpack.c.b16 %v676, %v674
    %v823 = vpack.c.b16 %v677, %v675
    %v824 = vpack.c.b16 %v680, %v678
    %v825 = vpack.c.b16 %v681, %v679
    %v826 = vpack.c.b16 %v684, %v682
    %v827 = vpack.c.b16 %v685, %v683
    %v828 = vpack.c.b16 %v688, %v686
    %v829 = vpack.c.b16 %v689, %v687
    %v830 = vpack.c.b16 %v692, %v690
    %v831 = vpack.c.b16 %v693, %v691
    %v832 = vpack.c.b16 %v696, %v694
    %v833 = vpack.c.b16 %v697, %v695
    %v834 = vpack.c.b16 %v700, %v698
    %v835 = vpack.c.b16 %v701, %v699
    %v836 = vpack.c.b16 %v704, %v702
    %v837 = vpack.c.b16 %v705, %v703
    %v838 = vpack.c.b16 %v708, %v706
    %v839 = vpack.c.b16 %v709, %v707
    %v840 = vpack.c.b16 %v712, %v710
    %v841 = vpack.c.b16 %v713, %v711
    %v1002 = vunpack.c.l.b16 %v214
    %v1003 = vunpack.c.l.b16 %v215
    %v1004 = vunpack.c.l.b16 %v216
    %v1005 = vunpack.c.l.b16 %v217
    %v1006 = vunpack.c.l.b16 %v218
    %v1007 = vunpack.c.l.b16 %v219
    %v1008 = vunpack.c.l.b16 %v220
    %v1009 = vunpack.c.l.b16 %v221
    %v1010 = vunpack.c.l.b16 %v222
    %v1011 = vunpack.c.l.b16 %v223
    %v1012 = vunpack.c.l.b16 %v224
    %v1013 = vunpack.c.l.b16 %v225
    %v1014 = vunpack.c.l.b16 %v226
    %v1015 = vunpack.c.l.b16 %v227
    %v1016 = vunpack.c.l.b16 %v228
    %v1017 = vunpack.c.l.b16 %v229
    %v1018 = vunpack.c.l.b16 %v230
    %v1019 = vunpack.c.l.b16 %v231
    %v1020 = vunpack.c.l.b16 %v232
    %v1021 = vunpack.c.l.b16 %v233
    %v1022 = vunpack.c.l.b16 %v234
    %v1023 = vunpack.c.l.b16 %v235
    %v1024 = vunpack.c.l.b16 %v236
    %v1025 = vunpack.c.l.b16 %v237
    %v1026 = vunpack.c.l.b16 %v238
    %v1027 = vunpack.c.l.b16 %v239
    %v1028 = vunpack.c.l.b16 %v240
    %v1029 = vunpack.c.l.b16 %v241
    %v1030 = vunpack.c.l.b16 %v242
    %v1031 = vunpack.c.l.b16 %v243
    %v1032 = vunpack.c.l.b16 %v244
    %v1033 = vunpack.c.l.b16 %v245
    %v1034 = vpack.c.b16 %v1003, %v1002
    %v1035 = vpack.c.b16 %v1005, %v1004
    %v1036 = vpack.c.b16 %v1007, %v1006
    %v1037 = vpack.c.b16 %v1009, %v1008
    %v1038 = vpack.c.b16 %v1011, %v1010
    %v1039 = vpack.c.b16 %v1013, %v1012
    %v1040 = vpack.c.b16 %v1015, %v1014
    %v1041 = vpack.c.b16 %v1017, %v1016
    %v1042 = vpack.c.b16 %v1019, %v1018
    %v1043 = vpack.c.b16 %v1021, %v1020
    %v1044 = vpack.c.b16 %v1023, %v1022
    %v1045 = vpack.c.b16 %v1025, %v1024
    %v1046 = vpack.c.b16 %v1027, %v1026
    %v1047 = vpack.c.b16 %v1029, %v1028
    %v1048 = vpack.c.b16 %v1031, %v1030
    %v1049 = vpack.c.b16 %v1033, %v1032
    %1066 = vmatprep.subr.bf16.mxu0 0
    %1067 = vmatpush1.bf16.msra.mxu0 %v1041
    %1068 = vmatprep.subr.bf16.mxu0 0
    %1069 = vmatpush1.bf16.msra.mxu0 %v1040
    %1070 = vmatprep.subr.bf16.mxu0 0
    %1071 = vmatpush1.bf16.msra.mxu0 %v1039
    %1072 = vmatprep.subr.bf16.mxu0 0
    %1073 = vmatpush1.bf16.msra.mxu0 %v1038
    %1074 = vmatprep.subr.bf16.mxu0 0
    %1075 = vmatpush1.bf16.msra.mxu0 %v1037
    %1076 = vmatprep.subr.bf16.mxu0 0
    %1077 = vmatpush1.bf16.msra.mxu0 %v1036
    %1078 = vmatprep.subr.bf16.mxu0 0
    %1079 = vmatpush1.bf16.msra.mxu0 %v1035
    %1080 = vmatprep.subr.bf16.mxu0 0
    %1081 = vmatpush1.bf16.msra.mxu0 %v1034
    %1082 = vmatprep.subr.bf16.mxu0 0
    %1083 = vmatpush2.bf16.msra.mxu0 %v1049
    %1084 = vmatprep.subr.bf16.mxu0 0
    %1085 = vmatpush2.bf16.msra.mxu0 %v1048
    %1086 = vmatprep.subr.bf16.mxu0 0
    %1087 = vmatpush2.bf16.msra.mxu0 %v1047
    %1088 = vmatprep.subr.bf16.mxu0 0
    %1089 = vmatpush2.bf16.msra.mxu0 %v1046
    %1090 = vmatprep.subr.bf16.mxu0 0
    %1091 = vmatpush2.bf16.msra.mxu0 %v1045
    %1092 = vmatprep.subr.bf16.mxu0 0
    %1093 = vmatpush2.bf16.msra.mxu0 %v1044
    %1094 = vmatprep.subr.bf16.mxu0 0
    %1095 = vmatpush2.bf16.msra.mxu0 %v1043
    %1096 = vmatprep.subr.bf16.mxu0 0
    %1097 = vmatpush2.bf16.msra.mxu0 %v1042
    %1098 = vmatprep.mubr.bf16.mxu0 %v715
    %1099 = vmatmul.mubr.bf16.gmra.mxu0 %v714
    %v1100 = vpop.f32.mrf.mxu0
    %v1101 = vadd.f32 0.0, %v1100
    %v1102 = vpop.f32.mrf.mxu0
    %v1103 = vpop.f32.mrf.mxu0
    %v1104 = vadd.f32 0.0, %v1103
    %v1105 = vpop.f32.mrf.mxu0
    %1106 = vmatprep.mubr.bf16.mxu0 %v717
    %1107 = vmatmul.mubr.bf16.gmra.mxu0 %v716
    %v1108 = vpop.f32.mrf.mxu0
    %v1109 = vadd.f32 0.0, %v1108
    %v1110 = vpop.f32.mrf.mxu0
    %v1111 = vpop.f32.mrf.mxu0
    %v1112 = vadd.f32 0.0, %v1111
    %v1113 = vpop.f32.mrf.mxu0
    %1114 = vmatprep.mubr.bf16.mxu0 %v719
    %1115 = vmatmul.mubr.bf16.gmra.mxu0 %v718
    %v1116 = vpop.f32.mrf.mxu0
    %v1117 = vadd.f32 0.0, %v1116
    %v1118 = vpop.f32.mrf.mxu0
    %v1119 = vpop.f32.mrf.mxu0
    %v1120 = vadd.f32 0.0, %v1119
    %v1121 = vpop.f32.mrf.mxu0
    %1122 = vmatprep.mubr.bf16.mxu0 %v721
    %1123 = vmatmul.mubr.bf16.gmra.mxu0 %v720
    %v1124 = vpop.f32.mrf.mxu0
    %v1125 = vadd.f32 0.0, %v1124
    %v1126 = vpop.f32.mrf.mxu0
    %v1127 = vpop.f32.mrf.mxu0
    %v1128 = vadd.f32 0.0, %v1127
    %v1129 = vpop.f32.mrf.mxu0
    %1130 = vmatprep.mubr.bf16.mxu0 %v723
    %1131 = vmatmul.mubr.bf16.gmra.mxu0 %v722
    %v1132 = vpop.f32.mrf.mxu0
    %v1133 = vadd.f32 0.0, %v1132
    %v1134 = vpop.f32.mrf.mxu0
    %v1135 = vpop.f32.mrf.mxu0
    %v1136 = vadd.f32 0.0, %v1135
    %v1137 = vpop.f32.mrf.mxu0
    %1138 = vmatprep.mubr.bf16.mxu0 %v725
    %1139 = vmatmul.mubr.bf16.gmra.mxu0 %v724
    %v1140 = vpop.f32.mrf.mxu0
    %v1141 = vadd.f32 0.0, %v1140
    %v1142 = vpop.f32.mrf.mxu0
    %v1143 = vpop.f32.mrf.mxu0
    %v1144 = vadd.f32 0.0, %v1143
    %v1145 = vpop.f32.mrf.mxu0
    %1146 = vmatprep.mubr.bf16.mxu0 %v727
    %1147 = vmatmul.mubr.bf16.gmra.mxu0 %v726
    %v1148 = vpop.f32.mrf.mxu0
    %v1149 = vadd.f32 0.0, %v1148
    %v1150 = vpop.f32.mrf.mxu0
    %v1151 = vpop.f32.mrf.mxu0
    %v1152 = vadd.f32 0.0, %v1151
    %v1153 = vpop.f32.mrf.mxu0
    %1154 = vmatprep.mubr.bf16.mxu0 %v729
    %1155 = vmatmul.mubr.bf16.gmra.mxu0 %v728
    %v1156 = vpop.f32.mrf.mxu0
    %v1157 = vadd.f32 0.0, %v1156
    %v1158 = vpop.f32.mrf.mxu0
    %v1159 = vpop.f32.mrf.mxu0
    %v1160 = vadd.f32 0.0, %v1159
    %v1161 = vpop.f32.mrf.mxu0
    %1162 = vmatprep.mubr.bf16.mxu0 %v731
    %1163 = vmatmul.mubr.bf16.gmra.mxu0 %v730
    %v1164 = vpop.f32.mrf.mxu0
    %v1165 = vadd.f32 0.0, %v1164
    %v1166 = vpop.f32.mrf.mxu0
    %v1167 = vpop.f32.mrf.mxu0
    %v1168 = vadd.f32 0.0, %v1167
    %v1169 = vpop.f32.mrf.mxu0
    %1170 = vmatprep.mubr.bf16.mxu0 %v733
    %1171 = vmatmul.mubr.bf16.gmra.mxu0 %v732
    %v1172 = vpop.f32.mrf.mxu0
    %v1173 = vadd.f32 0.0, %v1172
    %v1174 = vpop.f32.mrf.mxu0
    %v1175 = vpop.f32.mrf.mxu0
    %v1176 = vadd.f32 0.0, %v1175
    %v1177 = vpop.f32.mrf.mxu0
    %1178 = vmatprep.mubr.bf16.mxu0 %v735
    %1179 = vmatmul.mubr.bf16.gmra.mxu0 %v734
    %v1180 = vpop.f32.mrf.mxu0
    %v1181 = vadd.f32 0.0, %v1180
    %v1182 = vpop.f32.mrf.mxu0
    %v1183 = vpop.f32.mrf.mxu0
    %v1184 = vadd.f32 0.0, %v1183
    %v1185 = vpop.f32.mrf.mxu0
    %1186 = vmatprep.mubr.bf16.mxu0 %v737
    %1187 = vmatmul.mubr.bf16.gmra.mxu0 %v736
    %v1188 = vpop.f32.mrf.mxu0
    %v1189 = vadd.f32 0.0, %v1188
    %v1190 = vpop.f32.mrf.mxu0
    %v1191 = vpop.f32.mrf.mxu0
    %v1192 = vadd.f32 0.0, %v1191
    %v1193 = vpop.f32.mrf.mxu0
    %1194 = vmatprep.mubr.bf16.mxu0 %v739
    %1195 = vmatmul.mubr.bf16.gmra.mxu0 %v738
    %v1196 = vpop.f32.mrf.mxu0
    %v1197 = vadd.f32 0.0, %v1196
    %v1198 = vpop.f32.mrf.mxu0
    %v1199 = vpop.f32.mrf.mxu0
    %v1200 = vadd.f32 0.0, %v1199
    %v1201 = vpop.f32.mrf.mxu0
    %1202 = vmatprep.mubr.bf16.mxu0 %v741
    %1203 = vmatmul.mubr.bf16.gmra.mxu0 %v740
    %v1204 = vpop.f32.mrf.mxu0
    %v1205 = vadd.f32 0.0, %v1204
    %v1206 = vpop.f32.mrf.mxu0
    %v1207 = vpop.f32.mrf.mxu0
    %v1208 = vadd.f32 0.0, %v1207
    %v1209 = vpop.f32.mrf.mxu0
    %1210 = vmatprep.mubr.bf16.mxu0 %v743
    %1211 = vmatmul.mubr.bf16.gmra.mxu0 %v742
    %v1212 = vpop.f32.mrf.mxu0
    %v1213 = vadd.f32 0.0, %v1212
    %v1214 = vpop.f32.mrf.mxu0
    %v1215 = vpop.f32.mrf.mxu0
    %v1216 = vadd.f32 0.0, %v1215
    %v1217 = vpop.f32.mrf.mxu0
    %1218 = vmatprep.mubr.bf16.mxu0 %v745
    %1219 = vmatmul.mubr.bf16.gmra.mxu0 %v744
    %v1220 = vpop.f32.mrf.mxu0
    %v1221 = vadd.f32 0.0, %v1220
    %v1222 = vpop.f32.mrf.mxu0
    %v1223 = vpop.f32.mrf.mxu0
    %v1224 = vadd.f32 0.0, %v1223
    %v1225 = vpop.f32.mrf.mxu0
    %1226 = vmatprep.mubr.bf16.mxu0 %v747
    %1227 = vmatmul.mubr.bf16.gmra.mxu0 %v746
    %v1228 = vpop.f32.mrf.mxu0
    %v1229 = vadd.f32 0.0, %v1228
    %v1230 = vpop.f32.mrf.mxu0
    %v1231 = vpop.f32.mrf.mxu0
    %v1232 = vadd.f32 0.0, %v1231
    %v1233 = vpop.f32.mrf.mxu0
    %1234 = vmatprep.mubr.bf16.mxu0 %v749
    %1235 = vmatmul.mubr.bf16.gmra.mxu0 %v748
    %v1236 = vpop.f32.mrf.mxu0
    %v1237 = vadd.f32 0.0, %v1236
    %v1238 = vpop.f32.mrf.mxu0
    %v1239 = vpop.f32.mrf.mxu0
    %v1240 = vadd.f32 0.0, %v1239
    %v1241 = vpop.f32.mrf.mxu0
    %1242 = vmatprep.mubr.bf16.mxu0 %v751
    %1243 = vmatmul.mubr.bf16.gmra.mxu0 %v750
    %v1244 = vpop.f32.mrf.mxu0
    %v1245 = vadd.f32 0.0, %v1244
    %v1246 = vpop.f32.mrf.mxu0
    %v1247 = vpop.f32.mrf.mxu0
    %v1248 = vadd.f32 0.0, %v1247
    %v1249 = vpop.f32.mrf.mxu0
    %1250 = vmatprep.mubr.bf16.mxu0 %v753
    %1251 = vmatmul.mubr.bf16.gmra.mxu0 %v752
    %v1252 = vpop.f32.mrf.mxu0
    %v1253 = vadd.f32 0.0, %v1252
    %v1254 = vpop.f32.mrf.mxu0
    %v1255 = vpop.f32.mrf.mxu0
    %v1256 = vadd.f32 0.0, %v1255
    %v1257 = vpop.f32.mrf.mxu0
    %1258 = vmatprep.mubr.bf16.mxu0 %v755
    %1259 = vmatmul.mubr.bf16.gmra.mxu0 %v754
    %v1260 = vpop.f32.mrf.mxu0
    %v1261 = vadd.f32 0.0, %v1260
    %v1262 = vpop.f32.mrf.mxu0
    %v1263 = vpop.f32.mrf.mxu0
    %v1264 = vadd.f32 0.0, %v1263
    %v1265 = vpop.f32.mrf.mxu0
    %1266 = vmatprep.mubr.bf16.mxu0 %v757
    %1267 = vmatmul.mubr.bf16.gmra.mxu0 %v756
    %v1268 = vpop.f32.mrf.mxu0
    %v1269 = vadd.f32 0.0, %v1268
    %v1270 = vpop.f32.mrf.mxu0
    %v1271 = vpop.f32.mrf.mxu0
    %v1272 = vadd.f32 0.0, %v1271
    %v1273 = vpop.f32.mrf.mxu0
    %1274 = vmatprep.mubr.bf16.mxu0 %v759
    %1275 = vmatmul.mubr.bf16.gmra.mxu0 %v758
    %v1276 = vpop.f32.mrf.mxu0
    %v1277 = vadd.f32 0.0, %v1276
    %v1278 = vpop.f32.mrf.mxu0
    %v1279 = vpop.f32.mrf.mxu0
    %v1280 = vadd.f32 0.0, %v1279
    %v1281 = vpop.f32.mrf.mxu0
    %1282 = vmatprep.mubr.bf16.mxu0 %v761
    %1283 = vmatmul.mubr.bf16.gmra.mxu0 %v760
    %v1284 = vpop.f32.mrf.mxu0
    %v1285 = vadd.f32 0.0, %v1284
    %v1286 = vpop.f32.mrf.mxu0
    %v1287 = vpop.f32.mrf.mxu0
    %v1288 = vadd.f32 0.0, %v1287
    %v1289 = vpop.f32.mrf.mxu0
    %1290 = vmatprep.mubr.bf16.mxu0 %v763
    %1291 = vmatmul.mubr.bf16.gmra.mxu0 %v762
    %v1292 = vpop.f32.mrf.mxu0
    %v1293 = vadd.f32 0.0, %v1292
    %v1294 = vpop.f32.mrf.mxu0
    %v1295 = vpop.f32.mrf.mxu0
    %v1296 = vadd.f32 0.0, %v1295
    %v1297 = vpop.f32.mrf.mxu0
    %1298 = vmatprep.mubr.bf16.mxu0 %v765
    %1299 = vmatmul.mubr.bf16.gmra.mxu0 %v764
    %v1300 = vpop.f32.mrf.mxu0
    %v1301 = vadd.f32 0.0, %v1300
    %v1302 = vpop.f32.mrf.mxu0
    %v1303 = vpop.f32.mrf.mxu0
    %v1304 = vadd.f32 0.0, %v1303
    %v1305 = vpop.f32.mrf.mxu0
    %1306 = vmatprep.mubr.bf16.mxu0 %v767
    %1307 = vmatmul.mubr.bf16.gmra.mxu0 %v766
    %v1308 = vpop.f32.mrf.mxu0
    %v1309 = vadd.f32 0.0, %v1308
    %v1310 = vpop.f32.mrf.mxu0
    %v1311 = vpop.f32.mrf.mxu0
    %v1312 = vadd.f32 0.0, %v1311
    %v1313 = vpop.f32.mrf.mxu0
    %1314 = vmatprep.mubr.bf16.mxu0 %v769
    %1315 = vmatmul.mubr.bf16.gmra.mxu0 %v768
    %v1316 = vpop.f32.mrf.mxu0
    %v1317 = vadd.f32 0.0, %v1316
    %v1318 = vpop.f32.mrf.mxu0
    %v1319 = vpop.f32.mrf.mxu0
    %v1320 = vadd.f32 0.0, %v1319
    %v1321 = vpop.f32.mrf.mxu0
    %1322 = vmatprep.mubr.bf16.mxu0 %v771
    %1323 = vmatmul.mubr.bf16.gmra.mxu0 %v770
    %v1324 = vpop.f32.mrf.mxu0
    %v1325 = vadd.f32 0.0, %v1324
    %v1326 = vpop.f32.mrf.mxu0
    %v1327 = vpop.f32.mrf.mxu0
    %v1328 = vadd.f32 0.0, %v1327
    %v1329 = vpop.f32.mrf.mxu0
    %1330 = vmatprep.mubr.bf16.mxu0 %v773
    %1331 = vmatmul.mubr.bf16.gmra.mxu0 %v772
    %v1332 = vpop.f32.mrf.mxu0
    %v1333 = vadd.f32 0.0, %v1332
    %v1334 = vpop.f32.mrf.mxu0
    %v1335 = vpop.f32.mrf.mxu0
    %v1336 = vadd.f32 0.0, %v1335
    %v1337 = vpop.f32.mrf.mxu0
    %1338 = vmatprep.mubr.bf16.mxu0 %v775
    %1339 = vmatmul.mubr.bf16.gmra.mxu0 %v774
    %v1340 = vpop.f32.mrf.mxu0
    %v1341 = vadd.f32 0.0, %v1340
    %v1342 = vpop.f32.mrf.mxu0
    %v1343 = vpop.f32.mrf.mxu0
    %v1344 = vadd.f32 0.0, %v1343
    %v1345 = vpop.f32.mrf.mxu0
    %1346 = vmatprep.mubr.bf16.mxu0 %v777
    %1347 = vmatmul.mubr.bf16.gmra.mxu0 %v776
    %v1348 = vpop.f32.mrf.mxu0
    %v1349 = vadd.f32 0.0, %v1348
    %v1350 = vpop.f32.mrf.mxu0
    %v1351 = vpop.f32.mrf.mxu0
    %v1352 = vadd.f32 0.0, %v1351
    %v1353 = vpop.f32.mrf.mxu0
    %1354 = vmatprep.mubr.bf16.mxu0 %v779
    %1355 = vmatmul.mubr.bf16.gmra.mxu0 %v778
    %v1356 = vpop.f32.mrf.mxu0
    %v1357 = vadd.f32 0.0, %v1356
    %v1358 = vpop.f32.mrf.mxu0
    %v1359 = vpop.f32.mrf.mxu0
    %v1360 = vadd.f32 0.0, %v1359
    %v1361 = vpop.f32.mrf.mxu0
    %1362 = vmatprep.mubr.bf16.mxu0 %v781
    %1363 = vmatmul.mubr.bf16.gmra.mxu0 %v780
    %v1364 = vpop.f32.mrf.mxu0
    %v1365 = vadd.f32 0.0, %v1364
    %v1366 = vpop.f32.mrf.mxu0
    %v1367 = vpop.f32.mrf.mxu0
    %v1368 = vadd.f32 0.0, %v1367
    %v1369 = vpop.f32.mrf.mxu0
    %1370 = vmatprep.mubr.bf16.mxu0 %v783
    %1371 = vmatmul.mubr.bf16.gmra.mxu0 %v782
    %v1372 = vpop.f32.mrf.mxu0
    %v1373 = vadd.f32 0.0, %v1372
    %v1374 = vpop.f32.mrf.mxu0
    %v1375 = vpop.f32.mrf.mxu0
    %v1376 = vadd.f32 0.0, %v1375
    %v1377 = vpop.f32.mrf.mxu0
    %1378 = vmatprep.mubr.bf16.mxu0 %v785
    %1379 = vmatmul.mubr.bf16.gmra.mxu0 %v784
    %v1380 = vpop.f32.mrf.mxu0
    %v1381 = vadd.f32 0.0, %v1380
    %v1382 = vpop.f32.mrf.mxu0
    %v1383 = vpop.f32.mrf.mxu0
    %v1384 = vadd.f32 0.0, %v1383
    %v1385 = vpop.f32.mrf.mxu0
    %1386 = vmatprep.mubr.bf16.mxu0 %v787
    %1387 = vmatmul.mubr.bf16.gmra.mxu0 %v786
    %v1388 = vpop.f32.mrf.mxu0
    %v1389 = vadd.f32 0.0, %v1388
    %v1390 = vpop.f32.mrf.mxu0
    %v1391 = vpop.f32.mrf.mxu0
    %v1392 = vadd.f32 0.0, %v1391
    %v1393 = vpop.f32.mrf.mxu0
    %1394 = vmatprep.mubr.bf16.mxu0 %v789
    %1395 = vmatmul.mubr.bf16.gmra.mxu0 %v788
    %v1396 = vpop.f32.mrf.mxu0
    %v1397 = vadd.f32 0.0, %v1396
    %v1398 = vpop.f32.mrf.mxu0
    %v1399 = vpop.f32.mrf.mxu0
    %v1400 = vadd.f32 0.0, %v1399
    %v1401 = vpop.f32.mrf.mxu0
    %1402 = vmatprep.mubr.bf16.mxu0 %v791
    %1403 = vmatmul.mubr.bf16.gmra.mxu0 %v790
    %v1404 = vpop.f32.mrf.mxu0
    %v1405 = vadd.f32 0.0, %v1404
    %v1406 = vpop.f32.mrf.mxu0
    %v1407 = vpop.f32.mrf.mxu0
    %v1408 = vadd.f32 0.0, %v1407
    %v1409 = vpop.f32.mrf.mxu0
    %1410 = vmatprep.mubr.bf16.mxu0 %v793
    %1411 = vmatmul.mubr.bf16.gmra.mxu0 %v792
    %v1412 = vpop.f32.mrf.mxu0
    %v1413 = vadd.f32 0.0, %v1412
    %v1414 = vpop.f32.mrf.mxu0
    %v1415 = vpop.f32.mrf.mxu0
    %v1416 = vadd.f32 0.0, %v1415
    %v1417 = vpop.f32.mrf.mxu0
    %1418 = vmatprep.mubr.bf16.mxu0 %v795
    %1419 = vmatmul.mubr.bf16.gmra.mxu0 %v794
    %v1420 = vpop.f32.mrf.mxu0
    %v1421 = vadd.f32 0.0, %v1420
    %v1422 = vpop.f32.mrf.mxu0
    %v1423 = vpop.f32.mrf.mxu0
    %v1424 = vadd.f32 0.0, %v1423
    %v1425 = vpop.f32.mrf.mxu0
    %1426 = vmatprep.mubr.bf16.mxu0 %v797
    %1427 = vmatmul.mubr.bf16.gmra.mxu0 %v796
    %v1428 = vpop.f32.mrf.mxu0
    %v1429 = vadd.f32 0.0, %v1428
    %v1430 = vpop.f32.mrf.mxu0
    %v1431 = vpop.f32.mrf.mxu0
    %v1432 = vadd.f32 0.0, %v1431
    %v1433 = vpop.f32.mrf.mxu0
    %1434 = vmatprep.mubr.bf16.mxu0 %v799
    %1435 = vmatmul.mubr.bf16.gmra.mxu0 %v798
    %v1436 = vpop.f32.mrf.mxu0
    %v1437 = vadd.f32 0.0, %v1436
    %v1438 = vpop.f32.mrf.mxu0
    %v1439 = vpop.f32.mrf.mxu0
    %v1440 = vadd.f32 0.0, %v1439
    %v1441 = vpop.f32.mrf.mxu0
    %1442 = vmatprep.mubr.bf16.mxu0 %v801
    %1443 = vmatmul.mubr.bf16.gmra.mxu0 %v800
    %v1444 = vpop.f32.mrf.mxu0
    %v1445 = vadd.f32 0.0, %v1444
    %v1446 = vpop.f32.mrf.mxu0
    %v1447 = vpop.f32.mrf.mxu0
    %v1448 = vadd.f32 0.0, %v1447
    %v1449 = vpop.f32.mrf.mxu0
    %1450 = vmatprep.mubr.bf16.mxu0 %v803
    %1451 = vmatmul.mubr.bf16.gmra.mxu0 %v802
    %v1452 = vpop.f32.mrf.mxu0
    %v1453 = vadd.f32 0.0, %v1452
    %v1454 = vpop.f32.mrf.mxu0
    %v1455 = vpop.f32.mrf.mxu0
    %v1456 = vadd.f32 0.0, %v1455
    %v1457 = vpop.f32.mrf.mxu0
    %1458 = vmatprep.mubr.bf16.mxu0 %v805
    %1459 = vmatmul.mubr.bf16.gmra.mxu0 %v804
    %v1460 = vpop.f32.mrf.mxu0
    %v1461 = vadd.f32 0.0, %v1460
    %v1462 = vpop.f32.mrf.mxu0
    %v1463 = vpop.f32.mrf.mxu0
    %v1464 = vadd.f32 0.0, %v1463
    %v1465 = vpop.f32.mrf.mxu0
    %1466 = vmatprep.mubr.bf16.mxu0 %v807
    %1467 = vmatmul.mubr.bf16.gmra.mxu0 %v806
    %v1468 = vpop.f32.mrf.mxu0
    %v1469 = vadd.f32 0.0, %v1468
    %v1470 = vpop.f32.mrf.mxu0
    %v1471 = vpop.f32.mrf.mxu0
    %v1472 = vadd.f32 0.0, %v1471
    %v1473 = vpop.f32.mrf.mxu0
    %1474 = vmatprep.mubr.bf16.mxu0 %v809
    %1475 = vmatmul.mubr.bf16.gmra.mxu0 %v808
    %v1476 = vpop.f32.mrf.mxu0
    %v1477 = vadd.f32 0.0, %v1476
    %v1478 = vpop.f32.mrf.mxu0
    %v1479 = vpop.f32.mrf.mxu0
    %v1480 = vadd.f32 0.0, %v1479
    %v1481 = vpop.f32.mrf.mxu0
    %1482 = vmatprep.mubr.bf16.mxu0 %v811
    %1483 = vmatmul.mubr.bf16.gmra.mxu0 %v810
    %v1484 = vpop.f32.mrf.mxu0
    %v1485 = vadd.f32 0.0, %v1484
    %v1486 = vpop.f32.mrf.mxu0
    %v1487 = vpop.f32.mrf.mxu0
    %v1488 = vadd.f32 0.0, %v1487
    %v1489 = vpop.f32.mrf.mxu0
    %1490 = vmatprep.mubr.bf16.mxu0 %v813
    %1491 = vmatmul.mubr.bf16.gmra.mxu0 %v812
    %v1492 = vpop.f32.mrf.mxu0
    %v1493 = vadd.f32 0.0, %v1492
    %v1494 = vpop.f32.mrf.mxu0
    %v1495 = vpop.f32.mrf.mxu0
    %v1496 = vadd.f32 0.0, %v1495
    %v1497 = vpop.f32.mrf.mxu0
    %1498 = vmatprep.mubr.bf16.mxu0 %v815
    %1499 = vmatmul.mubr.bf16.gmra.mxu0 %v814
    %v1500 = vpop.f32.mrf.mxu0
    %v1501 = vadd.f32 0.0, %v1500
    %v1502 = vpop.f32.mrf.mxu0
    %v1503 = vpop.f32.mrf.mxu0
    %v1504 = vadd.f32 0.0, %v1503
    %v1505 = vpop.f32.mrf.mxu0
    %1506 = vmatprep.mubr.bf16.mxu0 %v817
    %1507 = vmatmul.mubr.bf16.gmra.mxu0 %v816
    %v1508 = vpop.f32.mrf.mxu0
    %v1509 = vadd.f32 0.0, %v1508
    %v1510 = vpop.f32.mrf.mxu0
    %v1511 = vpop.f32.mrf.mxu0
    %v1512 = vadd.f32 0.0, %v1511
    %v1513 = vpop.f32.mrf.mxu0
    %1514 = vmatprep.mubr.bf16.mxu0 %v819
    %1515 = vmatmul.mubr.bf16.gmra.mxu0 %v818
    %v1516 = vpop.f32.mrf.mxu0
    %v1517 = vadd.f32 0.0, %v1516
    %v1518 = vpop.f32.mrf.mxu0
    %v1519 = vpop.f32.mrf.mxu0
    %v1520 = vadd.f32 0.0, %v1519
    %v1521 = vpop.f32.mrf.mxu0
    %1522 = vmatprep.mubr.bf16.mxu0 %v821
    %1523 = vmatmul.mubr.bf16.gmra.mxu0 %v820
    %v1524 = vpop.f32.mrf.mxu0
    %v1525 = vadd.f32 0.0, %v1524
    %v1526 = vpop.f32.mrf.mxu0
    %v1527 = vpop.f32.mrf.mxu0
    %v1528 = vadd.f32 0.0, %v1527
    %v1529 = vpop.f32.mrf.mxu0
    %1530 = vmatprep.mubr.bf16.mxu0 %v823
    %1531 = vmatmul.mubr.bf16.gmra.mxu0 %v822
    %v1532 = vpop.f32.mrf.mxu0
    %v1533 = vadd.f32 0.0, %v1532
    %v1534 = vpop.f32.mrf.mxu0
    %v1535 = vpop.f32.mrf.mxu0
    %v1536 = vadd.f32 0.0, %v1535
    %v1537 = vpop.f32.mrf.mxu0
    %1538 = vmatprep.mubr.bf16.mxu0 %v825
    %1539 = vmatmul.mubr.bf16.gmra.mxu0 %v824
    %v1540 = vpop.f32.mrf.mxu0
    %v1541 = vadd.f32 0.0, %v1540
    %v1542 = vpop.f32.mrf.mxu0
    %v1543 = vpop.f32.mrf.mxu0
    %v1544 = vadd.f32 0.0, %v1543
    %v1545 = vpop.f32.mrf.mxu0
    %1546 = vmatprep.mubr.bf16.mxu0 %v827
    %1547 = vmatmul.mubr.bf16.gmra.mxu0 %v826
    %v1548 = vpop.f32.mrf.mxu0
    %v1549 = vadd.f32 0.0, %v1548
    %v1550 = vpop.f32.mrf.mxu0
    %v1551 = vpop.f32.mrf.mxu0
    %v1552 = vadd.f32 0.0, %v1551
    %v1553 = vpop.f32.mrf.mxu0
    %1554 = vmatprep.mubr.bf16.mxu0 %v829
    %1555 = vmatmul.mubr.bf16.gmra.mxu0 %v828
    %v1556 = vpop.f32.mrf.mxu0
    %v1557 = vadd.f32 0.0, %v1556
    %v1558 = vpop.f32.mrf.mxu0
    %v1559 = vpop.f32.mrf.mxu0
    %v1560 = vadd.f32 0.0, %v1559
    %v1561 = vpop.f32.mrf.mxu0
    %1562 = vmatprep.mubr.bf16.mxu0 %v831
    %1563 = vmatmul.mubr.bf16.gmra.mxu0 %v830
    %v1564 = vpop.f32.mrf.mxu0
    %v1565 = vadd.f32 0.0, %v1564
    %v1566 = vpop.f32.mrf.mxu0
    %v1567 = vpop.f32.mrf.mxu0
    %v1568 = vadd.f32 0.0, %v1567
    %v1569 = vpop.f32.mrf.mxu0
    %1570 = vmatprep.mubr.bf16.mxu0 %v833
    %1571 = vmatmul.mubr.bf16.gmra.mxu0 %v832
    %v1572 = vpop.f32.mrf.mxu0
    %v1573 = vadd.f32 0.0, %v1572
    %v1574 = vpop.f32.mrf.mxu0
    %v1575 = vpop.f32.mrf.mxu0
    %v1576 = vadd.f32 0.0, %v1575
    %v1577 = vpop.f32.mrf.mxu0
    %1578 = vmatprep.mubr.bf16.mxu0 %v835
    %1579 = vmatmul.mubr.bf16.gmra.mxu0 %v834
    %v1580 = vpop.f32.mrf.mxu0
    %v1581 = vadd.f32 0.0, %v1580
    %v1582 = vpop.f32.mrf.mxu0
    %v1583 = vpop.f32.mrf.mxu0
    %v1584 = vadd.f32 0.0, %v1583
    %v1585 = vpop.f32.mrf.mxu0
    %1586 = vmatprep.mubr.bf16.mxu0 %v837
    %1587 = vmatmul.mubr.bf16.gmra.mxu0 %v836
    %v1588 = vpop.f32.mrf.mxu0
    %v1589 = vadd.f32 0.0, %v1588
    %v1590 = vpop.f32.mrf.mxu0
    %v1591 = vpop.f32.mrf.mxu0
    %v1592 = vadd.f32 0.0, %v1591
    %v1593 = vpop.f32.mrf.mxu0
    %1594 = vmatprep.mubr.bf16.mxu0 %v839
    %1595 = vmatmul.mubr.bf16.gmra.mxu0 %v838
    %v1596 = vpop.f32.mrf.mxu0
    %v1597 = vadd.f32 0.0, %v1596
    %v1598 = vpop.f32.mrf.mxu0
    %v1599 = vpop.f32.mrf.mxu0
    %v1600 = vadd.f32 0.0, %v1599
    %v1601 = vpop.f32.mrf.mxu0
    %1602 = vmatprep.mubr.bf16.mxu0 %v841
    %1603 = vmatmul.mubr.bf16.gmra.mxu0 %v840
    %v1604 = vpop.f32.mrf.mxu0
    %v1605 = vadd.f32 0.0, %v1604
    %v1606 = vpop.f32.mrf.mxu0
    %v1607 = vpop.f32.mrf.mxu0
    %v1608 = vadd.f32 0.0, %v1607
    %v1609 = vpop.f32.mrf.mxu0
    %1610 = vdwg.mxu0
    %v1612 = vlaneseq
    %v1613 = vshrl.u32 %v1612, 7
    %v1614 = vsub.s32 0, %v1613
    %v1615 = vrot.slane %v246, %v1614
    %v1617 = vadd.f32 %v1101, %v1615
    %v1618 = vadd.f32 %v1104, %v1615
    %v1619 = vadd.f32 %v1109, %v1615
    %v1620 = vadd.f32 %v1112, %v1615
    %v1621 = vadd.f32 %v1117, %v1615
    %v1622 = vadd.f32 %v1120, %v1615
    %v1623 = vadd.f32 %v1125, %v1615
    %v1624 = vadd.f32 %v1128, %v1615
    %v1625 = vadd.f32 %v1133, %v1615
    %v1626 = vadd.f32 %v1136, %v1615
    %v1627 = vadd.f32 %v1141, %v1615
    %v1628 = vadd.f32 %v1144, %v1615
    %v1629 = vadd.f32 %v1149, %v1615
    %v1630 = vadd.f32 %v1152, %v1615
    %v1631 = vadd.f32 %v1157, %v1615
    %v1632 = vadd.f32 %v1160, %v1615
    %v1633 = vadd.f32 %v1165, %v1615
    %v1634 = vadd.f32 %v1168, %v1615
    %v1635 = vadd.f32 %v1173, %v1615
    %v1636 = vadd.f32 %v1176, %v1615
    %v1637 = vadd.f32 %v1181, %v1615
    %v1638 = vadd.f32 %v1184, %v1615
    %v1639 = vadd.f32 %v1189, %v1615
    %v1640 = vadd.f32 %v1192, %v1615
    %v1641 = vadd.f32 %v1197, %v1615
    %v1642 = vadd.f32 %v1200, %v1615
    %v1643 = vadd.f32 %v1205, %v1615
    %v1644 = vadd.f32 %v1208, %v1615
    %v1645 = vadd.f32 %v1213, %v1615
    %v1646 = vadd.f32 %v1216, %v1615
    %v1647 = vadd.f32 %v1221, %v1615
    %v1648 = vadd.f32 %v1224, %v1615
    %v1649 = vadd.f32 %v1229, %v1615
    %v1650 = vadd.f32 %v1232, %v1615
    %v1651 = vadd.f32 %v1237, %v1615
    %v1652 = vadd.f32 %v1240, %v1615
    %v1653 = vadd.f32 %v1245, %v1615
    %v1654 = vadd.f32 %v1248, %v1615
    %v1655 = vadd.f32 %v1253, %v1615
    %v1656 = vadd.f32 %v1256, %v1615
    %v1657 = vadd.f32 %v1261, %v1615
    %v1658 = vadd.f32 %v1264, %v1615
    %v1659 = vadd.f32 %v1269, %v1615
    %v1660 = vadd.f32 %v1272, %v1615
    %v1661 = vadd.f32 %v1277, %v1615
    %v1662 = vadd.f32 %v1280, %v1615
    %v1663 = vadd.f32 %v1285, %v1615
    %v1664 = vadd.f32 %v1288, %v1615
    %v1665 = vadd.f32 %v1293, %v1615
    %v1666 = vadd.f32 %v1296, %v1615
    %v1667 = vadd.f32 %v1301, %v1615
    %v1668 = vadd.f32 %v1304, %v1615
    %v1669 = vadd.f32 %v1309, %v1615
    %v1670 = vadd.f32 %v1312, %v1615
    %v1671 = vadd.f32 %v1317, %v1615
    %v1672 = vadd.f32 %v1320, %v1615
    %v1673 = vadd.f32 %v1325, %v1615
    %v1674 = vadd.f32 %v1328, %v1615
    %v1675 = vadd.f32 %v1333, %v1615
    %v1676 = vadd.f32 %v1336, %v1615
    %v1677 = vadd.f32 %v1341, %v1615
    %v1678 = vadd.f32 %v1344, %v1615
    %v1679 = vadd.f32 %v1349, %v1615
    %v1680 = vadd.f32 %v1352, %v1615
    %v1681 = vadd.f32 %v1357, %v1615
    %v1682 = vadd.f32 %v1360, %v1615
    %v1683 = vadd.f32 %v1365, %v1615
    %v1684 = vadd.f32 %v1368, %v1615
    %v1685 = vadd.f32 %v1373, %v1615
    %v1686 = vadd.f32 %v1376, %v1615
    %v1687 = vadd.f32 %v1381, %v1615
    %v1688 = vadd.f32 %v1384, %v1615
    %v1689 = vadd.f32 %v1389, %v1615
    %v1690 = vadd.f32 %v1392, %v1615
    %v1691 = vadd.f32 %v1397, %v1615
    %v1692 = vadd.f32 %v1400, %v1615
    %v1693 = vadd.f32 %v1405, %v1615
    %v1694 = vadd.f32 %v1408, %v1615
    %v1695 = vadd.f32 %v1413, %v1615
    %v1696 = vadd.f32 %v1416, %v1615
    %v1697 = vadd.f32 %v1421, %v1615
    %v1698 = vadd.f32 %v1424, %v1615
    %v1699 = vadd.f32 %v1429, %v1615
    %v1700 = vadd.f32 %v1432, %v1615
    %v1701 = vadd.f32 %v1437, %v1615
    %v1702 = vadd.f32 %v1440, %v1615
    %v1703 = vadd.f32 %v1445, %v1615
    %v1704 = vadd.f32 %v1448, %v1615
    %v1705 = vadd.f32 %v1453, %v1615
    %v1706 = vadd.f32 %v1456, %v1615
    %v1707 = vadd.f32 %v1461, %v1615
    %v1708 = vadd.f32 %v1464, %v1615
    %v1709 = vadd.f32 %v1469, %v1615
    %v1710 = vadd.f32 %v1472, %v1615
    %v1711 = vadd.f32 %v1477, %v1615
    %v1712 = vadd.f32 %v1480, %v1615
    %v1713 = vadd.f32 %v1485, %v1615
    %v1714 = vadd.f32 %v1488, %v1615
    %v1715 = vadd.f32 %v1493, %v1615
    %v1716 = vadd.f32 %v1496, %v1615
    %v1717 = vadd.f32 %v1501, %v1615
    %v1718 = vadd.f32 %v1504, %v1615
    %v1719 = vadd.f32 %v1509, %v1615
    %v1720 = vadd.f32 %v1512, %v1615
    %v1721 = vadd.f32 %v1517, %v1615
    %v1722 = vadd.f32 %v1520, %v1615
    %v1723 = vadd.f32 %v1525, %v1615
    %v1724 = vadd.f32 %v1528, %v1615
    %v1725 = vadd.f32 %v1533, %v1615
    %v1726 = vadd.f32 %v1536, %v1615
    %v1727 = vadd.f32 %v1541, %v1615
    %v1728 = vadd.f32 %v1544, %v1615
    %v1729 = vadd.f32 %v1549, %v1615
    %v1730 = vadd.f32 %v1552, %v1615
    %v1731 = vadd.f32 %v1557, %v1615
    %v1732 = vadd.f32 %v1560, %v1615
    %v1733 = vadd.f32 %v1565, %v1615
    %v1734 = vadd.f32 %v1568, %v1615
    %v1735 = vadd.f32 %v1573, %v1615
    %v1736 = vadd.f32 %v1576, %v1615
    %v1737 = vadd.f32 %v1581, %v1615
    %v1738 = vadd.f32 %v1584, %v1615
    %v1739 = vadd.f32 %v1589, %v1615
    %v1740 = vadd.f32 %v1592, %v1615
    %v1741 = vadd.f32 %v1597, %v1615
    %v1742 = vadd.f32 %v1600, %v1615
    %v1743 = vadd.f32 %v1605, %v1615
    %v1744 = vadd.f32 %v1608, %v1615
    %v1745 = vlaneseq
    %v1746 = vand.u32 %v1745, 127
    %vm1747 = vcmp.lt.s32.totalorder %v1746, 16
    %v1749 = vlaneseq
    %v1750 = vshrl.u32 %v1749, 7
    %v1751 = vsub.s32 0, %v1750
    %v1752 = vrot.slane %v263, %v1751
    %v1754 = vadd.f32 %v1617, %v1752
    %v1755 = vadd.f32 %v1618, %v1752
    %v1756 = vadd.f32 %v1619, %v1752
    %v1757 = vadd.f32 %v1620, %v1752
    %v1758 = vadd.f32 %v1621, %v1752
    %v1759 = vadd.f32 %v1622, %v1752
    %v1760 = vadd.f32 %v1623, %v1752
    %v1761 = vadd.f32 %v1624, %v1752
    %v1762 = vadd.f32 %v1625, %v1752
    %v1763 = vadd.f32 %v1626, %v1752
    %v1764 = vadd.f32 %v1627, %v1752
    %v1765 = vadd.f32 %v1628, %v1752
    %v1766 = vadd.f32 %v1629, %v1752
    %v1767 = vadd.f32 %v1630, %v1752
    %v1768 = vadd.f32 %v1631, %v1752
    %v1769 = vadd.f32 %v1632, %v1752
    %v1770 = vadd.f32 %v1633, %v1752
    %v1771 = vadd.f32 %v1634, %v1752
    %v1772 = vadd.f32 %v1635, %v1752
    %v1773 = vadd.f32 %v1636, %v1752
    %v1774 = vadd.f32 %v1637, %v1752
    %v1775 = vadd.f32 %v1638, %v1752
    %v1776 = vadd.f32 %v1639, %v1752
    %v1777 = vadd.f32 %v1640, %v1752
    %v1778 = vadd.f32 %v1641, %v1752
    %v1779 = vadd.f32 %v1642, %v1752
    %v1780 = vadd.f32 %v1643, %v1752
    %v1781 = vadd.f32 %v1644, %v1752
    %v1782 = vadd.f32 %v1645, %v1752
    %v1783 = vadd.f32 %v1646, %v1752
    %v1784 = vadd.f32 %v1647, %v1752
    %v1785 = vadd.f32 %v1648, %v1752
    %v1786 = vadd.f32 %v1649, %v1752
    %v1787 = vadd.f32 %v1650, %v1752
    %v1788 = vadd.f32 %v1651, %v1752
    %v1789 = vadd.f32 %v1652, %v1752
    %v1790 = vadd.f32 %v1653, %v1752
    %v1791 = vadd.f32 %v1654, %v1752
    %v1792 = vadd.f32 %v1655, %v1752
    %v1793 = vadd.f32 %v1656, %v1752
    %v1794 = vadd.f32 %v1657, %v1752
    %v1795 = vadd.f32 %v1658, %v1752
    %v1796 = vadd.f32 %v1659, %v1752
    %v1797 = vadd.f32 %v1660, %v1752
    %v1798 = vadd.f32 %v1661, %v1752
    %v1799 = vadd.f32 %v1662, %v1752
    %v1800 = vadd.f32 %v1663, %v1752
    %v1801 = vadd.f32 %v1664, %v1752
    %v1802 = vadd.f32 %v1665, %v1752
    %v1803 = vadd.f32 %v1666, %v1752
    %v1804 = vadd.f32 %v1667, %v1752
    %v1805 = vadd.f32 %v1668, %v1752
    %v1806 = vadd.f32 %v1669, %v1752
    %v1807 = vadd.f32 %v1670, %v1752
    %v1808 = vadd.f32 %v1671, %v1752
    %v1809 = vadd.f32 %v1672, %v1752
    %v1810 = vadd.f32 %v1673, %v1752
    %v1811 = vadd.f32 %v1674, %v1752
    %v1812 = vadd.f32 %v1675, %v1752
    %v1813 = vadd.f32 %v1676, %v1752
    %v1814 = vadd.f32 %v1677, %v1752
    %v1815 = vadd.f32 %v1678, %v1752
    %v1816 = vadd.f32 %v1679, %v1752
    %v1817 = vadd.f32 %v1680, %v1752
    %v1818 = vadd.f32 %v1681, %v1752
    %v1819 = vadd.f32 %v1682, %v1752
    %v1820 = vadd.f32 %v1683, %v1752
    %v1821 = vadd.f32 %v1684, %v1752
    %v1822 = vadd.f32 %v1685, %v1752
    %v1823 = vadd.f32 %v1686, %v1752
    %v1824 = vadd.f32 %v1687, %v1752
    %v1825 = vadd.f32 %v1688, %v1752
    %v1826 = vadd.f32 %v1689, %v1752
    %v1827 = vadd.f32 %v1690, %v1752
    %v1828 = vadd.f32 %v1691, %v1752
    %v1829 = vadd.f32 %v1692, %v1752
    %v1830 = vadd.f32 %v1693, %v1752
    %v1831 = vadd.f32 %v1694, %v1752
    %v1832 = vadd.f32 %v1695, %v1752
    %v1833 = vadd.f32 %v1696, %v1752
    %v1834 = vadd.f32 %v1697, %v1752
    %v1835 = vadd.f32 %v1698, %v1752
    %v1836 = vadd.f32 %v1699, %v1752
    %v1837 = vadd.f32 %v1700, %v1752
    %v1838 = vadd.f32 %v1701, %v1752
    %v1839 = vadd.f32 %v1702, %v1752
    %v1840 = vadd.f32 %v1703, %v1752
    %v1841 = vadd.f32 %v1704, %v1752
    %v1842 = vadd.f32 %v1705, %v1752
    %v1843 = vadd.f32 %v1706, %v1752
    %v1844 = vadd.f32 %v1707, %v1752
    %v1845 = vadd.f32 %v1708, %v1752
    %v1846 = vadd.f32 %v1709, %v1752
    %v1847 = vadd.f32 %v1710, %v1752
    %v1848 = vadd.f32 %v1711, %v1752
    %v1849 = vadd.f32 %v1712, %v1752
    %v1850 = vadd.f32 %v1713, %v1752
    %v1851 = vadd.f32 %v1714, %v1752
    %v1852 = vadd.f32 %v1715, %v1752
    %v1853 = vadd.f32 %v1716, %v1752
    %v1854 = vadd.f32 %v1717, %v1752
    %v1855 = vadd.f32 %v1718, %v1752
    %v1856 = vadd.f32 %v1719, %v1752
    %v1857 = vadd.f32 %v1720, %v1752
    %v1858 = vadd.f32 %v1721, %v1752
    %v1859 = vadd.f32 %v1722, %v1752
    %v1860 = vadd.f32 %v1723, %v1752
    %v1861 = vadd.f32 %v1724, %v1752
    %v1862 = vadd.f32 %v1725, %v1752
    %v1863 = vadd.f32 %v1726, %v1752
    %v1864 = vadd.f32 %v1727, %v1752
    %v1865 = vadd.f32 %v1728, %v1752
    %v1866 = vadd.f32 %v1729, %v1752
    %v1867 = vadd.f32 %v1730, %v1752
    %v1868 = vadd.f32 %v1731, %v1752
    %v1869 = vadd.f32 %v1732, %v1752
    %v1870 = vadd.f32 %v1733, %v1752
    %v1871 = vadd.f32 %v1734, %v1752
    %v1872 = vadd.f32 %v1735, %v1752
    %v1873 = vadd.f32 %v1736, %v1752
    %v1874 = vadd.f32 %v1737, %v1752
    %v1875 = vadd.f32 %v1738, %v1752
    %v1876 = vadd.f32 %v1739, %v1752
    %v1877 = vadd.f32 %v1740, %v1752
    %v1878 = vadd.f32 %v1741, %v1752
    %v1879 = vadd.f32 %v1742, %v1752
    %v1880 = vadd.f32 %v1743, %v1752
    %v1881 = vadd.f32 %v1744, %v1752
    %v1882 = vtanh.pop %v1754
    %v1883 = vtanh.pop %v1755
    %v1884 = vtanh.pop %v1756
    %v1885 = vtanh.pop %v1757
    %v1886 = vtanh.pop %v1758
    %v1887 = vtanh.pop %v1759
    %v1888 = vtanh.pop %v1760
    %v1889 = vtanh.pop %v1761
    %v1890 = vtanh.pop %v1762
    %v1891 = vtanh.pop %v1763
    %v1892 = vtanh.pop %v1764
    %v1893 = vtanh.pop %v1765
    %v1894 = vtanh.pop %v1766
    %v1895 = vtanh.pop %v1767
    %v1896 = vtanh.pop %v1768
    %v1897 = vtanh.pop %v1769
    %v1898 = vtanh.pop %v1770
    %v1899 = vtanh.pop %v1771
    %v1900 = vtanh.pop %v1772
    %v1901 = vtanh.pop %v1773
    %v1902 = vtanh.pop %v1774
    %v1903 = vtanh.pop %v1775
    %v1904 = vtanh.pop %v1776
    %v1905 = vtanh.pop %v1777
    %v1906 = vtanh.pop %v1778
    %v1907 = vtanh.pop %v1779
    %v1908 = vtanh.pop %v1780
    %v1909 = vtanh.pop %v1781
    %v1910 = vtanh.pop %v1782
    %v1911 = vtanh.pop %v1783
    %v1912 = vtanh.pop %v1784
    %v1913 = vtanh.pop %v1785
    %v1914 = vtanh.pop %v1786
    %v1915 = vtanh.pop %v1787
    %v1916 = vtanh.pop %v1788
    %v1917 = vtanh.pop %v1789
    %v1918 = vtanh.pop %v1790
    %v1919 = vtanh.pop %v1791
    %v1920 = vtanh.pop %v1792
    %v1921 = vtanh.pop %v1793
    %v1922 = vtanh.pop %v1794
    %v1923 = vtanh.pop %v1795
    %v1924 = vtanh.pop %v1796
    %v1925 = vtanh.pop %v1797
    %v1926 = vtanh.pop %v1798
    %v1927 = vtanh.pop %v1799
    %v1928 = vtanh.pop %v1800
    %v1929 = vtanh.pop %v1801
    %v1930 = vtanh.pop %v1802
    %v1931 = vtanh.pop %v1803
    %v1932 = vtanh.pop %v1804
    %v1933 = vtanh.pop %v1805
    %v1934 = vtanh.pop %v1806
    %v1935 = vtanh.pop %v1807
    %v1936 = vtanh.pop %v1808
    %v1937 = vtanh.pop %v1809
    %v1938 = vtanh.pop %v1810
    %v1939 = vtanh.pop %v1811
    %v1940 = vtanh.pop %v1812
    %v1941 = vtanh.pop %v1813
    %v1942 = vtanh.pop %v1814
    %v1943 = vtanh.pop %v1815
    %v1944 = vtanh.pop %v1816
    %v1945 = vtanh.pop %v1817
    %v1946 = vtanh.pop %v1818
    %v1947 = vtanh.pop %v1819
    %v1948 = vtanh.pop %v1820
    %v1949 = vtanh.pop %v1821
    %v1950 = vtanh.pop %v1822
    %v1951 = vtanh.pop %v1823
    %v1952 = vtanh.pop %v1824
    %v1953 = vtanh.pop %v1825
    %v1954 = vtanh.pop %v1826
    %v1955 = vtanh.pop %v1827
    %v1956 = vtanh.pop %v1828
    %v1957 = vtanh.pop %v1829
    %v1958 = vtanh.pop %v1830
    %v1959 = vtanh.pop %v1831
    %v1960 = vtanh.pop %v1832
    %v1961 = vtanh.pop %v1833
    %v1962 = vtanh.pop %v1834
    %v1963 = vtanh.pop %v1835
    %v1964 = vtanh.pop %v1836
    %v1965 = vtanh.pop %v1837
    %v1966 = vtanh.pop %v1838
    %v1967 = vtanh.pop %v1839
    %v1968 = vtanh.pop %v1840
    %v1969 = vtanh.pop %v1841
    %v1970 = vtanh.pop %v1842
    %v1971 = vtanh.pop %v1843
    %v1972 = vtanh.pop %v1844
    %v1973 = vtanh.pop %v1845
    %v1974 = vtanh.pop %v1846
    %v1975 = vtanh.pop %v1847
    %v1976 = vtanh.pop %v1848
    %v1977 = vtanh.pop %v1849
    %v1978 = vtanh.pop %v1850
    %v1979 = vtanh.pop %v1851
    %v1980 = vtanh.pop %v1852
    %v1981 = vtanh.pop %v1853
    %v1982 = vtanh.pop %v1854
    %v1983 = vtanh.pop %v1855
    %v1984 = vtanh.pop %v1856
    %v1985 = vtanh.pop %v1857
    %v1986 = vtanh.pop %v1858
    %v1987 = vtanh.pop %v1859
    %v1988 = vtanh.pop %v1860
    %v1989 = vtanh.pop %v1861
    %v1990 = vtanh.pop %v1862
    %v1991 = vtanh.pop %v1863
    %v1992 = vtanh.pop %v1864
    %v1993 = vtanh.pop %v1865
    %v1994 = vtanh.pop %v1866
    %v1995 = vtanh.pop %v1867
    %v1996 = vtanh.pop %v1868
    %v1997 = vtanh.pop %v1869
    %v1998 = vtanh.pop %v1870
    %v1999 = vtanh.pop %v1871
    %v2000 = vtanh.pop %v1872
    %v2001 = vtanh.pop %v1873
    %v2002 = vtanh.pop %v1874
    %v2003 = vtanh.pop %v1875
    %v2004 = vtanh.pop %v1876
    %v2005 = vtanh.pop %v1877
    %v2006 = vtanh.pop %v1878
    %v2007 = vtanh.pop %v1879
    %v2008 = vtanh.pop %v1880
    %v2009 = vtanh.pop %v1881
    %v2011 = vlaneseq
    %v2012 = vshrl.u32 %v2011, 7
    %v2013 = vsub.s32 0, %v2012
    %v2014 = vrot.slane %v264, %v2013
    %v2016 = vmul.f32 %v1882, %v2014
    %v2017 = vmul.f32 %v1883, %v2014
    %v2018 = vmul.f32 %v1884, %v2014
    %v2019 = vmul.f32 %v1885, %v2014
    %v2020 = vmul.f32 %v1886, %v2014
    %v2021 = vmul.f32 %v1887, %v2014
    %v2022 = vmul.f32 %v1888, %v2014
    %v2023 = vmul.f32 %v1889, %v2014
    %v2024 = vmul.f32 %v1890, %v2014
    %v2025 = vmul.f32 %v1891, %v2014
    %v2026 = vmul.f32 %v1892, %v2014
    %v2027 = vmul.f32 %v1893, %v2014
    %v2028 = vmul.f32 %v1894, %v2014
    %v2029 = vmul.f32 %v1895, %v2014
    %v2030 = vmul.f32 %v1896, %v2014
    %v2031 = vmul.f32 %v1897, %v2014
    %v2032 = vmul.f32 %v1898, %v2014
    %v2033 = vmul.f32 %v1899, %v2014
    %v2034 = vmul.f32 %v1900, %v2014
    %v2035 = vmul.f32 %v1901, %v2014
    %v2036 = vmul.f32 %v1902, %v2014
    %v2037 = vmul.f32 %v1903, %v2014
    %v2038 = vmul.f32 %v1904, %v2014
    %v2039 = vmul.f32 %v1905, %v2014
    %v2040 = vmul.f32 %v1906, %v2014
    %v2041 = vmul.f32 %v1907, %v2014
    %v2042 = vmul.f32 %v1908, %v2014
    %v2043 = vmul.f32 %v1909, %v2014
    %v2044 = vmul.f32 %v1910, %v2014
    %v2045 = vmul.f32 %v1911, %v2014
    %v2046 = vmul.f32 %v1912, %v2014
    %v2047 = vmul.f32 %v1913, %v2014
    %v2048 = vmul.f32 %v1914, %v2014
    %v2049 = vmul.f32 %v1915, %v2014
    %v2050 = vmul.f32 %v1916, %v2014
    %v2051 = vmul.f32 %v1917, %v2014
    %v2052 = vmul.f32 %v1918, %v2014
    %v2053 = vmul.f32 %v1919, %v2014
    %v2054 = vmul.f32 %v1920, %v2014
    %v2055 = vmul.f32 %v1921, %v2014
    %v2056 = vmul.f32 %v1922, %v2014
    %v2057 = vmul.f32 %v1923, %v2014
    %v2058 = vmul.f32 %v1924, %v2014
    %v2059 = vmul.f32 %v1925, %v2014
    %v2060 = vmul.f32 %v1926, %v2014
    %v2061 = vmul.f32 %v1927, %v2014
    %v2062 = vmul.f32 %v1928, %v2014
    %v2063 = vmul.f32 %v1929, %v2014
    %v2064 = vmul.f32 %v1930, %v2014
    %v2065 = vmul.f32 %v1931, %v2014
    %v2066 = vmul.f32 %v1932, %v2014
    %v2067 = vmul.f32 %v1933, %v2014
    %v2068 = vmul.f32 %v1934, %v2014
    %v2069 = vmul.f32 %v1935, %v2014
    %v2070 = vmul.f32 %v1936, %v2014
    %v2071 = vmul.f32 %v1937, %v2014
    %v2072 = vmul.f32 %v1938, %v2014
    %v2073 = vmul.f32 %v1939, %v2014
    %v2074 = vmul.f32 %v1940, %v2014
    %v2075 = vmul.f32 %v1941, %v2014
    %v2076 = vmul.f32 %v1942, %v2014
    %v2077 = vmul.f32 %v1943, %v2014
    %v2078 = vmul.f32 %v1944, %v2014
    %v2079 = vmul.f32 %v1945, %v2014
    %v2080 = vmul.f32 %v1946, %v2014
    %v2081 = vmul.f32 %v1947, %v2014
    %v2082 = vmul.f32 %v1948, %v2014
    %v2083 = vmul.f32 %v1949, %v2014
    %v2084 = vmul.f32 %v1950, %v2014
    %v2085 = vmul.f32 %v1951, %v2014
    %v2086 = vmul.f32 %v1952, %v2014
    %v2087 = vmul.f32 %v1953, %v2014
    %v2088 = vmul.f32 %v1954, %v2014
    %v2089 = vmul.f32 %v1955, %v2014
    %v2090 = vmul.f32 %v1956, %v2014
    %v2091 = vmul.f32 %v1957, %v2014
    %v2092 = vmul.f32 %v1958, %v2014
    %v2093 = vmul.f32 %v1959, %v2014
    %v2094 = vmul.f32 %v1960, %v2014
    %v2095 = vmul.f32 %v1961, %v2014
    %v2096 = vmul.f32 %v1962, %v2014
    %v2097 = vmul.f32 %v1963, %v2014
    %v2098 = vmul.f32 %v1964, %v2014
    %v2099 = vmul.f32 %v1965, %v2014
    %v2100 = vmul.f32 %v1966, %v2014
    %v2101 = vmul.f32 %v1967, %v2014
    %v2102 = vmul.f32 %v1968, %v2014
    %v2103 = vmul.f32 %v1969, %v2014
    %v2104 = vmul.f32 %v1970, %v2014
    %v2105 = vmul.f32 %v1971, %v2014
    %v2106 = vmul.f32 %v1972, %v2014
    %v2107 = vmul.f32 %v1973, %v2014
    %v2108 = vmul.f32 %v1974, %v2014
    %v2109 = vmul.f32 %v1975, %v2014
    %v2110 = vmul.f32 %v1976, %v2014
    %v2111 = vmul.f32 %v1977, %v2014
    %v2112 = vmul.f32 %v1978, %v2014
    %v2113 = vmul.f32 %v1979, %v2014
    %v2114 = vmul.f32 %v1980, %v2014
    %v2115 = vmul.f32 %v1981, %v2014
    %v2116 = vmul.f32 %v1982, %v2014
    %v2117 = vmul.f32 %v1983, %v2014
    %v2118 = vmul.f32 %v1984, %v2014
    %v2119 = vmul.f32 %v1985, %v2014
    %v2120 = vmul.f32 %v1986, %v2014
    %v2121 = vmul.f32 %v1987, %v2014
    %v2122 = vmul.f32 %v1988, %v2014
    %v2123 = vmul.f32 %v1989, %v2014
    %v2124 = vmul.f32 %v1990, %v2014
    %v2125 = vmul.f32 %v1991, %v2014
    %v2126 = vmul.f32 %v1992, %v2014
    %v2127 = vmul.f32 %v1993, %v2014
    %v2128 = vmul.f32 %v1994, %v2014
    %v2129 = vmul.f32 %v1995, %v2014
    %v2130 = vmul.f32 %v1996, %v2014
    %v2131 = vmul.f32 %v1997, %v2014
    %v2132 = vmul.f32 %v1998, %v2014
    %v2133 = vmul.f32 %v1999, %v2014
    %v2134 = vmul.f32 %v2000, %v2014
    %v2135 = vmul.f32 %v2001, %v2014
    %v2136 = vmul.f32 %v2002, %v2014
    %v2137 = vmul.f32 %v2003, %v2014
    %v2138 = vmul.f32 %v2004, %v2014
    %v2139 = vmul.f32 %v2005, %v2014
    %v2140 = vmul.f32 %v2006, %v2014
    %v2141 = vmul.f32 %v2007, %v2014
    %v2142 = vmul.f32 %v2008, %v2014
    %v2143 = vmul.f32 %v2009, %v2014
    %2144 = vadd.xlane.f32.xlu0 %v2016
    %v2145 = vpop.xlane.xlu0 %2144
    %2146 = vadd.xlane.f32.xlu0 %v2017
    %v2147 = vpop.xlane.xlu0 %2146
    %2148 = vadd.xlane.f32.xlu0 %v2018
    %v2149 = vpop.xlane.xlu0 %2148
    %2150 = vadd.xlane.f32.xlu0 %v2019
    %v2151 = vpop.xlane.xlu0 %2150
    %2152 = vadd.xlane.f32.xlu0 %v2020
    %v2153 = vpop.xlane.xlu0 %2152
    %2154 = vadd.xlane.f32.xlu0 %v2021
    %v2155 = vpop.xlane.xlu0 %2154
    %2156 = vadd.xlane.f32.xlu0 %v2022
    %v2157 = vpop.xlane.xlu0 %2156
    %2158 = vadd.xlane.f32.xlu0 %v2023
    %v2159 = vpop.xlane.xlu0 %2158
    %2160 = vadd.xlane.f32.xlu0 %v2024
    %v2161 = vpop.xlane.xlu0 %2160
    %2162 = vadd.xlane.f32.xlu0 %v2025
    %v2163 = vpop.xlane.xlu0 %2162
    %2164 = vadd.xlane.f32.xlu0 %v2026
    %v2165 = vpop.xlane.xlu0 %2164
    %2166 = vadd.xlane.f32.xlu0 %v2027
    %v2167 = vpop.xlane.xlu0 %2166
    %2168 = vadd.xlane.f32.xlu0 %v2028
    %v2169 = vpop.xlane.xlu0 %2168
    %2170 = vadd.xlane.f32.xlu0 %v2029
    %v2171 = vpop.xlane.xlu0 %2170
    %2172 = vadd.xlane.f32.xlu0 %v2030
    %v2173 = vpop.xlane.xlu0 %2172
    %2174 = vadd.xlane.f32.xlu0 %v2031
    %v2175 = vpop.xlane.xlu0 %2174
    %2176 = vadd.xlane.f32.xlu0 %v2032
    %v2177 = vpop.xlane.xlu0 %2176
    %2178 = vadd.xlane.f32.xlu0 %v2033
    %v2179 = vpop.xlane.xlu0 %2178
    %2180 = vadd.xlane.f32.xlu0 %v2034
    %v2181 = vpop.xlane.xlu0 %2180
    %2182 = vadd.xlane.f32.xlu0 %v2035
    %v2183 = vpop.xlane.xlu0 %2182
    %2184 = vadd.xlane.f32.xlu0 %v2036
    %v2185 = vpop.xlane.xlu0 %2184
    %2186 = vadd.xlane.f32.xlu0 %v2037
    %v2187 = vpop.xlane.xlu0 %2186
    %2188 = vadd.xlane.f32.xlu0 %v2038
    %v2189 = vpop.xlane.xlu0 %2188
    %2190 = vadd.xlane.f32.xlu0 %v2039
    %v2191 = vpop.xlane.xlu0 %2190
    %2192 = vadd.xlane.f32.xlu0 %v2040
    %v2193 = vpop.xlane.xlu0 %2192
    %2194 = vadd.xlane.f32.xlu0 %v2041
    %v2195 = vpop.xlane.xlu0 %2194
    %2196 = vadd.xlane.f32.xlu0 %v2042
    %v2197 = vpop.xlane.xlu0 %2196
    %2198 = vadd.xlane.f32.xlu0 %v2043
    %v2199 = vpop.xlane.xlu0 %2198
    %2200 = vadd.xlane.f32.xlu0 %v2044
    %v2201 = vpop.xlane.xlu0 %2200
    %2202 = vadd.xlane.f32.xlu0 %v2045
    %v2203 = vpop.xlane.xlu0 %2202
    %2204 = vadd.xlane.f32.xlu0 %v2046
    %v2205 = vpop.xlane.xlu0 %2204
    %2206 = vadd.xlane.f32.xlu0 %v2047
    %v2207 = vpop.xlane.xlu0 %2206
    %2208 = vadd.xlane.f32.xlu0 %v2048
    %v2209 = vpop.xlane.xlu0 %2208
    %2210 = vadd.xlane.f32.xlu0 %v2049
    %v2211 = vpop.xlane.xlu0 %2210
    %2212 = vadd.xlane.f32.xlu0 %v2050
    %v2213 = vpop.xlane.xlu0 %2212
    %2214 = vadd.xlane.f32.xlu0 %v2051
    %v2215 = vpop.xlane.xlu0 %2214
    %2216 = vadd.xlane.f32.xlu0 %v2052
    %v2217 = vpop.xlane.xlu0 %2216
    %2218 = vadd.xlane.f32.xlu0 %v2053
    %v2219 = vpop.xlane.xlu0 %2218
    %2220 = vadd.xlane.f32.xlu0 %v2054
    %v2221 = vpop.xlane.xlu0 %2220
    %2222 = vadd.xlane.f32.xlu0 %v2055
    %v2223 = vpop.xlane.xlu0 %2222
    %2224 = vadd.xlane.f32.xlu0 %v2056
    %v2225 = vpop.xlane.xlu0 %2224
    %2226 = vadd.xlane.f32.xlu0 %v2057
    %v2227 = vpop.xlane.xlu0 %2226
    %2228 = vadd.xlane.f32.xlu0 %v2058
    %v2229 = vpop.xlane.xlu0 %2228
    %2230 = vadd.xlane.f32.xlu0 %v2059
    %v2231 = vpop.xlane.xlu0 %2230
    %2232 = vadd.xlane.f32.xlu0 %v2060
    %v2233 = vpop.xlane.xlu0 %2232
    %2234 = vadd.xlane.f32.xlu0 %v2061
    %v2235 = vpop.xlane.xlu0 %2234
    %2236 = vadd.xlane.f32.xlu0 %v2062
    %v2237 = vpop.xlane.xlu0 %2236
    %2238 = vadd.xlane.f32.xlu0 %v2063
    %v2239 = vpop.xlane.xlu0 %2238
    %2240 = vadd.xlane.f32.xlu0 %v2064
    %v2241 = vpop.xlane.xlu0 %2240
    %2242 = vadd.xlane.f32.xlu0 %v2065
    %v2243 = vpop.xlane.xlu0 %2242
    %2244 = vadd.xlane.f32.xlu0 %v2066
    %v2245 = vpop.xlane.xlu0 %2244
    %2246 = vadd.xlane.f32.xlu0 %v2067
    %v2247 = vpop.xlane.xlu0 %2246
    %2248 = vadd.xlane.f32.xlu0 %v2068
    %v2249 = vpop.xlane.xlu0 %2248
    %2250 = vadd.xlane.f32.xlu0 %v2069
    %v2251 = vpop.xlane.xlu0 %2250
    %2252 = vadd.xlane.f32.xlu0 %v2070
    %v2253 = vpop.xlane.xlu0 %2252
    %2254 = vadd.xlane.f32.xlu0 %v2071
    %v2255 = vpop.xlane.xlu0 %2254
    %2256 = vadd.xlane.f32.xlu0 %v2072
    %v2257 = vpop.xlane.xlu0 %2256
    %2258 = vadd.xlane.f32.xlu0 %v2073
    %v2259 = vpop.xlane.xlu0 %2258
    %2260 = vadd.xlane.f32.xlu0 %v2074
    %v2261 = vpop.xlane.xlu0 %2260
    %2262 = vadd.xlane.f32.xlu0 %v2075
    %v2263 = vpop.xlane.xlu0 %2262
    %2264 = vadd.xlane.f32.xlu0 %v2076
    %v2265 = vpop.xlane.xlu0 %2264
    %2266 = vadd.xlane.f32.xlu0 %v2077
    %v2267 = vpop.xlane.xlu0 %2266
    %2268 = vadd.xlane.f32.xlu0 %v2078
    %v2269 = vpop.xlane.xlu0 %2268
    %2270 = vadd.xlane.f32.xlu0 %v2079
    %v2271 = vpop.xlane.xlu0 %2270
    %2272 = vadd.xlane.f32.xlu0 %v2080
    %v2273 = vpop.xlane.xlu0 %2272
    %2274 = vadd.xlane.f32.xlu0 %v2081
    %v2275 = vpop.xlane.xlu0 %2274
    %2276 = vadd.xlane.f32.xlu0 %v2082
    %v2277 = vpop.xlane.xlu0 %2276
    %2278 = vadd.xlane.f32.xlu0 %v2083
    %v2279 = vpop.xlane.xlu0 %2278
    %2280 = vadd.xlane.f32.xlu0 %v2084
    %v2281 = vpop.xlane.xlu0 %2280
    %2282 = vadd.xlane.f32.xlu0 %v2085
    %v2283 = vpop.xlane.xlu0 %2282
    %2284 = vadd.xlane.f32.xlu0 %v2086
    %v2285 = vpop.xlane.xlu0 %2284
    %2286 = vadd.xlane.f32.xlu0 %v2087
    %v2287 = vpop.xlane.xlu0 %2286
    %2288 = vadd.xlane.f32.xlu0 %v2088
    %v2289 = vpop.xlane.xlu0 %2288
    %2290 = vadd.xlane.f32.xlu0 %v2089
    %v2291 = vpop.xlane.xlu0 %2290
    %2292 = vadd.xlane.f32.xlu0 %v2090
    %v2293 = vpop.xlane.xlu0 %2292
    %2294 = vadd.xlane.f32.xlu0 %v2091
    %v2295 = vpop.xlane.xlu0 %2294
    %2296 = vadd.xlane.f32.xlu0 %v2092
    %v2297 = vpop.xlane.xlu0 %2296
    %2298 = vadd.xlane.f32.xlu0 %v2093
    %v2299 = vpop.xlane.xlu0 %2298
    %2300 = vadd.xlane.f32.xlu0 %v2094
    %v2301 = vpop.xlane.xlu0 %2300
    %2302 = vadd.xlane.f32.xlu0 %v2095
    %v2303 = vpop.xlane.xlu0 %2302
    %2304 = vadd.xlane.f32.xlu0 %v2096
    %v2305 = vpop.xlane.xlu0 %2304
    %2306 = vadd.xlane.f32.xlu0 %v2097
    %v2307 = vpop.xlane.xlu0 %2306
    %2308 = vadd.xlane.f32.xlu0 %v2098
    %v2309 = vpop.xlane.xlu0 %2308
    %2310 = vadd.xlane.f32.xlu0 %v2099
    %v2311 = vpop.xlane.xlu0 %2310
    %2312 = vadd.xlane.f32.xlu0 %v2100
    %v2313 = vpop.xlane.xlu0 %2312
    %2314 = vadd.xlane.f32.xlu0 %v2101
    %v2315 = vpop.xlane.xlu0 %2314
    %2316 = vadd.xlane.f32.xlu0 %v2102
    %v2317 = vpop.xlane.xlu0 %2316
    %2318 = vadd.xlane.f32.xlu0 %v2103
    %v2319 = vpop.xlane.xlu0 %2318
    %2320 = vadd.xlane.f32.xlu0 %v2104
    %v2321 = vpop.xlane.xlu0 %2320
    %2322 = vadd.xlane.f32.xlu0 %v2105
    %v2323 = vpop.xlane.xlu0 %2322
    %2324 = vadd.xlane.f32.xlu0 %v2106
    %v2325 = vpop.xlane.xlu0 %2324
    %2326 = vadd.xlane.f32.xlu0 %v2107
    %v2327 = vpop.xlane.xlu0 %2326
    %2328 = vadd.xlane.f32.xlu0 %v2108
    %v2329 = vpop.xlane.xlu0 %2328
    %2330 = vadd.xlane.f32.xlu0 %v2109
    %v2331 = vpop.xlane.xlu0 %2330
    %2332 = vadd.xlane.f32.xlu0 %v2110
    %v2333 = vpop.xlane.xlu0 %2332
    %2334 = vadd.xlane.f32.xlu0 %v2111
    %v2335 = vpop.xlane.xlu0 %2334
    %2336 = vadd.xlane.f32.xlu0 %v2112
    %v2337 = vpop.xlane.xlu0 %2336
    %2338 = vadd.xlane.f32.xlu0 %v2113
    %v2339 = vpop.xlane.xlu0 %2338
    %2340 = vadd.xlane.f32.xlu0 %v2114
    %v2341 = vpop.xlane.xlu0 %2340
    %2342 = vadd.xlane.f32.xlu0 %v2115
    %v2343 = vpop.xlane.xlu0 %2342
    %2344 = vadd.xlane.f32.xlu0 %v2116
    %v2345 = vpop.xlane.xlu0 %2344
    %2346 = vadd.xlane.f32.xlu0 %v2117
    %v2347 = vpop.xlane.xlu0 %2346
    %2348 = vadd.xlane.f32.xlu0 %v2118
    %v2349 = vpop.xlane.xlu0 %2348
    %2350 = vadd.xlane.f32.xlu0 %v2119
    %v2351 = vpop.xlane.xlu0 %2350
    %2352 = vadd.xlane.f32.xlu0 %v2120
    %v2353 = vpop.xlane.xlu0 %2352
    %2354 = vadd.xlane.f32.xlu0 %v2121
    %v2355 = vpop.xlane.xlu0 %2354
    %2356 = vadd.xlane.f32.xlu0 %v2122
    %v2357 = vpop.xlane.xlu0 %2356
    %2358 = vadd.xlane.f32.xlu0 %v2123
    %v2359 = vpop.xlane.xlu0 %2358
    %2360 = vadd.xlane.f32.xlu0 %v2124
    %v2361 = vpop.xlane.xlu0 %2360
    %2362 = vadd.xlane.f32.xlu0 %v2125
    %v2363 = vpop.xlane.xlu0 %2362
    %2364 = vadd.xlane.f32.xlu0 %v2126
    %v2365 = vpop.xlane.xlu0 %2364
    %2366 = vadd.xlane.f32.xlu0 %v2127
    %v2367 = vpop.xlane.xlu0 %2366
    %2368 = vadd.xlane.f32.xlu0 %v2128
    %v2369 = vpop.xlane.xlu0 %2368
    %2370 = vadd.xlane.f32.xlu0 %v2129
    %v2371 = vpop.xlane.xlu0 %2370
    %2372 = vadd.xlane.f32.xlu0 %v2130
    %v2373 = vpop.xlane.xlu0 %2372
    %2374 = vadd.xlane.f32.xlu0 %v2131
    %v2375 = vpop.xlane.xlu0 %2374
    %2376 = vadd.xlane.f32.xlu0 %v2132
    %v2377 = vpop.xlane.xlu0 %2376
    %2378 = vadd.xlane.f32.xlu0 %v2133
    %v2379 = vpop.xlane.xlu0 %2378
    %2380 = vadd.xlane.f32.xlu0 %v2134
    %v2381 = vpop.xlane.xlu0 %2380
    %2382 = vadd.xlane.f32.xlu0 %v2135
    %v2383 = vpop.xlane.xlu0 %2382
    %2384 = vadd.xlane.f32.xlu0 %v2136
    %v2385 = vpop.xlane.xlu0 %2384
    %2386 = vadd.xlane.f32.xlu0 %v2137
    %v2387 = vpop.xlane.xlu0 %2386
    %2388 = vadd.xlane.f32.xlu0 %v2138
    %v2389 = vpop.xlane.xlu0 %2388
    %2390 = vadd.xlane.f32.xlu0 %v2139
    %v2391 = vpop.xlane.xlu0 %2390
    %2392 = vadd.xlane.f32.xlu0 %v2140
    %v2393 = vpop.xlane.xlu0 %2392
    %2394 = vadd.xlane.f32.xlu0 %v2141
    %v2395 = vpop.xlane.xlu0 %2394
    %2396 = vadd.xlane.f32.xlu0 %v2142
    %v2397 = vpop.xlane.xlu0 %2396
    %2398 = vadd.xlane.f32.xlu0 %v2143
    %v2399 = vpop.xlane.xlu0 %2398
    %v2400 = vsel %vm1747, 1, 0
    %vm2401 = vcmp.eq.s32.totalorder %v2400, 1
    %v2530 = vlaneseq
    %v2531 = vshrl.u32 %v2530, 7
    %v2532 = vsub.s32 %v1746, %v2531
    %v2533 = vrot.slane %v2145, %v2532
    %v2534 = vadd.s32 %v1746, 4294967288
    %v2535 = vlaneseq
    %v2536 = vshrl.u32 %v2535, 7
    %v2537 = vsub.s32 %v2534, %v2536
    %v2538 = vrot.slane %v2147, %v2537
    %vm2539 = vcmask 130112
    %v2540 = vsel %vm2539, %v2538, %v2533
    %v2541 = vadd.s32 %v1746, 4294967280
    %v2542 = vlaneseq
    %v2543 = vshrl.u32 %v2542, 7
    %v2544 = vsub.s32 %v2541, %v2543
    %v2545 = vrot.slane %v2149, %v2544
    %vm2546 = vcmask 195712
    %v2547 = vsel %vm2546, %v2545, %v2540
    %v2548 = vadd.s32 %v1746, 4294967272
    %v2549 = vlaneseq
    %v2550 = vshrl.u32 %v2549, 7
    %v2551 = vsub.s32 %v2548, %v2550
    %v2552 = vrot.slane %v2151, %v2551
    %vm2553 = vcmask 261312
    %v2554 = vsel %vm2553, %v2552, %v2547
    %v2555 = vadd.s32 %v1746, 4294967264
    %v2556 = vlaneseq
    %v2557 = vshrl.u32 %v2556, 7
    %v2558 = vsub.s32 %v2555, %v2557
    %v2559 = vrot.slane %v2153, %v2558
    %vm2560 = vcmask 326912
    %v2561 = vsel %vm2560, %v2559, %v2554
    %v2562 = vadd.s32 %v1746, 4294967256
    %v2563 = vlaneseq
    %v2564 = vshrl.u32 %v2563, 7
    %v2565 = vsub.s32 %v2562, %v2564
    %v2566 = vrot.slane %v2155, %v2565
    %vm2567 = vcmask 392512
    %v2568 = vsel %vm2567, %v2566, %v2561
    %v2569 = vadd.s32 %v1746, 4294967248
    %v2570 = vlaneseq
    %v2571 = vshrl.u32 %v2570, 7
    %v2572 = vsub.s32 %v2569, %v2571
    %v2573 = vrot.slane %v2157, %v2572
    %vm2574 = vcmask 458112
    %v2575 = vsel %vm2574, %v2573, %v2568
    %v2576 = vadd.s32 %v1746, 4294967240
    %v2577 = vlaneseq
    %v2578 = vshrl.u32 %v2577, 7
    %v2579 = vsub.s32 %v2576, %v2578
    %v2580 = vrot.slane %v2159, %v2579
    %vm2581 = vcmask 523712
    %v2582 = vsel %vm2581, %v2580, %v2575
    %v2583 = vadd.s32 %v1746, 4294967232
    %v2584 = vlaneseq
    %v2585 = vshrl.u32 %v2584, 7
    %v2586 = vsub.s32 %v2583, %v2585
    %v2587 = vrot.slane %v2161, %v2586
    %vm2588 = vcmask 589312
    %v2589 = vsel %vm2588, %v2587, %v2582
    %v2590 = vadd.s32 %v1746, 4294967224
    %v2591 = vlaneseq
    %v2592 = vshrl.u32 %v2591, 7
    %v2593 = vsub.s32 %v2590, %v2592
    %v2594 = vrot.slane %v2163, %v2593
    %vm2595 = vcmask 654912
    %v2596 = vsel %vm2595, %v2594, %v2589
    %v2597 = vadd.s32 %v1746, 4294967216
    %v2598 = vlaneseq
    %v2599 = vshrl.u32 %v2598, 7
    %v2600 = vsub.s32 %v2597, %v2599
    %v2601 = vrot.slane %v2165, %v2600
    %vm2602 = vcmask 720512
    %v2603 = vsel %vm2602, %v2601, %v2596
    %v2604 = vadd.s32 %v1746, 4294967208
    %v2605 = vlaneseq
    %v2606 = vshrl.u32 %v2605, 7
    %v2607 = vsub.s32 %v2604, %v2606
    %v2608 = vrot.slane %v2167, %v2607
    %vm2609 = vcmask 786112
    %v2610 = vsel %vm2609, %v2608, %v2603
    %v2611 = vadd.s32 %v1746, 4294967200
    %v2612 = vlaneseq
    %v2613 = vshrl.u32 %v2612, 7
    %v2614 = vsub.s32 %v2611, %v2613
    %v2615 = vrot.slane %v2169, %v2614
    %vm2616 = vcmask 851712
    %v2617 = vsel %vm2616, %v2615, %v2610
    %v2618 = vadd.s32 %v1746, 4294967192
    %v2619 = vlaneseq
    %v2620 = vshrl.u32 %v2619, 7
    %v2621 = vsub.s32 %v2618, %v2620
    %v2622 = vrot.slane %v2171, %v2621
    %vm2623 = vcmask 917312
    %v2624 = vsel %vm2623, %v2622, %v2617
    %v2625 = vadd.s32 %v1746, 4294967184
    %v2626 = vlaneseq
    %v2627 = vshrl.u32 %v2626, 7
    %v2628 = vsub.s32 %v2625, %v2627
    %v2629 = vrot.slane %v2173, %v2628
    %vm2630 = vcmask 982912
    %v2631 = vsel %vm2630, %v2629, %v2624
    %v2632 = vadd.s32 %v1746, 4294967176
    %v2633 = vlaneseq
    %v2634 = vshrl.u32 %v2633, 7
    %v2635 = vsub.s32 %v2632, %v2634
    %v2636 = vrot.slane %v2175, %v2635
    %vm2637 = vcmask 1048512
    %v2638 = vsel %vm2637, %v2636, %v2631
    %v2639 = vlaneseq
    %v2640 = vshrl.u32 %v2639, 7
    %v2641 = vsub.s32 %v1746, %v2640
    %v2642 = vrot.slane %v2177, %v2641
    %v2643 = vlaneseq
    %v2644 = vshrl.u32 %v2643, 7
    %v2645 = vsub.s32 %v2534, %v2644
    %v2646 = vrot.slane %v2179, %v2645
    %v2647 = vsel %vm2539, %v2646, %v2642
    %v2648 = vlaneseq
    %v2649 = vshrl.u32 %v2648, 7
    %v2650 = vsub.s32 %v2541, %v2649
    %v2651 = vrot.slane %v2181, %v2650
    %v2652 = vsel %vm2546, %v2651, %v2647
    %v2653 = vlaneseq
    %v2654 = vshrl.u32 %v2653, 7
    %v2655 = vsub.s32 %v2548, %v2654
    %v2656 = vrot.slane %v2183, %v2655
    %v2657 = vsel %vm2553, %v2656, %v2652
    %v2658 = vlaneseq
    %v2659 = vshrl.u32 %v2658, 7
    %v2660 = vsub.s32 %v2555, %v2659
    %v2661 = vrot.slane %v2185, %v2660
    %v2662 = vsel %vm2560, %v2661, %v2657
    %v2663 = vlaneseq
    %v2664 = vshrl.u32 %v2663, 7
    %v2665 = vsub.s32 %v2562, %v2664
    %v2666 = vrot.slane %v2187, %v2665
    %v2667 = vsel %vm2567, %v2666, %v2662
    %v2668 = vlaneseq
    %v2669 = vshrl.u32 %v2668, 7
    %v2670 = vsub.s32 %v2569, %v2669
    %v2671 = vrot.slane %v2189, %v2670
    %v2672 = vsel %vm2574, %v2671, %v2667
    %v2673 = vlaneseq
    %v2674 = vshrl.u32 %v2673, 7
    %v2675 = vsub.s32 %v2576, %v2674
    %v2676 = vrot.slane %v2191, %v2675
    %v2677 = vsel %vm2581, %v2676, %v2672
    %v2678 = vlaneseq
    %v2679 = vshrl.u32 %v2678, 7
    %v2680 = vsub.s32 %v2583, %v2679
    %v2681 = vrot.slane %v2193, %v2680
    %v2682 = vsel %vm2588, %v2681, %v2677
    %v2683 = vlaneseq
    %v2684 = vshrl.u32 %v2683, 7
    %v2685 = vsub.s32 %v2590, %v2684
    %v2686 = vrot.slane %v2195, %v2685
    %v2687 = vsel %vm2595, %v2686, %v2682
    %v2688 = vlaneseq
    %v2689 = vshrl.u32 %v2688, 7
    %v2690 = vsub.s32 %v2597, %v2689
    %v2691 = vrot.slane %v2197, %v2690
    %v2692 = vsel %vm2602, %v2691, %v2687
    %v2693 = vlaneseq
    %v2694 = vshrl.u32 %v2693, 7
    %v2695 = vsub.s32 %v2604, %v2694
    %v2696 = vrot.slane %v2199, %v2695
    %v2697 = vsel %vm2609, %v2696, %v2692
    %v2698 = vlaneseq
    %v2699 = vshrl.u32 %v2698, 7
    %v2700 = vsub.s32 %v2611, %v2699
    %v2701 = vrot.slane %v2201, %v2700
    %v2702 = vsel %vm2616, %v2701, %v2697
    %v2703 = vlaneseq
    %v2704 = vshrl.u32 %v2703, 7
    %v2705 = vsub.s32 %v2618, %v2704
    %v2706 = vrot.slane %v2203, %v2705
    %v2707 = vsel %vm2623, %v2706, %v2702
    %v2708 = vlaneseq
    %v2709 = vshrl.u32 %v2708, 7
    %v2710 = vsub.s32 %v2625, %v2709
    %v2711 = vrot.slane %v2205, %v2710
    %v2712 = vsel %vm2630, %v2711, %v2707
    %v2713 = vlaneseq
    %v2714 = vshrl.u32 %v2713, 7
    %v2715 = vsub.s32 %v2632, %v2714
    %v2716 = vrot.slane %v2207, %v2715
    %v2717 = vsel %vm2637, %v2716, %v2712
    %v2718 = vlaneseq
    %v2719 = vshrl.u32 %v2718, 7
    %v2720 = vsub.s32 %v1746, %v2719
    %v2721 = vrot.slane %v2209, %v2720
    %v2722 = vlaneseq
    %v2723 = vshrl.u32 %v2722, 7
    %v2724 = vsub.s32 %v2534, %v2723
    %v2725 = vrot.slane %v2211, %v2724
    %v2726 = vsel %vm2539, %v2725, %v2721
    %v2727 = vlaneseq
    %v2728 = vshrl.u32 %v2727, 7
    %v2729 = vsub.s32 %v2541, %v2728
    %v2730 = vrot.slane %v2213, %v2729
    %v2731 = vsel %vm2546, %v2730, %v2726
    %v2732 = vlaneseq
    %v2733 = vshrl.u32 %v2732, 7
    %v2734 = vsub.s32 %v2548, %v2733
    %v2735 = vrot.slane %v2215, %v2734
    %v2736 = vsel %vm2553, %v2735, %v2731
    %v2737 = vlaneseq
    %v2738 = vshrl.u32 %v2737, 7
    %v2739 = vsub.s32 %v2555, %v2738
    %v2740 = vrot.slane %v2217, %v2739
    %v2741 = vsel %vm2560, %v2740, %v2736
    %v2742 = vlaneseq
    %v2743 = vshrl.u32 %v2742, 7
    %v2744 = vsub.s32 %v2562, %v2743
    %v2745 = vrot.slane %v2219, %v2744
    %v2746 = vsel %vm2567, %v2745, %v2741
    %v2747 = vlaneseq
    %v2748 = vshrl.u32 %v2747, 7
    %v2749 = vsub.s32 %v2569, %v2748
    %v2750 = vrot.slane %v2221, %v2749
    %v2751 = vsel %vm2574, %v2750, %v2746
    %v2752 = vlaneseq
    %v2753 = vshrl.u32 %v2752, 7
    %v2754 = vsub.s32 %v2576, %v2753
    %v2755 = vrot.slane %v2223, %v2754
    %v2756 = vsel %vm2581, %v2755, %v2751
    %v2757 = vlaneseq
    %v2758 = vshrl.u32 %v2757, 7
    %v2759 = vsub.s32 %v2583, %v2758
    %v2760 = vrot.slane %v2225, %v2759
    %v2761 = vsel %vm2588, %v2760, %v2756
    %v2762 = vlaneseq
    %v2763 = vshrl.u32 %v2762, 7
    %v2764 = vsub.s32 %v2590, %v2763
    %v2765 = vrot.slane %v2227, %v2764
    %v2766 = vsel %vm2595, %v2765, %v2761
    %v2767 = vlaneseq
    %v2768 = vshrl.u32 %v2767, 7
    %v2769 = vsub.s32 %v2597, %v2768
    %v2770 = vrot.slane %v2229, %v2769
    %v2771 = vsel %vm2602, %v2770, %v2766
    %v2772 = vlaneseq
    %v2773 = vshrl.u32 %v2772, 7
    %v2774 = vsub.s32 %v2604, %v2773
    %v2775 = vrot.slane %v2231, %v2774
    %v2776 = vsel %vm2609, %v2775, %v2771
    %v2777 = vlaneseq
    %v2778 = vshrl.u32 %v2777, 7
    %v2779 = vsub.s32 %v2611, %v2778
    %v2780 = vrot.slane %v2233, %v2779
    %v2781 = vsel %vm2616, %v2780, %v2776
    %v2782 = vlaneseq
    %v2783 = vshrl.u32 %v2782, 7
    %v2784 = vsub.s32 %v2618, %v2783
    %v2785 = vrot.slane %v2235, %v2784
    %v2786 = vsel %vm2623, %v2785, %v2781
    %v2787 = vlaneseq
    %v2788 = vshrl.u32 %v2787, 7
    %v2789 = vsub.s32 %v2625, %v2788
    %v2790 = vrot.slane %v2237, %v2789
    %v2791 = vsel %vm2630, %v2790, %v2786
    %v2792 = vlaneseq
    %v2793 = vshrl.u32 %v2792, 7
    %v2794 = vsub.s32 %v2632, %v2793
    %v2795 = vrot.slane %v2239, %v2794
    %v2796 = vsel %vm2637, %v2795, %v2791
    %v2797 = vlaneseq
    %v2798 = vshrl.u32 %v2797, 7
    %v2799 = vsub.s32 %v1746, %v2798
    %v2800 = vrot.slane %v2241, %v2799
    %v2801 = vlaneseq
    %v2802 = vshrl.u32 %v2801, 7
    %v2803 = vsub.s32 %v2534, %v2802
    %v2804 = vrot.slane %v2243, %v2803
    %v2805 = vsel %vm2539, %v2804, %v2800
    %v2806 = vlaneseq
    %v2807 = vshrl.u32 %v2806, 7
    %v2808 = vsub.s32 %v2541, %v2807
    %v2809 = vrot.slane %v2245, %v2808
    %v2810 = vsel %vm2546, %v2809, %v2805
    %v2811 = vlaneseq
    %v2812 = vshrl.u32 %v2811, 7
    %v2813 = vsub.s32 %v2548, %v2812
    %v2814 = vrot.slane %v2247, %v2813
    %v2815 = vsel %vm2553, %v2814, %v2810
    %v2816 = vlaneseq
    %v2817 = vshrl.u32 %v2816, 7
    %v2818 = vsub.s32 %v2555, %v2817
    %v2819 = vrot.slane %v2249, %v2818
    %v2820 = vsel %vm2560, %v2819, %v2815
    %v2821 = vlaneseq
    %v2822 = vshrl.u32 %v2821, 7
    %v2823 = vsub.s32 %v2562, %v2822
    %v2824 = vrot.slane %v2251, %v2823
    %v2825 = vsel %vm2567, %v2824, %v2820
    %v2826 = vlaneseq
    %v2827 = vshrl.u32 %v2826, 7
    %v2828 = vsub.s32 %v2569, %v2827
    %v2829 = vrot.slane %v2253, %v2828
    %v2830 = vsel %vm2574, %v2829, %v2825
    %v2831 = vlaneseq
    %v2832 = vshrl.u32 %v2831, 7
    %v2833 = vsub.s32 %v2576, %v2832
    %v2834 = vrot.slane %v2255, %v2833
    %v2835 = vsel %vm2581, %v2834, %v2830
    %v2836 = vlaneseq
    %v2837 = vshrl.u32 %v2836, 7
    %v2838 = vsub.s32 %v2583, %v2837
    %v2839 = vrot.slane %v2257, %v2838
    %v2840 = vsel %vm2588, %v2839, %v2835
    %v2841 = vlaneseq
    %v2842 = vshrl.u32 %v2841, 7
    %v2843 = vsub.s32 %v2590, %v2842
    %v2844 = vrot.slane %v2259, %v2843
    %v2845 = vsel %vm2595, %v2844, %v2840
    %v2846 = vlaneseq
    %v2847 = vshrl.u32 %v2846, 7
    %v2848 = vsub.s32 %v2597, %v2847
    %v2849 = vrot.slane %v2261, %v2848
    %v2850 = vsel %vm2602, %v2849, %v2845
    %v2851 = vlaneseq
    %v2852 = vshrl.u32 %v2851, 7
    %v2853 = vsub.s32 %v2604, %v2852
    %v2854 = vrot.slane %v2263, %v2853
    %v2855 = vsel %vm2609, %v2854, %v2850
    %v2856 = vlaneseq
    %v2857 = vshrl.u32 %v2856, 7
    %v2858 = vsub.s32 %v2611, %v2857
    %v2859 = vrot.slane %v2265, %v2858
    %v2860 = vsel %vm2616, %v2859, %v2855
    %v2861 = vlaneseq
    %v2862 = vshrl.u32 %v2861, 7
    %v2863 = vsub.s32 %v2618, %v2862
    %v2864 = vrot.slane %v2267, %v2863
    %v2865 = vsel %vm2623, %v2864, %v2860
    %v2866 = vlaneseq
    %v2867 = vshrl.u32 %v2866, 7
    %v2868 = vsub.s32 %v2625, %v2867
    %v2869 = vrot.slane %v2269, %v2868
    %v2870 = vsel %vm2630, %v2869, %v2865
    %v2871 = vlaneseq
    %v2872 = vshrl.u32 %v2871, 7
    %v2873 = vsub.s32 %v2632, %v2872
    %v2874 = vrot.slane %v2271, %v2873
    %v2875 = vsel %vm2637, %v2874, %v2870
    %v2876 = vlaneseq
    %v2877 = vshrl.u32 %v2876, 7
    %v2878 = vsub.s32 %v1746, %v2877
    %v2879 = vrot.slane %v2273, %v2878
    %v2880 = vlaneseq
    %v2881 = vshrl.u32 %v2880, 7
    %v2882 = vsub.s32 %v2534, %v2881
    %v2883 = vrot.slane %v2275, %v2882
    %v2884 = vsel %vm2539, %v2883, %v2879
    %v2885 = vlaneseq
    %v2886 = vshrl.u32 %v2885, 7
    %v2887 = vsub.s32 %v2541, %v2886
    %v2888 = vrot.slane %v2277, %v2887
    %v2889 = vsel %vm2546, %v2888, %v2884
    %v2890 = vlaneseq
    %v2891 = vshrl.u32 %v2890, 7
    %v2892 = vsub.s32 %v2548, %v2891
    %v2893 = vrot.slane %v2279, %v2892
    %v2894 = vsel %vm2553, %v2893, %v2889
    %v2895 = vlaneseq
    %v2896 = vshrl.u32 %v2895, 7
    %v2897 = vsub.s32 %v2555, %v2896
    %v2898 = vrot.slane %v2281, %v2897
    %v2899 = vsel %vm2560, %v2898, %v2894
    %v2900 = vlaneseq
    %v2901 = vshrl.u32 %v2900, 7
    %v2902 = vsub.s32 %v2562, %v2901
    %v2903 = vrot.slane %v2283, %v2902
    %v2904 = vsel %vm2567, %v2903, %v2899
    %v2905 = vlaneseq
    %v2906 = vshrl.u32 %v2905, 7
    %v2907 = vsub.s32 %v2569, %v2906
    %v2908 = vrot.slane %v2285, %v2907
    %v2909 = vsel %vm2574, %v2908, %v2904
    %v2910 = vlaneseq
    %v2911 = vshrl.u32 %v2910, 7
    %v2912 = vsub.s32 %v2576, %v2911
    %v2913 = vrot.slane %v2287, %v2912
    %v2914 = vsel %vm2581, %v2913, %v2909
    %v2915 = vlaneseq
    %v2916 = vshrl.u32 %v2915, 7
    %v2917 = vsub.s32 %v2583, %v2916
    %v2918 = vrot.slane %v2289, %v2917
    %v2919 = vsel %vm2588, %v2918, %v2914
    %v2920 = vlaneseq
    %v2921 = vshrl.u32 %v2920, 7
    %v2922 = vsub.s32 %v2590, %v2921
    %v2923 = vrot.slane %v2291, %v2922
    %v2924 = vsel %vm2595, %v2923, %v2919
    %v2925 = vlaneseq
    %v2926 = vshrl.u32 %v2925, 7
    %v2927 = vsub.s32 %v2597, %v2926
    %v2928 = vrot.slane %v2293, %v2927
    %v2929 = vsel %vm2602, %v2928, %v2924
    %v2930 = vlaneseq
    %v2931 = vshrl.u32 %v2930, 7
    %v2932 = vsub.s32 %v2604, %v2931
    %v2933 = vrot.slane %v2295, %v2932
    %v2934 = vsel %vm2609, %v2933, %v2929
    %v2935 = vlaneseq
    %v2936 = vshrl.u32 %v2935, 7
    %v2937 = vsub.s32 %v2611, %v2936
    %v2938 = vrot.slane %v2297, %v2937
    %v2939 = vsel %vm2616, %v2938, %v2934
    %v2940 = vlaneseq
    %v2941 = vshrl.u32 %v2940, 7
    %v2942 = vsub.s32 %v2618, %v2941
    %v2943 = vrot.slane %v2299, %v2942
    %v2944 = vsel %vm2623, %v2943, %v2939
    %v2945 = vlaneseq
    %v2946 = vshrl.u32 %v2945, 7
    %v2947 = vsub.s32 %v2625, %v2946
    %v2948 = vrot.slane %v2301, %v2947
    %v2949 = vsel %vm2630, %v2948, %v2944
    %v2950 = vlaneseq
    %v2951 = vshrl.u32 %v2950, 7
    %v2952 = vsub.s32 %v2632, %v2951
    %v2953 = vrot.slane %v2303, %v2952
    %v2954 = vsel %vm2637, %v2953, %v2949
    %v2955 = vlaneseq
    %v2956 = vshrl.u32 %v2955, 7
    %v2957 = vsub.s32 %v1746, %v2956
    %v2958 = vrot.slane %v2305, %v2957
    %v2959 = vlaneseq
    %v2960 = vshrl.u32 %v2959, 7
    %v2961 = vsub.s32 %v2534, %v2960
    %v2962 = vrot.slane %v2307, %v2961
    %v2963 = vsel %vm2539, %v2962, %v2958
    %v2964 = vlaneseq
    %v2965 = vshrl.u32 %v2964, 7
    %v2966 = vsub.s32 %v2541, %v2965
    %v2967 = vrot.slane %v2309, %v2966
    %v2968 = vsel %vm2546, %v2967, %v2963
    %v2969 = vlaneseq
    %v2970 = vshrl.u32 %v2969, 7
    %v2971 = vsub.s32 %v2548, %v2970
    %v2972 = vrot.slane %v2311, %v2971
    %v2973 = vsel %vm2553, %v2972, %v2968
    %v2974 = vlaneseq
    %v2975 = vshrl.u32 %v2974, 7
    %v2976 = vsub.s32 %v2555, %v2975
    %v2977 = vrot.slane %v2313, %v2976
    %v2978 = vsel %vm2560, %v2977, %v2973
    %v2979 = vlaneseq
    %v2980 = vshrl.u32 %v2979, 7
    %v2981 = vsub.s32 %v2562, %v2980
    %v2982 = vrot.slane %v2315, %v2981
    %v2983 = vsel %vm2567, %v2982, %v2978
    %v2984 = vlaneseq
    %v2985 = vshrl.u32 %v2984, 7
    %v2986 = vsub.s32 %v2569, %v2985
    %v2987 = vrot.slane %v2317, %v2986
    %v2988 = vsel %vm2574, %v2987, %v2983
    %v2989 = vlaneseq
    %v2990 = vshrl.u32 %v2989, 7
    %v2991 = vsub.s32 %v2576, %v2990
    %v2992 = vrot.slane %v2319, %v2991
    %v2993 = vsel %vm2581, %v2992, %v2988
    %v2994 = vlaneseq
    %v2995 = vshrl.u32 %v2994, 7
    %v2996 = vsub.s32 %v2583, %v2995
    %v2997 = vrot.slane %v2321, %v2996
    %v2998 = vsel %vm2588, %v2997, %v2993
    %v2999 = vlaneseq
    %v3000 = vshrl.u32 %v2999, 7
    %v3001 = vsub.s32 %v2590, %v3000
    %v3002 = vrot.slane %v2323, %v3001
    %v3003 = vsel %vm2595, %v3002, %v2998
    %v3004 = vlaneseq
    %v3005 = vshrl.u32 %v3004, 7
    %v3006 = vsub.s32 %v2597, %v3005
    %v3007 = vrot.slane %v2325, %v3006
    %v3008 = vsel %vm2602, %v3007, %v3003
    %v3009 = vlaneseq
    %v3010 = vshrl.u32 %v3009, 7
    %v3011 = vsub.s32 %v2604, %v3010
    %v3012 = vrot.slane %v2327, %v3011
    %v3013 = vsel %vm2609, %v3012, %v3008
    %v3014 = vlaneseq
    %v3015 = vshrl.u32 %v3014, 7
    %v3016 = vsub.s32 %v2611, %v3015
    %v3017 = vrot.slane %v2329, %v3016
    %v3018 = vsel %vm2616, %v3017, %v3013
    %v3019 = vlaneseq
    %v3020 = vshrl.u32 %v3019, 7
    %v3021 = vsub.s32 %v2618, %v3020
    %v3022 = vrot.slane %v2331, %v3021
    %v3023 = vsel %vm2623, %v3022, %v3018
    %v3024 = vlaneseq
    %v3025 = vshrl.u32 %v3024, 7
    %v3026 = vsub.s32 %v2625, %v3025
    %v3027 = vrot.slane %v2333, %v3026
    %v3028 = vsel %vm2630, %v3027, %v3023
    %v3029 = vlaneseq
    %v3030 = vshrl.u32 %v3029, 7
    %v3031 = vsub.s32 %v2632, %v3030
    %v3032 = vrot.slane %v2335, %v3031
    %v3033 = vsel %vm2637, %v3032, %v3028
    %v3034 = vlaneseq
    %v3035 = vshrl.u32 %v3034, 7
    %v3036 = vsub.s32 %v1746, %v3035
    %v3037 = vrot.slane %v2337, %v3036
    %v3038 = vlaneseq
    %v3039 = vshrl.u32 %v3038, 7
    %v3040 = vsub.s32 %v2534, %v3039
    %v3041 = vrot.slane %v2339, %v3040
    %v3042 = vsel %vm2539, %v3041, %v3037
    %v3043 = vlaneseq
    %v3044 = vshrl.u32 %v3043, 7
    %v3045 = vsub.s32 %v2541, %v3044
    %v3046 = vrot.slane %v2341, %v3045
    %v3047 = vsel %vm2546, %v3046, %v3042
    %v3048 = vlaneseq
    %v3049 = vshrl.u32 %v3048, 7
    %v3050 = vsub.s32 %v2548, %v3049
    %v3051 = vrot.slane %v2343, %v3050
    %v3052 = vsel %vm2553, %v3051, %v3047
    %v3053 = vlaneseq
    %v3054 = vshrl.u32 %v3053, 7
    %v3055 = vsub.s32 %v2555, %v3054
    %v3056 = vrot.slane %v2345, %v3055
    %v3057 = vsel %vm2560, %v3056, %v3052
    %v3058 = vlaneseq
    %v3059 = vshrl.u32 %v3058, 7
    %v3060 = vsub.s32 %v2562, %v3059
    %v3061 = vrot.slane %v2347, %v3060
    %v3062 = vsel %vm2567, %v3061, %v3057
    %v3063 = vlaneseq
    %v3064 = vshrl.u32 %v3063, 7
    %v3065 = vsub.s32 %v2569, %v3064
    %v3066 = vrot.slane %v2349, %v3065
    %v3067 = vsel %vm2574, %v3066, %v3062
    %v3068 = vlaneseq
    %v3069 = vshrl.u32 %v3068, 7
    %v3070 = vsub.s32 %v2576, %v3069
    %v3071 = vrot.slane %v2351, %v3070
    %v3072 = vsel %vm2581, %v3071, %v3067
    %v3073 = vlaneseq
    %v3074 = vshrl.u32 %v3073, 7
    %v3075 = vsub.s32 %v2583, %v3074
    %v3076 = vrot.slane %v2353, %v3075
    %v3077 = vsel %vm2588, %v3076, %v3072
    %v3078 = vlaneseq
    %v3079 = vshrl.u32 %v3078, 7
    %v3080 = vsub.s32 %v2590, %v3079
    %v3081 = vrot.slane %v2355, %v3080
    %v3082 = vsel %vm2595, %v3081, %v3077
    %v3083 = vlaneseq
    %v3084 = vshrl.u32 %v3083, 7
    %v3085 = vsub.s32 %v2597, %v3084
    %v3086 = vrot.slane %v2357, %v3085
    %v3087 = vsel %vm2602, %v3086, %v3082
    %v3088 = vlaneseq
    %v3089 = vshrl.u32 %v3088, 7
    %v3090 = vsub.s32 %v2604, %v3089
    %v3091 = vrot.slane %v2359, %v3090
    %v3092 = vsel %vm2609, %v3091, %v3087
    %v3093 = vlaneseq
    %v3094 = vshrl.u32 %v3093, 7
    %v3095 = vsub.s32 %v2611, %v3094
    %v3096 = vrot.slane %v2361, %v3095
    %v3097 = vsel %vm2616, %v3096, %v3092
    %v3098 = vlaneseq
    %v3099 = vshrl.u32 %v3098, 7
    %v3100 = vsub.s32 %v2618, %v3099
    %v3101 = vrot.slane %v2363, %v3100
    %v3102 = vsel %vm2623, %v3101, %v3097
    %v3103 = vlaneseq
    %v3104 = vshrl.u32 %v3103, 7
    %v3105 = vsub.s32 %v2625, %v3104
    %v3106 = vrot.slane %v2365, %v3105
    %v3107 = vsel %vm2630, %v3106, %v3102
    %v3108 = vlaneseq
    %v3109 = vshrl.u32 %v3108, 7
    %v3110 = vsub.s32 %v2632, %v3109
    %v3111 = vrot.slane %v2367, %v3110
    %v3112 = vsel %vm2637, %v3111, %v3107
    %v3113 = vlaneseq
    %v3114 = vshrl.u32 %v3113, 7
    %v3115 = vsub.s32 %v1746, %v3114
    %v3116 = vrot.slane %v2369, %v3115
    %v3117 = vlaneseq
    %v3118 = vshrl.u32 %v3117, 7
    %v3119 = vsub.s32 %v2534, %v3118
    %v3120 = vrot.slane %v2371, %v3119
    %v3121 = vsel %vm2539, %v3120, %v3116
    %v3122 = vlaneseq
    %v3123 = vshrl.u32 %v3122, 7
    %v3124 = vsub.s32 %v2541, %v3123
    %v3125 = vrot.slane %v2373, %v3124
    %v3126 = vsel %vm2546, %v3125, %v3121
    %v3127 = vlaneseq
    %v3128 = vshrl.u32 %v3127, 7
    %v3129 = vsub.s32 %v2548, %v3128
    %v3130 = vrot.slane %v2375, %v3129
    %v3131 = vsel %vm2553, %v3130, %v3126
    %v3132 = vlaneseq
    %v3133 = vshrl.u32 %v3132, 7
    %v3134 = vsub.s32 %v2555, %v3133
    %v3135 = vrot.slane %v2377, %v3134
    %v3136 = vsel %vm2560, %v3135, %v3131
    %v3137 = vlaneseq
    %v3138 = vshrl.u32 %v3137, 7
    %v3139 = vsub.s32 %v2562, %v3138
    %v3140 = vrot.slane %v2379, %v3139
    %v3141 = vsel %vm2567, %v3140, %v3136
    %v3142 = vlaneseq
    %v3143 = vshrl.u32 %v3142, 7
    %v3144 = vsub.s32 %v2569, %v3143
    %v3145 = vrot.slane %v2381, %v3144
    %v3146 = vsel %vm2574, %v3145, %v3141
    %v3147 = vlaneseq
    %v3148 = vshrl.u32 %v3147, 7
    %v3149 = vsub.s32 %v2576, %v3148
    %v3150 = vrot.slane %v2383, %v3149
    %v3151 = vsel %vm2581, %v3150, %v3146
    %v3152 = vlaneseq
    %v3153 = vshrl.u32 %v3152, 7
    %v3154 = vsub.s32 %v2583, %v3153
    %v3155 = vrot.slane %v2385, %v3154
    %v3156 = vsel %vm2588, %v3155, %v3151
    %v3157 = vlaneseq
    %v3158 = vshrl.u32 %v3157, 7
    %v3159 = vsub.s32 %v2590, %v3158
    %v3160 = vrot.slane %v2387, %v3159
    %v3161 = vsel %vm2595, %v3160, %v3156
    %v3162 = vlaneseq
    %v3163 = vshrl.u32 %v3162, 7
    %v3164 = vsub.s32 %v2597, %v3163
    %v3165 = vrot.slane %v2389, %v3164
    %v3166 = vsel %vm2602, %v3165, %v3161
    %v3167 = vlaneseq
    %v3168 = vshrl.u32 %v3167, 7
    %v3169 = vsub.s32 %v2604, %v3168
    %v3170 = vrot.slane %v2391, %v3169
    %v3171 = vsel %vm2609, %v3170, %v3166
    %v3172 = vlaneseq
    %v3173 = vshrl.u32 %v3172, 7
    %v3174 = vsub.s32 %v2611, %v3173
    %v3175 = vrot.slane %v2393, %v3174
    %v3176 = vsel %vm2616, %v3175, %v3171
    %v3177 = vlaneseq
    %v3178 = vshrl.u32 %v3177, 7
    %v3179 = vsub.s32 %v2618, %v3178
    %v3180 = vrot.slane %v2395, %v3179
    %v3181 = vsel %vm2623, %v3180, %v3176
    %v3182 = vlaneseq
    %v3183 = vshrl.u32 %v3182, 7
    %v3184 = vsub.s32 %v2625, %v3183
    %v3185 = vrot.slane %v2397, %v3184
    %v3186 = vsel %vm2630, %v3185, %v3181
    %v3187 = vlaneseq
    %v3188 = vshrl.u32 %v3187, 7
    %v3189 = vsub.s32 %v2632, %v3188
    %v3190 = vrot.slane %v2399, %v3189
    %v3191 = vsel %vm2637, %v3190, %v3186
    %vm3192 = vcmask 1041409
    %v3193 = vsel %vm3192, %v2717, %v2638
    %vm3194 = vcmask 1042434
    %v3195 = vsel %vm3194, %v2796, %v3193
    %vm3196 = vcmask 1043459
    %v3197 = vsel %vm3196, %v2875, %v3195
    %vm3198 = vcmask 1044484
    %v3199 = vsel %vm3198, %v2954, %v3197
    %vm3200 = vcmask 1045509
    %v3201 = vsel %vm3200, %v3033, %v3199
    %vm3202 = vcmask 1046534
    %v3203 = vsel %vm3202, %v3112, %v3201
    %vm3204 = vcmask 1047559
    %v3205 = vsel %vm3204, %v3191, %v3203
    %v3207 = vsel %vm2401, %v3205, -inf
    %3208 = vmax.xlane.f32.xlu0 %v3207
    %v3209 = vpop.xlane.xlu0 %3208
    %v3210 = vsub.f32 %v3207, %v3209
    %v3211 = vmul.f32 %v3210, 1.442695
    %v3212 = vpow.pop %v3211
    %3213 = vadd.xlane.f32.xlu0 %v3212
    %v3214 = vpop.xlane.xlu0 %3213
    %v3215 = vrcp.pop %v3214
    %v3216 = vmul.f32 %v3212, %v3215
    %v3217 = vsel %vm2401, %v3216, -inf
    %3218 = vmax.xlane.f32.xlu0 %v3217
    %v3219 = vpop.xlane.xlu0 %3218
    %v3220 = vsub.f32 %v3217, %v3219
    %v3221 = vmul.f32 %v3220, 1.442695
    %v3222 = vpow.pop %v3221
    %3223 = vadd.xlane.f32.xlu0 %v3222
    %v3224 = vpop.xlane.xlu0 %3223
    %v3225 = vrcp.pop %v3224
    %v3226 = vmul.f32 %v3222, %v3225
    %v3227 = vlaneseq
    %v3228 = vshrl.u32 %v3227, 7
    %v3229 = vsub.s32 0, %v3228
    %v3230 = vrot.slane %v3226, %v3229
    %3232 = vbcast.lane.b32.xlu0 %v3230, 256
    %v3233 = vpop.permute.xlu0 %3232
    %s3235 = sor.u32 256, 8
    %3236 = vbcast.lane.b32.xlu0 %v3230, %s3235
    %v3237 = vpop.permute.xlu0 %3236
    %s3239 = sor.u32 256, 16
    %3240 = vbcast.lane.b32.xlu0 %v3230, %s3239
    %v3241 = vpop.permute.xlu0 %3240
    %s3243 = sor.u32 256, 24
    %3244 = vbcast.lane.b32.xlu0 %v3230, %s3243
    %v3245 = vpop.permute.xlu0 %3244
    %s3247 = sor.u32 256, 32
    %3248 = vbcast.lane.b32.xlu0 %v3230, %s3247
    %v3249 = vpop.permute.xlu0 %3248
    %s3251 = sor.u32 256, 40
    %3252 = vbcast.lane.b32.xlu0 %v3230, %s3251
    %v3253 = vpop.permute.xlu0 %3252
    %s3255 = sor.u32 256, 48
    %3256 = vbcast.lane.b32.xlu0 %v3230, %s3255
    %v3257 = vpop.permute.xlu0 %3256
    %s3259 = sor.u32 256, 56
    %3260 = vbcast.lane.b32.xlu0 %v3230, %s3259
    %v3261 = vpop.permute.xlu0 %3260
    %s3263 = sor.u32 256, 64
    %3264 = vbcast.lane.b32.xlu0 %v3230, %s3263
    %v3265 = vpop.permute.xlu0 %3264
    %s3267 = sor.u32 256, 72
    %3268 = vbcast.lane.b32.xlu0 %v3230, %s3267
    %v3269 = vpop.permute.xlu0 %3268
    %s3271 = sor.u32 256, 80
    %3272 = vbcast.lane.b32.xlu0 %v3230, %s3271
    %v3273 = vpop.permute.xlu0 %3272
    %s3275 = sor.u32 256, 88
    %3276 = vbcast.lane.b32.xlu0 %v3230, %s3275
    %v3277 = vpop.permute.xlu0 %3276
    %s3279 = sor.u32 256, 96
    %3280 = vbcast.lane.b32.xlu0 %v3230, %s3279
    %v3281 = vpop.permute.xlu0 %3280
    %s3283 = sor.u32 256, 104
    %3284 = vbcast.lane.b32.xlu0 %v3230, %s3283
    %v3285 = vpop.permute.xlu0 %3284
    %s3287 = sor.u32 256, 112
    %3288 = vbcast.lane.b32.xlu0 %v3230, %s3287
    %v3289 = vpop.permute.xlu0 %3288
    %s3291 = sor.u32 256, 120
    %3292 = vbcast.lane.b32.xlu0 %v3230, %s3291
    %v3293 = vpop.permute.xlu0 %3292
    %v3294 = vlaneseq
    %v3295 = vshrl.u32 %v3294, 7
    %v3296 = vsub.s32 1, %v3295
    %v3297 = vrot.slane %v3226, %v3296
    %3299 = vbcast.lane.b32.xlu0 %v3297, 256
    %v3300 = vpop.permute.xlu0 %3299
    %s3302 = sor.u32 256, 8
    %3303 = vbcast.lane.b32.xlu0 %v3297, %s3302
    %v3304 = vpop.permute.xlu0 %3303
    %s3306 = sor.u32 256, 16
    %3307 = vbcast.lane.b32.xlu0 %v3297, %s3306
    %v3308 = vpop.permute.xlu0 %3307
    %s3310 = sor.u32 256, 24
    %3311 = vbcast.lane.b32.xlu0 %v3297, %s3310
    %v3312 = vpop.permute.xlu0 %3311
    %s3314 = sor.u32 256, 32
    %3315 = vbcast.lane.b32.xlu0 %v3297, %s3314
    %v3316 = vpop.permute.xlu0 %3315
    %s3318 = sor.u32 256, 40
    %3319 = vbcast.lane.b32.xlu0 %v3297, %s3318
    %v3320 = vpop.permute.xlu0 %3319
    %s3322 = sor.u32 256, 48
    %3323 = vbcast.lane.b32.xlu0 %v3297, %s3322
    %v3324 = vpop.permute.xlu0 %3323
    %s3326 = sor.u32 256, 56
    %3327 = vbcast.lane.b32.xlu0 %v3297, %s3326
    %v3328 = vpop.permute.xlu0 %3327
    %s3330 = sor.u32 256, 64
    %3331 = vbcast.lane.b32.xlu0 %v3297, %s3330
    %v3332 = vpop.permute.xlu0 %3331
    %s3334 = sor.u32 256, 72
    %3335 = vbcast.lane.b32.xlu0 %v3297, %s3334
    %v3336 = vpop.permute.xlu0 %3335
    %s3338 = sor.u32 256, 80
    %3339 = vbcast.lane.b32.xlu0 %v3297, %s3338
    %v3340 = vpop.permute.xlu0 %3339
    %s3342 = sor.u32 256, 88
    %3343 = vbcast.lane.b32.xlu0 %v3297, %s3342
    %v3344 = vpop.permute.xlu0 %3343
    %s3346 = sor.u32 256, 96
    %3347 = vbcast.lane.b32.xlu0 %v3297, %s3346
    %v3348 = vpop.permute.xlu0 %3347
    %s3350 = sor.u32 256, 104
    %3351 = vbcast.lane.b32.xlu0 %v3297, %s3350
    %v3352 = vpop.permute.xlu0 %3351
    %s3354 = sor.u32 256, 112
    %3355 = vbcast.lane.b32.xlu0 %v3297, %s3354
    %v3356 = vpop.permute.xlu0 %3355
    %s3358 = sor.u32 256, 120
    %3359 = vbcast.lane.b32.xlu0 %v3297, %s3358
    %v3360 = vpop.permute.xlu0 %3359
    %v3361 = vlaneseq
    %v3362 = vshrl.u32 %v3361, 7
    %v3363 = vsub.s32 2, %v3362
    %v3364 = vrot.slane %v3226, %v3363
    %3366 = vbcast.lane.b32.xlu0 %v3364, 256
    %v3367 = vpop.permute.xlu0 %3366
    %s3369 = sor.u32 256, 8
    %3370 = vbcast.lane.b32.xlu0 %v3364, %s3369
    %v3371 = vpop.permute.xlu0 %3370
    %s3373 = sor.u32 256, 16
    %3374 = vbcast.lane.b32.xlu0 %v3364, %s3373
    %v3375 = vpop.permute.xlu0 %3374
    %s3377 = sor.u32 256, 24
    %3378 = vbcast.lane.b32.xlu0 %v3364, %s3377
    %v3379 = vpop.permute.xlu0 %3378
    %s3381 = sor.u32 256, 32
    %3382 = vbcast.lane.b32.xlu0 %v3364, %s3381
    %v3383 = vpop.permute.xlu0 %3382
    %s3385 = sor.u32 256, 40
    %3386 = vbcast.lane.b32.xlu0 %v3364, %s3385
    %v3387 = vpop.permute.xlu0 %3386
    %s3389 = sor.u32 256, 48
    %3390 = vbcast.lane.b32.xlu0 %v3364, %s3389
    %v3391 = vpop.permute.xlu0 %3390
    %s3393 = sor.u32 256, 56
    %3394 = vbcast.lane.b32.xlu0 %v3364, %s3393
    %v3395 = vpop.permute.xlu0 %3394
    %s3397 = sor.u32 256, 64
    %3398 = vbcast.lane.b32.xlu0 %v3364, %s3397
    %v3399 = vpop.permute.xlu0 %3398
    %s3401 = sor.u32 256, 72
    %3402 = vbcast.lane.b32.xlu0 %v3364, %s3401
    %v3403 = vpop.permute.xlu0 %3402
    %s3405 = sor.u32 256, 80
    %3406 = vbcast.lane.b32.xlu0 %v3364, %s3405
    %v3407 = vpop.permute.xlu0 %3406
    %s3409 = sor.u32 256, 88
    %3410 = vbcast.lane.b32.xlu0 %v3364, %s3409
    %v3411 = vpop.permute.xlu0 %3410
    %s3413 = sor.u32 256, 96
    %3414 = vbcast.lane.b32.xlu0 %v3364, %s3413
    %v3415 = vpop.permute.xlu0 %3414
    %s3417 = sor.u32 256, 104
    %3418 = vbcast.lane.b32.xlu0 %v3364, %s3417
    %v3419 = vpop.permute.xlu0 %3418
    %s3421 = sor.u32 256, 112
    %3422 = vbcast.lane.b32.xlu0 %v3364, %s3421
    %v3423 = vpop.permute.xlu0 %3422
    %s3425 = sor.u32 256, 120
    %3426 = vbcast.lane.b32.xlu0 %v3364, %s3425
    %v3427 = vpop.permute.xlu0 %3426
    %v3428 = vlaneseq
    %v3429 = vshrl.u32 %v3428, 7
    %v3430 = vsub.s32 3, %v3429
    %v3431 = vrot.slane %v3226, %v3430
    %3433 = vbcast.lane.b32.xlu0 %v3431, 256
    %v3434 = vpop.permute.xlu0 %3433
    %s3436 = sor.u32 256, 8
    %3437 = vbcast.lane.b32.xlu0 %v3431, %s3436
    %v3438 = vpop.permute.xlu0 %3437
    %s3440 = sor.u32 256, 16
    %3441 = vbcast.lane.b32.xlu0 %v3431, %s3440
    %v3442 = vpop.permute.xlu0 %3441
    %s3444 = sor.u32 256, 24
    %3445 = vbcast.lane.b32.xlu0 %v3431, %s3444
    %v3446 = vpop.permute.xlu0 %3445
    %s3448 = sor.u32 256, 32
    %3449 = vbcast.lane.b32.xlu0 %v3431, %s3448
    %v3450 = vpop.permute.xlu0 %3449
    %s3452 = sor.u32 256, 40
    %3453 = vbcast.lane.b32.xlu0 %v3431, %s3452
    %v3454 = vpop.permute.xlu0 %3453
    %s3456 = sor.u32 256, 48
    %3457 = vbcast.lane.b32.xlu0 %v3431, %s3456
    %v3458 = vpop.permute.xlu0 %3457
    %s3460 = sor.u32 256, 56
    %3461 = vbcast.lane.b32.xlu0 %v3431, %s3460
    %v3462 = vpop.permute.xlu0 %3461
    %s3464 = sor.u32 256, 64
    %3465 = vbcast.lane.b32.xlu0 %v3431, %s3464
    %v3466 = vpop.permute.xlu0 %3465
    %s3468 = sor.u32 256, 72
    %3469 = vbcast.lane.b32.xlu0 %v3431, %s3468
    %v3470 = vpop.permute.xlu0 %3469
    %s3472 = sor.u32 256, 80
    %3473 = vbcast.lane.b32.xlu0 %v3431, %s3472
    %v3474 = vpop.permute.xlu0 %3473
    %s3476 = sor.u32 256, 88
    %3477 = vbcast.lane.b32.xlu0 %v3431, %s3476
    %v3478 = vpop.permute.xlu0 %3477
    %s3480 = sor.u32 256, 96
    %3481 = vbcast.lane.b32.xlu0 %v3431, %s3480
    %v3482 = vpop.permute.xlu0 %3481
    %s3484 = sor.u32 256, 104
    %3485 = vbcast.lane.b32.xlu0 %v3431, %s3484
    %v3486 = vpop.permute.xlu0 %3485
    %s3488 = sor.u32 256, 112
    %3489 = vbcast.lane.b32.xlu0 %v3431, %s3488
    %v3490 = vpop.permute.xlu0 %3489
    %s3492 = sor.u32 256, 120
    %3493 = vbcast.lane.b32.xlu0 %v3431, %s3492
    %v3494 = vpop.permute.xlu0 %3493
    %v3495 = vlaneseq
    %v3496 = vshrl.u32 %v3495, 7
    %v3497 = vsub.s32 4, %v3496
    %v3498 = vrot.slane %v3226, %v3497
    %3500 = vbcast.lane.b32.xlu0 %v3498, 256
    %v3501 = vpop.permute.xlu0 %3500
    %s3503 = sor.u32 256, 8
    %3504 = vbcast.lane.b32.xlu0 %v3498, %s3503
    %v3505 = vpop.permute.xlu0 %3504
    %s3507 = sor.u32 256, 16
    %3508 = vbcast.lane.b32.xlu0 %v3498, %s3507
    %v3509 = vpop.permute.xlu0 %3508
    %s3511 = sor.u32 256, 24
    %3512 = vbcast.lane.b32.xlu0 %v3498, %s3511
    %v3513 = vpop.permute.xlu0 %3512
    %s3515 = sor.u32 256, 32
    %3516 = vbcast.lane.b32.xlu0 %v3498, %s3515
    %v3517 = vpop.permute.xlu0 %3516
    %s3519 = sor.u32 256, 40
    %3520 = vbcast.lane.b32.xlu0 %v3498, %s3519
    %v3521 = vpop.permute.xlu0 %3520
    %s3523 = sor.u32 256, 48
    %3524 = vbcast.lane.b32.xlu0 %v3498, %s3523
    %v3525 = vpop.permute.xlu0 %3524
    %s3527 = sor.u32 256, 56
    %3528 = vbcast.lane.b32.xlu0 %v3498, %s3527
    %v3529 = vpop.permute.xlu0 %3528
    %s3531 = sor.u32 256, 64
    %3532 = vbcast.lane.b32.xlu0 %v3498, %s3531
    %v3533 = vpop.permute.xlu0 %3532
    %s3535 = sor.u32 256, 72
    %3536 = vbcast.lane.b32.xlu0 %v3498, %s3535
    %v3537 = vpop.permute.xlu0 %3536
    %s3539 = sor.u32 256, 80
    %3540 = vbcast.lane.b32.xlu0 %v3498, %s3539
    %v3541 = vpop.permute.xlu0 %3540
    %s3543 = sor.u32 256, 88
    %3544 = vbcast.lane.b32.xlu0 %v3498, %s3543
    %v3545 = vpop.permute.xlu0 %3544
    %s3547 = sor.u32 256, 96
    %3548 = vbcast.lane.b32.xlu0 %v3498, %s3547
    %v3549 = vpop.permute.xlu0 %3548
    %s3551 = sor.u32 256, 104
    %3552 = vbcast.lane.b32.xlu0 %v3498, %s3551
    %v3553 = vpop.permute.xlu0 %3552
    %s3555 = sor.u32 256, 112
    %3556 = vbcast.lane.b32.xlu0 %v3498, %s3555
    %v3557 = vpop.permute.xlu0 %3556
    %s3559 = sor.u32 256, 120
    %3560 = vbcast.lane.b32.xlu0 %v3498, %s3559
    %v3561 = vpop.permute.xlu0 %3560
    %v3562 = vlaneseq
    %v3563 = vshrl.u32 %v3562, 7
    %v3564 = vsub.s32 5, %v3563
    %v3565 = vrot.slane %v3226, %v3564
    %3567 = vbcast.lane.b32.xlu0 %v3565, 256
    %v3568 = vpop.permute.xlu0 %3567
    %s3570 = sor.u32 256, 8
    %3571 = vbcast.lane.b32.xlu0 %v3565, %s3570
    %v3572 = vpop.permute.xlu0 %3571
    %s3574 = sor.u32 256, 16
    %3575 = vbcast.lane.b32.xlu0 %v3565, %s3574
    %v3576 = vpop.permute.xlu0 %3575
    %s3578 = sor.u32 256, 24
    %3579 = vbcast.lane.b32.xlu0 %v3565, %s3578
    %v3580 = vpop.permute.xlu0 %3579
    %s3582 = sor.u32 256, 32
    %3583 = vbcast.lane.b32.xlu0 %v3565, %s3582
    %v3584 = vpop.permute.xlu0 %3583
    %s3586 = sor.u32 256, 40
    %3587 = vbcast.lane.b32.xlu0 %v3565, %s3586
    %v3588 = vpop.permute.xlu0 %3587
    %s3590 = sor.u32 256, 48
    %3591 = vbcast.lane.b32.xlu0 %v3565, %s3590
    %v3592 = vpop.permute.xlu0 %3591
    %s3594 = sor.u32 256, 56
    %3595 = vbcast.lane.b32.xlu0 %v3565, %s3594
    %v3596 = vpop.permute.xlu0 %3595
    %s3598 = sor.u32 256, 64
    %3599 = vbcast.lane.b32.xlu0 %v3565, %s3598
    %v3600 = vpop.permute.xlu0 %3599
    %s3602 = sor.u32 256, 72
    %3603 = vbcast.lane.b32.xlu0 %v3565, %s3602
    %v3604 = vpop.permute.xlu0 %3603
    %s3606 = sor.u32 256, 80
    %3607 = vbcast.lane.b32.xlu0 %v3565, %s3606
    %v3608 = vpop.permute.xlu0 %3607
    %s3610 = sor.u32 256, 88
    %3611 = vbcast.lane.b32.xlu0 %v3565, %s3610
    %v3612 = vpop.permute.xlu0 %3611
    %s3614 = sor.u32 256, 96
    %3615 = vbcast.lane.b32.xlu0 %v3565, %s3614
    %v3616 = vpop.permute.xlu0 %3615
    %s3618 = sor.u32 256, 104
    %3619 = vbcast.lane.b32.xlu0 %v3565, %s3618
    %v3620 = vpop.permute.xlu0 %3619
    %s3622 = sor.u32 256, 112
    %3623 = vbcast.lane.b32.xlu0 %v3565, %s3622
    %v3624 = vpop.permute.xlu0 %3623
    %s3626 = sor.u32 256, 120
    %3627 = vbcast.lane.b32.xlu0 %v3565, %s3626
    %v3628 = vpop.permute.xlu0 %3627
    %v3629 = vlaneseq
    %v3630 = vshrl.u32 %v3629, 7
    %v3631 = vsub.s32 6, %v3630
    %v3632 = vrot.slane %v3226, %v3631
    %3634 = vbcast.lane.b32.xlu0 %v3632, 256
    %v3635 = vpop.permute.xlu0 %3634
    %s3637 = sor.u32 256, 8
    %3638 = vbcast.lane.b32.xlu0 %v3632, %s3637
    %v3639 = vpop.permute.xlu0 %3638
    %s3641 = sor.u32 256, 16
    %3642 = vbcast.lane.b32.xlu0 %v3632, %s3641
    %v3643 = vpop.permute.xlu0 %3642
    %s3645 = sor.u32 256, 24
    %3646 = vbcast.lane.b32.xlu0 %v3632, %s3645
    %v3647 = vpop.permute.xlu0 %3646
    %s3649 = sor.u32 256, 32
    %3650 = vbcast.lane.b32.xlu0 %v3632, %s3649
    %v3651 = vpop.permute.xlu0 %3650
    %s3653 = sor.u32 256, 40
    %3654 = vbcast.lane.b32.xlu0 %v3632, %s3653
    %v3655 = vpop.permute.xlu0 %3654
    %s3657 = sor.u32 256, 48
    %3658 = vbcast.lane.b32.xlu0 %v3632, %s3657
    %v3659 = vpop.permute.xlu0 %3658
    %s3661 = sor.u32 256, 56
    %3662 = vbcast.lane.b32.xlu0 %v3632, %s3661
    %v3663 = vpop.permute.xlu0 %3662
    %s3665 = sor.u32 256, 64
    %3666 = vbcast.lane.b32.xlu0 %v3632, %s3665
    %v3667 = vpop.permute.xlu0 %3666
    %s3669 = sor.u32 256, 72
    %3670 = vbcast.lane.b32.xlu0 %v3632, %s3669
    %v3671 = vpop.permute.xlu0 %3670
    %s3673 = sor.u32 256, 80
    %3674 = vbcast.lane.b32.xlu0 %v3632, %s3673
    %v3675 = vpop.permute.xlu0 %3674
    %s3677 = sor.u32 256, 88
    %3678 = vbcast.lane.b32.xlu0 %v3632, %s3677
    %v3679 = vpop.permute.xlu0 %3678
    %s3681 = sor.u32 256, 96
    %3682 = vbcast.lane.b32.xlu0 %v3632, %s3681
    %v3683 = vpop.permute.xlu0 %3682
    %s3685 = sor.u32 256, 104
    %3686 = vbcast.lane.b32.xlu0 %v3632, %s3685
    %v3687 = vpop.permute.xlu0 %3686
    %s3689 = sor.u32 256, 112
    %3690 = vbcast.lane.b32.xlu0 %v3632, %s3689
    %v3691 = vpop.permute.xlu0 %3690
    %s3693 = sor.u32 256, 120
    %3694 = vbcast.lane.b32.xlu0 %v3632, %s3693
    %v3695 = vpop.permute.xlu0 %3694
    %v3696 = vlaneseq
    %v3697 = vshrl.u32 %v3696, 7
    %v3698 = vsub.s32 7, %v3697
    %v3699 = vrot.slane %v3226, %v3698
    %3701 = vbcast.lane.b32.xlu0 %v3699, 256
    %v3702 = vpop.permute.xlu0 %3701
    %s3704 = sor.u32 256, 8
    %3705 = vbcast.lane.b32.xlu0 %v3699, %s3704
    %v3706 = vpop.permute.xlu0 %3705
    %s3708 = sor.u32 256, 16
    %3709 = vbcast.lane.b32.xlu0 %v3699, %s3708
    %v3710 = vpop.permute.xlu0 %3709
    %s3712 = sor.u32 256, 24
    %3713 = vbcast.lane.b32.xlu0 %v3699, %s3712
    %v3714 = vpop.permute.xlu0 %3713
    %s3716 = sor.u32 256, 32
    %3717 = vbcast.lane.b32.xlu0 %v3699, %s3716
    %v3718 = vpop.permute.xlu0 %3717
    %s3720 = sor.u32 256, 40
    %3721 = vbcast.lane.b32.xlu0 %v3699, %s3720
    %v3722 = vpop.permute.xlu0 %3721
    %s3724 = sor.u32 256, 48
    %3725 = vbcast.lane.b32.xlu0 %v3699, %s3724
    %v3726 = vpop.permute.xlu0 %3725
    %s3728 = sor.u32 256, 56
    %3729 = vbcast.lane.b32.xlu0 %v3699, %s3728
    %v3730 = vpop.permute.xlu0 %3729
    %s3732 = sor.u32 256, 64
    %3733 = vbcast.lane.b32.xlu0 %v3699, %s3732
    %v3734 = vpop.permute.xlu0 %3733
    %s3736 = sor.u32 256, 72
    %3737 = vbcast.lane.b32.xlu0 %v3699, %s3736
    %v3738 = vpop.permute.xlu0 %3737
    %s3740 = sor.u32 256, 80
    %3741 = vbcast.lane.b32.xlu0 %v3699, %s3740
    %v3742 = vpop.permute.xlu0 %3741
    %s3744 = sor.u32 256, 88
    %3745 = vbcast.lane.b32.xlu0 %v3699, %s3744
    %v3746 = vpop.permute.xlu0 %3745
    %s3748 = sor.u32 256, 96
    %3749 = vbcast.lane.b32.xlu0 %v3699, %s3748
    %v3750 = vpop.permute.xlu0 %3749
    %s3752 = sor.u32 256, 104
    %3753 = vbcast.lane.b32.xlu0 %v3699, %s3752
    %v3754 = vpop.permute.xlu0 %3753
    %s3756 = sor.u32 256, 112
    %3757 = vbcast.lane.b32.xlu0 %v3699, %s3756
    %v3758 = vpop.permute.xlu0 %3757
    %s3760 = sor.u32 256, 120
    %3761 = vbcast.lane.b32.xlu0 %v3699, %s3760
    %v3762 = vpop.permute.xlu0 %3761
    %v3763 = vunpack.c.l.bf16 %v86
    %v3764 = vunpack.c.h.bf16 %v86
    %v3765 = vunpack.c.l.bf16 %v87
    %v3766 = vunpack.c.h.bf16 %v87
    %v3767 = vunpack.c.l.bf16 %v88
    %v3768 = vunpack.c.h.bf16 %v88
    %v3769 = vunpack.c.l.bf16 %v89
    %v3770 = vunpack.c.h.bf16 %v89
    %v3771 = vunpack.c.l.bf16 %v90
    %v3772 = vunpack.c.h.bf16 %v90
    %v3773 = vunpack.c.l.bf16 %v91
    %v3774 = vunpack.c.h.bf16 %v91
    %v3775 = vunpack.c.l.bf16 %v92
    %v3776 = vunpack.c.h.bf16 %v92
    %v3777 = vunpack.c.l.bf16 %v93
    %v3778 = vunpack.c.h.bf16 %v93
    %v3779 = vunpack.c.l.bf16 %v94
    %v3780 = vunpack.c.h.bf16 %v94
    %v3781 = vunpack.c.l.bf16 %v95
    %v3782 = vunpack.c.h.bf16 %v95
    %v3783 = vunpack.c.l.bf16 %v96
    %v3784 = vunpack.c.h.bf16 %v96
    %v3785 = vunpack.c.l.bf16 %v97
    %v3786 = vunpack.c.h.bf16 %v97
    %v3787 = vunpack.c.l.bf16 %v98
    %v3788 = vunpack.c.h.bf16 %v98
    %v3789 = vunpack.c.l.bf16 %v99
    %v3790 = vunpack.c.h.bf16 %v99
    %v3791 = vunpack.c.l.bf16 %v100
    %v3792 = vunpack.c.h.bf16 %v100
    %v3793 = vunpack.c.l.bf16 %v101
    %v3794 = vunpack.c.h.bf16 %v101
    %v3795 = vunpack.c.l.bf16 %v102
    %v3796 = vunpack.c.h.bf16 %v102
    %v3797 = vunpack.c.l.bf16 %v103
    %v3798 = vunpack.c.h.bf16 %v103
    %v3799 = vunpack.c.l.bf16 %v104
    %v3800 = vunpack.c.h.bf16 %v104
    %v3801 = vunpack.c.l.bf16 %v105
    %v3802 = vunpack.c.h.bf16 %v105
    %v3803 = vunpack.c.l.bf16 %v106
    %v3804 = vunpack.c.h.bf16 %v106
    %v3805 = vunpack.c.l.bf16 %v107
    %v3806 = vunpack.c.h.bf16 %v107
    %v3807 = vunpack.c.l.bf16 %v108
    %v3808 = vunpack.c.h.bf16 %v108
    %v3809 = vunpack.c.l.bf16 %v109
    %v3810 = vunpack.c.h.bf16 %v109
    %v3811 = vunpack.c.l.bf16 %v110
    %v3812 = vunpack.c.h.bf16 %v110
    %v3813 = vunpack.c.l.bf16 %v111
    %v3814 = vunpack.c.h.bf16 %v111
    %v3815 = vunpack.c.l.bf16 %v112
    %v3816 = vunpack.c.h.bf16 %v112
    %v3817 = vunpack.c.l.bf16 %v113
    %v3818 = vunpack.c.h.bf16 %v113
    %v3819 = vunpack.c.l.bf16 %v114
    %v3820 = vunpack.c.h.bf16 %v114
    %v3821 = vunpack.c.l.bf16 %v115
    %v3822 = vunpack.c.h.bf16 %v115
    %v3823 = vunpack.c.l.bf16 %v116
    %v3824 = vunpack.c.h.bf16 %v116
    %v3825 = vunpack.c.l.bf16 %v117
    %v3826 = vunpack.c.h.bf16 %v117
    %v3827 = vunpack.c.l.bf16 %v118
    %v3828 = vunpack.c.h.bf16 %v118
    %v3829 = vunpack.c.l.bf16 %v119
    %v3830 = vunpack.c.h.bf16 %v119
    %v3831 = vunpack.c.l.bf16 %v120
    %v3832 = vunpack.c.h.bf16 %v120
    %v3833 = vunpack.c.l.bf16 %v121
    %v3834 = vunpack.c.h.bf16 %v121
    %v3835 = vunpack.c.l.bf16 %v122
    %v3836 = vunpack.c.h.bf16 %v122
    %v3837 = vunpack.c.l.bf16 %v123
    %v3838 = vunpack.c.h.bf16 %v123
    %v3839 = vunpack.c.l.bf16 %v124
    %v3840 = vunpack.c.h.bf16 %v124
    %v3841 = vunpack.c.l.bf16 %v125
    %v3842 = vunpack.c.h.bf16 %v125
    %v3843 = vunpack.c.l.bf16 %v126
    %v3844 = vunpack.c.h.bf16 %v126
    %v3845 = vunpack.c.l.bf16 %v127
    %v3846 = vunpack.c.h.bf16 %v127
    %v3847 = vunpack.c.l.bf16 %v128
    %v3848 = vunpack.c.h.bf16 %v128
    %v3849 = vunpack.c.l.bf16 %v129
    %v3850 = vunpack.c.h.bf16 %v129
    %v3851 = vunpack.c.l.bf16 %v130
    %v3852 = vunpack.c.h.bf16 %v130
    %v3853 = vunpack.c.l.bf16 %v131
    %v3854 = vunpack.c.h.bf16 %v131
    %v3855 = vunpack.c.l.bf16 %v132
    %v3856 = vunpack.c.h.bf16 %v132
    %v3857 = vunpack.c.l.bf16 %v133
    %v3858 = vunpack.c.h.bf16 %v133
    %v3859 = vunpack.c.l.bf16 %v134
    %v3860 = vunpack.c.h.bf16 %v134
    %v3861 = vunpack.c.l.bf16 %v135
    %v3862 = vunpack.c.h.bf16 %v135
    %v3863 = vunpack.c.l.bf16 %v136
    %v3864 = vunpack.c.h.bf16 %v136
    %v3865 = vunpack.c.l.bf16 %v137
    %v3866 = vunpack.c.h.bf16 %v137
    %v3867 = vunpack.c.l.bf16 %v138
    %v3868 = vunpack.c.h.bf16 %v138
    %v3869 = vunpack.c.l.bf16 %v139
    %v3870 = vunpack.c.h.bf16 %v139
    %v3871 = vunpack.c.l.bf16 %v140
    %v3872 = vunpack.c.h.bf16 %v140
    %v3873 = vunpack.c.l.bf16 %v141
    %v3874 = vunpack.c.h.bf16 %v141
    %v3875 = vunpack.c.l.bf16 %v142
    %v3876 = vunpack.c.h.bf16 %v142
    %v3877 = vunpack.c.l.bf16 %v143
    %v3878 = vunpack.c.h.bf16 %v143
    %v3879 = vunpack.c.l.bf16 %v144
    %v3880 = vunpack.c.h.bf16 %v144
    %v3881 = vunpack.c.l.bf16 %v145
    %v3882 = vunpack.c.h.bf16 %v145
    %v3883 = vunpack.c.l.bf16 %v146
    %v3884 = vunpack.c.h.bf16 %v146
    %v3885 = vunpack.c.l.bf16 %v147
    %v3886 = vunpack.c.h.bf16 %v147
    %v3887 = vunpack.c.l.bf16 %v148
    %v3888 = vunpack.c.h.bf16 %v148
    %v3889 = vunpack.c.l.bf16 %v149
    %v3890 = vunpack.c.h.bf16 %v149
    %v3891 = vunpack.c.l.bf16 %v150
    %v3892 = vunpack.c.h.bf16 %v150
    %v3893 = vunpack.c.l.bf16 %v151
    %v3894 = vunpack.c.h.bf16 %v151
    %v3895 = vunpack.c.l.bf16 %v152
    %v3896 = vunpack.c.h.bf16 %v152
    %v3897 = vunpack.c.l.bf16 %v153
    %v3898 = vunpack.c.h.bf16 %v153
    %v3899 = vunpack.c.l.bf16 %v154
    %v3900 = vunpack.c.h.bf16 %v154
    %v3901 = vunpack.c.l.bf16 %v155
    %v3902 = vunpack.c.h.bf16 %v155
    %v3903 = vunpack.c.l.bf16 %v156
    %v3904 = vunpack.c.h.bf16 %v156
    %v3905 = vunpack.c.l.bf16 %v157
    %v3906 = vunpack.c.h.bf16 %v157
    %v3907 = vunpack.c.l.bf16 %v158
    %v3908 = vunpack.c.h.bf16 %v158
    %v3909 = vunpack.c.l.bf16 %v159
    %v3910 = vunpack.c.h.bf16 %v159
    %v3911 = vunpack.c.l.bf16 %v160
    %v3912 = vunpack.c.h.bf16 %v160
    %v3913 = vunpack.c.l.bf16 %v161
    %v3914 = vunpack.c.h.bf16 %v161
    %v3915 = vunpack.c.l.bf16 %v162
    %v3916 = vunpack.c.h.bf16 %v162
    %v3917 = vunpack.c.l.bf16 %v163
    %v3918 = vunpack.c.h.bf16 %v163
    %v3919 = vunpack.c.l.bf16 %v164
    %v3920 = vunpack.c.h.bf16 %v164
    %v3921 = vunpack.c.l.bf16 %v165
    %v3922 = vunpack.c.h.bf16 %v165
    %v3923 = vunpack.c.l.bf16 %v166
    %v3924 = vunpack.c.h.bf16 %v166
    %v3925 = vunpack.c.l.bf16 %v167
    %v3926 = vunpack.c.h.bf16 %v167
    %v3927 = vunpack.c.l.bf16 %v168
    %v3928 = vunpack.c.h.bf16 %v168
    %v3929 = vunpack.c.l.bf16 %v169
    %v3930 = vunpack.c.h.bf16 %v169
    %v3931 = vunpack.c.l.bf16 %v170
    %v3932 = vunpack.c.h.bf16 %v170
    %v3933 = vunpack.c.l.bf16 %v171
    %v3934 = vunpack.c.h.bf16 %v171
    %v3935 = vunpack.c.l.bf16 %v172
    %v3936 = vunpack.c.h.bf16 %v172
    %v3937 = vunpack.c.l.bf16 %v173
    %v3938 = vunpack.c.h.bf16 %v173
    %v3939 = vunpack.c.l.bf16 %v174
    %v3940 = vunpack.c.h.bf16 %v174
    %v3941 = vunpack.c.l.bf16 %v175
    %v3942 = vunpack.c.h.bf16 %v175
    %v3943 = vunpack.c.l.bf16 %v176
    %v3944 = vunpack.c.h.bf16 %v176
    %v3945 = vunpack.c.l.bf16 %v177
    %v3946 = vunpack.c.h.bf16 %v177
    %v3947 = vunpack.c.l.bf16 %v178
    %v3948 = vunpack.c.h.bf16 %v178
    %v3949 = vunpack.c.l.bf16 %v179
    %v3950 = vunpack.c.h.bf16 %v179
    %v3951 = vunpack.c.l.bf16 %v180
    %v3952 = vunpack.c.h.bf16 %v180
    %v3953 = vunpack.c.l.bf16 %v181
    %v3954 = vunpack.c.h.bf16 %v181
    %v3955 = vunpack.c.l.bf16 %v182
    %v3956 = vunpack.c.h.bf16 %v182
    %v3957 = vunpack.c.l.bf16 %v183
    %v3958 = vunpack.c.h.bf16 %v183
    %v3959 = vunpack.c.l.bf16 %v184
    %v3960 = vunpack.c.h.bf16 %v184
    %v3961 = vunpack.c.l.bf16 %v185
    %v3962 = vunpack.c.h.bf16 %v185
    %v3963 = vunpack.c.l.bf16 %v186
    %v3964 = vunpack.c.h.bf16 %v186
    %v3965 = vunpack.c.l.bf16 %v187
    %v3966 = vunpack.c.h.bf16 %v187
    %v3967 = vunpack.c.l.bf16 %v188
    %v3968 = vunpack.c.h.bf16 %v188
    %v3969 = vunpack.c.l.bf16 %v189
    %v3970 = vunpack.c.h.bf16 %v189
    %v3971 = vunpack.c.l.bf16 %v190
    %v3972 = vunpack.c.h.bf16 %v190
    %v3973 = vunpack.c.l.bf16 %v191
    %v3974 = vunpack.c.h.bf16 %v191
    %v3975 = vunpack.c.l.bf16 %v192
    %v3976 = vunpack.c.h.bf16 %v192
    %v3977 = vunpack.c.l.bf16 %v193
    %v3978 = vunpack.c.h.bf16 %v193
    %v3979 = vunpack.c.l.bf16 %v194
    %v3980 = vunpack.c.h.bf16 %v194
    %v3981 = vunpack.c.l.bf16 %v195
    %v3982 = vunpack.c.h.bf16 %v195
    %v3983 = vunpack.c.l.bf16 %v196
    %v3984 = vunpack.c.h.bf16 %v196
    %v3985 = vunpack.c.l.bf16 %v197
    %v3986 = vunpack.c.h.bf16 %v197
    %v3987 = vunpack.c.l.bf16 %v198
    %v3988 = vunpack.c.h.bf16 %v198
    %v3989 = vunpack.c.l.bf16 %v199
    %v3990 = vunpack.c.h.bf16 %v199
    %v3991 = vunpack.c.l.bf16 %v200
    %v3992 = vunpack.c.h.bf16 %v200
    %v3993 = vunpack.c.l.bf16 %v201
    %v3994 = vunpack.c.h.bf16 %v201
    %v3995 = vunpack.c.l.bf16 %v202
    %v3996 = vunpack.c.h.bf16 %v202
    %v3997 = vunpack.c.l.bf16 %v203
    %v3998 = vunpack.c.h.bf16 %v203
    %v3999 = vunpack.c.l.bf16 %v204
    %v4000 = vunpack.c.h.bf16 %v204
    %v4001 = vunpack.c.l.bf16 %v205
    %v4002 = vunpack.c.h.bf16 %v205
    %v4003 = vunpack.c.l.bf16 %v206
    %v4004 = vunpack.c.h.bf16 %v206
    %v4005 = vunpack.c.l.bf16 %v207
    %v4006 = vunpack.c.h.bf16 %v207
    %v4007 = vunpack.c.l.bf16 %v208
    %v4008 = vunpack.c.h.bf16 %v208
    %v4009 = vunpack.c.l.bf16 %v209
    %v4010 = vunpack.c.h.bf16 %v209
    %v4011 = vunpack.c.l.bf16 %v210
    %v4012 = vunpack.c.h.bf16 %v210
    %v4013 = vunpack.c.l.bf16 %v211
    %v4014 = vunpack.c.h.bf16 %v211
    %v4015 = vunpack.c.l.bf16 %v212
    %v4016 = vunpack.c.h.bf16 %v212
    %v4017 = vunpack.c.l.bf16 %v213
    %v4018 = vunpack.c.h.bf16 %v213
    %v4019 = vmul.f32 %v3233, %v3763
    %v4020 = vmul.f32 %v3233, %v3764
    %v4021 = vmul.f32 %v3237, %v3765
    %v4022 = vmul.f32 %v3237, %v3766
    %v4023 = vmul.f32 %v3241, %v3767
    %v4024 = vmul.f32 %v3241, %v3768
    %v4025 = vmul.f32 %v3245, %v3769
    %v4026 = vmul.f32 %v3245, %v3770
    %v4027 = vmul.f32 %v3249, %v3771
    %v4028 = vmul.f32 %v3249, %v3772
    %v4029 = vmul.f32 %v3253, %v3773
    %v4030 = vmul.f32 %v3253, %v3774
    %v4031 = vmul.f32 %v3257, %v3775
    %v4032 = vmul.f32 %v3257, %v3776
    %v4033 = vmul.f32 %v3261, %v3777
    %v4034 = vmul.f32 %v3261, %v3778
    %v4035 = vmul.f32 %v3265, %v3779
    %v4036 = vmul.f32 %v3265, %v3780
    %v4037 = vmul.f32 %v3269, %v3781
    %v4038 = vmul.f32 %v3269, %v3782
    %v4039 = vmul.f32 %v3273, %v3783
    %v4040 = vmul.f32 %v3273, %v3784
    %v4041 = vmul.f32 %v3277, %v3785
    %v4042 = vmul.f32 %v3277, %v3786
    %v4043 = vmul.f32 %v3281, %v3787
    %v4044 = vmul.f32 %v3281, %v3788
    %v4045 = vmul.f32 %v3285, %v3789
    %v4046 = vmul.f32 %v3285, %v3790
    %v4047 = vmul.f32 %v3289, %v3791
    %v4048 = vmul.f32 %v3289, %v3792
    %v4049 = vmul.f32 %v3293, %v3793
    %v4050 = vmul.f32 %v3293, %v3794
    %v4051 = vmul.f32 %v3300, %v3795
    %v4052 = vmul.f32 %v3300, %v3796
    %v4053 = vmul.f32 %v3304, %v3797
    %v4054 = vmul.f32 %v3304, %v3798
    %v4055 = vmul.f32 %v3308, %v3799
    %v4056 = vmul.f32 %v3308, %v3800
    %v4057 = vmul.f32 %v3312, %v3801
    %v4058 = vmul.f32 %v3312, %v3802
    %v4059 = vmul.f32 %v3316, %v3803
    %v4060 = vmul.f32 %v3316, %v3804
    %v4061 = vmul.f32 %v3320, %v3805
    %v4062 = vmul.f32 %v3320, %v3806
    %v4063 = vmul.f32 %v3324, %v3807
    %v4064 = vmul.f32 %v3324, %v3808
    %v4065 = vmul.f32 %v3328, %v3809
    %v4066 = vmul.f32 %v3328, %v3810
    %v4067 = vmul.f32 %v3332, %v3811
    %v4068 = vmul.f32 %v3332, %v3812
    %v4069 = vmul.f32 %v3336, %v3813
    %v4070 = vmul.f32 %v3336, %v3814
    %v4071 = vmul.f32 %v3340, %v3815
    %v4072 = vmul.f32 %v3340, %v3816
    %v4073 = vmul.f32 %v3344, %v3817
    %v4074 = vmul.f32 %v3344, %v3818
    %v4075 = vmul.f32 %v3348, %v3819
    %v4076 = vmul.f32 %v3348, %v3820
    %v4077 = vmul.f32 %v3352, %v3821
    %v4078 = vmul.f32 %v3352, %v3822
    %v4079 = vmul.f32 %v3356, %v3823
    %v4080 = vmul.f32 %v3356, %v3824
    %v4081 = vmul.f32 %v3360, %v3825
    %v4082 = vmul.f32 %v3360, %v3826
    %v4083 = vmul.f32 %v3367, %v3827
    %v4084 = vmul.f32 %v3367, %v3828
    %v4085 = vmul.f32 %v3371, %v3829
    %v4086 = vmul.f32 %v3371, %v3830
    %v4087 = vmul.f32 %v3375, %v3831
    %v4088 = vmul.f32 %v3375, %v3832
    %v4089 = vmul.f32 %v3379, %v3833
    %v4090 = vmul.f32 %v3379, %v3834
    %v4091 = vmul.f32 %v3383, %v3835
    %v4092 = vmul.f32 %v3383, %v3836
    %v4093 = vmul.f32 %v3387, %v3837
    %v4094 = vmul.f32 %v3387, %v3838
    %v4095 = vmul.f32 %v3391, %v3839
    %v4096 = vmul.f32 %v3391, %v3840
    %v4097 = vmul.f32 %v3395, %v3841
    %v4098 = vmul.f32 %v3395, %v3842
    %v4099 = vmul.f32 %v3399, %v3843
    %v4100 = vmul.f32 %v3399, %v3844
    %v4101 = vmul.f32 %v3403, %v3845
    %v4102 = vmul.f32 %v3403, %v3846
    %v4103 = vmul.f32 %v3407, %v3847
    %v4104 = vmul.f32 %v3407, %v3848
    %v4105 = vmul.f32 %v3411, %v3849
    %v4106 = vmul.f32 %v3411, %v3850
    %v4107 = vmul.f32 %v3415, %v3851
    %v4108 = vmul.f32 %v3415, %v3852
    %v4109 = vmul.f32 %v3419, %v3853
    %v4110 = vmul.f32 %v3419, %v3854
    %v4111 = vmul.f32 %v3423, %v3855
    %v4112 = vmul.f32 %v3423, %v3856
    %v4113 = vmul.f32 %v3427, %v3857
    %v4114 = vmul.f32 %v3427, %v3858
    %v4115 = vmul.f32 %v3434, %v3859
    %v4116 = vmul.f32 %v3434, %v3860
    %v4117 = vmul.f32 %v3438, %v3861
    %v4118 = vmul.f32 %v3438, %v3862
    %v4119 = vmul.f32 %v3442, %v3863
    %v4120 = vmul.f32 %v3442, %v3864
    %v4121 = vmul.f32 %v3446, %v3865
    %v4122 = vmul.f32 %v3446, %v3866
    %v4123 = vmul.f32 %v3450, %v3867
    %v4124 = vmul.f32 %v3450, %v3868
    %v4125 = vmul.f32 %v3454, %v3869
    %v4126 = vmul.f32 %v3454, %v3870
    %v4127 = vmul.f32 %v3458, %v3871
    %v4128 = vmul.f32 %v3458, %v3872
    %v4129 = vmul.f32 %v3462, %v3873
    %v4130 = vmul.f32 %v3462, %v3874
    %v4131 = vmul.f32 %v3466, %v3875
    %v4132 = vmul.f32 %v3466, %v3876
    %v4133 = vmul.f32 %v3470, %v3877
    %v4134 = vmul.f32 %v3470, %v3878
    %v4135 = vmul.f32 %v3474, %v3879
    %v4136 = vmul.f32 %v3474, %v3880
    %v4137 = vmul.f32 %v3478, %v3881
    %v4138 = vmul.f32 %v3478, %v3882
    %v4139 = vmul.f32 %v3482, %v3883
    %v4140 = vmul.f32 %v3482, %v3884
    %v4141 = vmul.f32 %v3486, %v3885
    %v4142 = vmul.f32 %v3486, %v3886
    %v4143 = vmul.f32 %v3490, %v3887
    %v4144 = vmul.f32 %v3490, %v3888
    %v4145 = vmul.f32 %v3494, %v3889
    %v4146 = vmul.f32 %v3494, %v3890
    %v4147 = vmul.f32 %v3501, %v3891
    %v4148 = vmul.f32 %v3501, %v3892
    %v4149 = vmul.f32 %v3505, %v3893
    %v4150 = vmul.f32 %v3505, %v3894
    %v4151 = vmul.f32 %v3509, %v3895
    %v4152 = vmul.f32 %v3509, %v3896
    %v4153 = vmul.f32 %v3513, %v3897
    %v4154 = vmul.f32 %v3513, %v3898
    %v4155 = vmul.f32 %v3517, %v3899
    %v4156 = vmul.f32 %v3517, %v3900
    %v4157 = vmul.f32 %v3521, %v3901
    %v4158 = vmul.f32 %v3521, %v3902
    %v4159 = vmul.f32 %v3525, %v3903
    %v4160 = vmul.f32 %v3525, %v3904
    %v4161 = vmul.f32 %v3529, %v3905
    %v4162 = vmul.f32 %v3529, %v3906
    %v4163 = vmul.f32 %v3533, %v3907
    %v4164 = vmul.f32 %v3533, %v3908
    %v4165 = vmul.f32 %v3537, %v3909
    %v4166 = vmul.f32 %v3537, %v3910
    %v4167 = vmul.f32 %v3541, %v3911
    %v4168 = vmul.f32 %v3541, %v3912
    %v4169 = vmul.f32 %v3545, %v3913
    %v4170 = vmul.f32 %v3545, %v3914
    %v4171 = vmul.f32 %v3549, %v3915
    %v4172 = vmul.f32 %v3549, %v3916
    %v4173 = vmul.f32 %v3553, %v3917
    %v4174 = vmul.f32 %v3553, %v3918
    %v4175 = vmul.f32 %v3557, %v3919
    %v4176 = vmul.f32 %v3557, %v3920
    %v4177 = vmul.f32 %v3561, %v3921
    %v4178 = vmul.f32 %v3561, %v3922
    %v4179 = vmul.f32 %v3568, %v3923
    %v4180 = vmul.f32 %v3568, %v3924
    %v4181 = vmul.f32 %v3572, %v3925
    %v4182 = vmul.f32 %v3572, %v3926
    %v4183 = vmul.f32 %v3576, %v3927
    %v4184 = vmul.f32 %v3576, %v3928
    %v4185 = vmul.f32 %v3580, %v3929
    %v4186 = vmul.f32 %v3580, %v3930
    %v4187 = vmul.f32 %v3584, %v3931
    %v4188 = vmul.f32 %v3584, %v3932
    %v4189 = vmul.f32 %v3588, %v3933
    %v4190 = vmul.f32 %v3588, %v3934
    %v4191 = vmul.f32 %v3592, %v3935
    %v4192 = vmul.f32 %v3592, %v3936
    %v4193 = vmul.f32 %v3596, %v3937
    %v4194 = vmul.f32 %v3596, %v3938
    %v4195 = vmul.f32 %v3600, %v3939
    %v4196 = vmul.f32 %v3600, %v3940
    %v4197 = vmul.f32 %v3604, %v3941
    %v4198 = vmul.f32 %v3604, %v3942
    %v4199 = vmul.f32 %v3608, %v3943
    %v4200 = vmul.f32 %v3608, %v3944
    %v4201 = vmul.f32 %v3612, %v3945
    %v4202 = vmul.f32 %v3612, %v3946
    %v4203 = vmul.f32 %v3616, %v3947
    %v4204 = vmul.f32 %v3616, %v3948
    %v4205 = vmul.f32 %v3620, %v3949
    %v4206 = vmul.f32 %v3620, %v3950
    %v4207 = vmul.f32 %v3624, %v3951
    %v4208 = vmul.f32 %v3624, %v3952
    %v4209 = vmul.f32 %v3628, %v3953
    %v4210 = vmul.f32 %v3628, %v3954
    %v4211 = vmul.f32 %v3635, %v3955
    %v4212 = vmul.f32 %v3635, %v3956
    %v4213 = vmul.f32 %v3639, %v3957
    %v4214 = vmul.f32 %v3639, %v3958
    %v4215 = vmul.f32 %v3643, %v3959
    %v4216 = vmul.f32 %v3643, %v3960
    %v4217 = vmul.f32 %v3647, %v3961
    %v4218 = vmul.f32 %v3647, %v3962
    %v4219 = vmul.f32 %v3651, %v3963
    %v4220 = vmul.f32 %v3651, %v3964
    %v4221 = vmul.f32 %v3655, %v3965
    %v4222 = vmul.f32 %v3655, %v3966
    %v4223 = vmul.f32 %v3659, %v3967
    %v4224 = vmul.f32 %v3659, %v3968
    %v4225 = vmul.f32 %v3663, %v3969
    %v4226 = vmul.f32 %v3663, %v3970
    %v4227 = vmul.f32 %v3667, %v3971
    %v4228 = vmul.f32 %v3667, %v3972
    %v4229 = vmul.f32 %v3671, %v3973
    %v4230 = vmul.f32 %v3671, %v3974
    %v4231 = vmul.f32 %v3675, %v3975
    %v4232 = vmul.f32 %v3675, %v3976
    %v4233 = vmul.f32 %v3679, %v3977
    %v4234 = vmul.f32 %v3679, %v3978
    %v4235 = vmul.f32 %v3683, %v3979
    %v4236 = vmul.f32 %v3683, %v3980
    %v4237 = vmul.f32 %v3687, %v3981
    %v4238 = vmul.f32 %v3687, %v3982
    %v4239 = vmul.f32 %v3691, %v3983
    %v4240 = vmul.f32 %v3691, %v3984
    %v4241 = vmul.f32 %v3695, %v3985
    %v4242 = vmul.f32 %v3695, %v3986
    %v4243 = vmul.f32 %v3702, %v3987
    %v4244 = vmul.f32 %v3702, %v3988
    %v4245 = vmul.f32 %v3706, %v3989
    %v4246 = vmul.f32 %v3706, %v3990
    %v4247 = vmul.f32 %v3710, %v3991
    %v4248 = vmul.f32 %v3710, %v3992
    %v4249 = vmul.f32 %v3714, %v3993
    %v4250 = vmul.f32 %v3714, %v3994
    %v4251 = vmul.f32 %v3718, %v3995
    %v4252 = vmul.f32 %v3718, %v3996
    %v4253 = vmul.f32 %v3722, %v3997
    %v4254 = vmul.f32 %v3722, %v3998
    %v4255 = vmul.f32 %v3726, %v3999
    %v4256 = vmul.f32 %v3726, %v4000
    %v4257 = vmul.f32 %v3730, %v4001
    %v4258 = vmul.f32 %v3730, %v4002
    %v4259 = vmul.f32 %v3734, %v4003
    %v4260 = vmul.f32 %v3734, %v4004
    %v4261 = vmul.f32 %v3738, %v4005
    %v4262 = vmul.f32 %v3738, %v4006
    %v4263 = vmul.f32 %v3742, %v4007
    %v4264 = vmul.f32 %v3742, %v4008
    %v4265 = vmul.f32 %v3746, %v4009
    %v4266 = vmul.f32 %v3746, %v4010
    %v4267 = vmul.f32 %v3750, %v4011
    %v4268 = vmul.f32 %v3750, %v4012
    %v4269 = vmul.f32 %v3754, %v4013
    %v4270 = vmul.f32 %v3754, %v4014
    %v4271 = vmul.f32 %v3758, %v4015
    %v4272 = vmul.f32 %v3758, %v4016
    %v4273 = vmul.f32 %v3762, %v4017
    %v4274 = vmul.f32 %v3762, %v4018
    %v4275 = vadd.f32 %v4019, %v4021
    %v4276 = vadd.f32 %v4275, %v4023
    %v4277 = vadd.f32 %v4276, %v4025
    %v4278 = vadd.f32 %v4277, %v4027
    %v4279 = vadd.f32 %v4278, %v4029
    %v4280 = vadd.f32 %v4279, %v4031
    %v4281 = vadd.f32 %v4280, %v4033
    %v4282 = vadd.f32 %v4281, %v4035
    %v4283 = vadd.f32 %v4282, %v4037
    %v4284 = vadd.f32 %v4283, %v4039
    %v4285 = vadd.f32 %v4284, %v4041
    %v4286 = vadd.f32 %v4285, %v4043
    %v4287 = vadd.f32 %v4286, %v4045
    %v4288 = vadd.f32 %v4287, %v4047
    %v4289 = vadd.f32 %v4288, %v4049
    %v4290 = vrot.slane %v4289, 4
    %v4291 = vadd.f32 %v4289, %v4290
    %v4292 = vrot.slane %v4291, 2
    %v4293 = vadd.f32 %v4291, %v4292
    %v4294 = vrot.slane %v4293, 1
    %v4295 = vadd.f32 %v4293, %v4294
    %v4296 = vadd.f32 %v4020, %v4022
    %v4297 = vadd.f32 %v4296, %v4024
    %v4298 = vadd.f32 %v4297, %v4026
    %v4299 = vadd.f32 %v4298, %v4028
    %v4300 = vadd.f32 %v4299, %v4030
    %v4301 = vadd.f32 %v4300, %v4032
    %v4302 = vadd.f32 %v4301, %v4034
    %v4303 = vadd.f32 %v4302, %v4036
    %v4304 = vadd.f32 %v4303, %v4038
    %v4305 = vadd.f32 %v4304, %v4040
    %v4306 = vadd.f32 %v4305, %v4042
    %v4307 = vadd.f32 %v4306, %v4044
    %v4308 = vadd.f32 %v4307, %v4046
    %v4309 = vadd.f32 %v4308, %v4048
    %v4310 = vadd.f32 %v4309, %v4050
    %v4311 = vrot.slane %v4310, 4
    %v4312 = vadd.f32 %v4310, %v4311
    %v4313 = vrot.slane %v4312, 2
    %v4314 = vadd.f32 %v4312, %v4313
    %v4315 = vrot.slane %v4314, 1
    %v4316 = vadd.f32 %v4314, %v4315
    %v4317 = vadd.f32 %v4051, %v4053
    %v4318 = vadd.f32 %v4317, %v4055
    %v4319 = vadd.f32 %v4318, %v4057
    %v4320 = vadd.f32 %v4319, %v4059
    %v4321 = vadd.f32 %v4320, %v4061
    %v4322 = vadd.f32 %v4321, %v4063
    %v4323 = vadd.f32 %v4322, %v4065
    %v4324 = vadd.f32 %v4323, %v4067
    %v4325 = vadd.f32 %v4324, %v4069
    %v4326 = vadd.f32 %v4325, %v4071
    %v4327 = vadd.f32 %v4326, %v4073
    %v4328 = vadd.f32 %v4327, %v4075
    %v4329 = vadd.f32 %v4328, %v4077
    %v4330 = vadd.f32 %v4329, %v4079
    %v4331 = vadd.f32 %v4330, %v4081
    %v4332 = vrot.slane %v4331, 4
    %v4333 = vadd.f32 %v4331, %v4332
    %v4334 = vrot.slane %v4333, 2
    %v4335 = vadd.f32 %v4333, %v4334
    %v4336 = vrot.slane %v4335, 1
    %v4337 = vadd.f32 %v4335, %v4336
    %v4338 = vadd.f32 %v4052, %v4054
    %v4339 = vadd.f32 %v4338, %v4056
    %v4340 = vadd.f32 %v4339, %v4058
    %v4341 = vadd.f32 %v4340, %v4060
    %v4342 = vadd.f32 %v4341, %v4062
    %v4343 = vadd.f32 %v4342, %v4064
    %v4344 = vadd.f32 %v4343, %v4066
    %v4345 = vadd.f32 %v4344, %v4068
    %v4346 = vadd.f32 %v4345, %v4070
    %v4347 = vadd.f32 %v4346, %v4072
    %v4348 = vadd.f32 %v4347, %v4074
    %v4349 = vadd.f32 %v4348, %v4076
    %v4350 = vadd.f32 %v4349, %v4078
    %v4351 = vadd.f32 %v4350, %v4080
    %v4352 = vadd.f32 %v4351, %v4082
    %v4353 = vrot.slane %v4352, 4
    %v4354 = vadd.f32 %v4352, %v4353
    %v4355 = vrot.slane %v4354, 2
    %v4356 = vadd.f32 %v4354, %v4355
    %v4357 = vrot.slane %v4356, 1
    %v4358 = vadd.f32 %v4356, %v4357
    %v4359 = vadd.f32 %v4083, %v4085
    %v4360 = vadd.f32 %v4359, %v4087
    %v4361 = vadd.f32 %v4360, %v4089
    %v4362 = vadd.f32 %v4361, %v4091
    %v4363 = vadd.f32 %v4362, %v4093
    %v4364 = vadd.f32 %v4363, %v4095
    %v4365 = vadd.f32 %v4364, %v4097
    %v4366 = vadd.f32 %v4365, %v4099
    %v4367 = vadd.f32 %v4366, %v4101
    %v4368 = vadd.f32 %v4367, %v4103
    %v4369 = vadd.f32 %v4368, %v4105
    %v4370 = vadd.f32 %v4369, %v4107
    %v4371 = vadd.f32 %v4370, %v4109
    %v4372 = vadd.f32 %v4371, %v4111
    %v4373 = vadd.f32 %v4372, %v4113
    %v4374 = vrot.slane %v4373, 4
    %v4375 = vadd.f32 %v4373, %v4374
    %v4376 = vrot.slane %v4375, 2
    %v4377 = vadd.f32 %v4375, %v4376
    %v4378 = vrot.slane %v4377, 1
    %v4379 = vadd.f32 %v4377, %v4378
    %v4380 = vadd.f32 %v4084, %v4086
    %v4381 = vadd.f32 %v4380, %v4088
    %v4382 = vadd.f32 %v4381, %v4090
    %v4383 = vadd.f32 %v4382, %v4092
    %v4384 = vadd.f32 %v4383, %v4094
    %v4385 = vadd.f32 %v4384, %v4096
    %v4386 = vadd.f32 %v4385, %v4098
    %v4387 = vadd.f32 %v4386, %v4100
    %v4388 = vadd.f32 %v4387, %v4102
    %v4389 = vadd.f32 %v4388, %v4104
    %v4390 = vadd.f32 %v4389, %v4106
    %v4391 = vadd.f32 %v4390, %v4108
    %v4392 = vadd.f32 %v4391, %v4110
    %v4393 = vadd.f32 %v4392, %v4112
    %v4394 = vadd.f32 %v4393, %v4114
    %v4395 = vrot.slane %v4394, 4
    %v4396 = vadd.f32 %v4394, %v4395
    %v4397 = vrot.slane %v4396, 2
    %v4398 = vadd.f32 %v4396, %v4397
    %v4399 = vrot.slane %v4398, 1
    %v4400 = vadd.f32 %v4398, %v4399
    %v4401 = vadd.f32 %v4115, %v4117
    %v4402 = vadd.f32 %v4401, %v4119
    %v4403 = vadd.f32 %v4402, %v4121
    %v4404 = vadd.f32 %v4403, %v4123
    %v4405 = vadd.f32 %v4404, %v4125
    %v4406 = vadd.f32 %v4405, %v4127
    %v4407 = vadd.f32 %v4406, %v4129
    %v4408 = vadd.f32 %v4407, %v4131
    %v4409 = vadd.f32 %v4408, %v4133
    %v4410 = vadd.f32 %v4409, %v4135
    %v4411 = vadd.f32 %v4410, %v4137
    %v4412 = vadd.f32 %v4411, %v4139
    %v4413 = vadd.f32 %v4412, %v4141
    %v4414 = vadd.f32 %v4413, %v4143
    %v4415 = vadd.f32 %v4414, %v4145
    %v4416 = vrot.slane %v4415, 4
    %v4417 = vadd.f32 %v4415, %v4416
    %v4418 = vrot.slane %v4417, 2
    %v4419 = vadd.f32 %v4417, %v4418
    %v4420 = vrot.slane %v4419, 1
    %v4421 = vadd.f32 %v4419, %v4420
    %v4422 = vadd.f32 %v4116, %v4118
    %v4423 = vadd.f32 %v4422, %v4120
    %v4424 = vadd.f32 %v4423, %v4122
    %v4425 = vadd.f32 %v4424, %v4124
    %v4426 = vadd.f32 %v4425, %v4126
    %v4427 = vadd.f32 %v4426, %v4128
    %v4428 = vadd.f32 %v4427, %v4130
    %v4429 = vadd.f32 %v4428, %v4132
    %v4430 = vadd.f32 %v4429, %v4134
    %v4431 = vadd.f32 %v4430, %v4136
    %v4432 = vadd.f32 %v4431, %v4138
    %v4433 = vadd.f32 %v4432, %v4140
    %v4434 = vadd.f32 %v4433, %v4142
    %v4435 = vadd.f32 %v4434, %v4144
    %v4436 = vadd.f32 %v4435, %v4146
    %v4437 = vrot.slane %v4436, 4
    %v4438 = vadd.f32 %v4436, %v4437
    %v4439 = vrot.slane %v4438, 2
    %v4440 = vadd.f32 %v4438, %v4439
    %v4441 = vrot.slane %v4440, 1
    %v4442 = vadd.f32 %v4440, %v4441
    %v4443 = vadd.f32 %v4147, %v4149
    %v4444 = vadd.f32 %v4443, %v4151
    %v4445 = vadd.f32 %v4444, %v4153
    %v4446 = vadd.f32 %v4445, %v4155
    %v4447 = vadd.f32 %v4446, %v4157
    %v4448 = vadd.f32 %v4447, %v4159
    %v4449 = vadd.f32 %v4448, %v4161
    %v4450 = vadd.f32 %v4449, %v4163
    %v4451 = vadd.f32 %v4450, %v4165
    %v4452 = vadd.f32 %v4451, %v4167
    %v4453 = vadd.f32 %v4452, %v4169
    %v4454 = vadd.f32 %v4453, %v4171
    %v4455 = vadd.f32 %v4454, %v4173
    %v4456 = vadd.f32 %v4455, %v4175
    %v4457 = vadd.f32 %v4456, %v4177
    %v4458 = vrot.slane %v4457, 4
    %v4459 = vadd.f32 %v4457, %v4458
    %v4460 = vrot.slane %v4459, 2
    %v4461 = vadd.f32 %v4459, %v4460
    %v4462 = vrot.slane %v4461, 1
    %v4463 = vadd.f32 %v4461, %v4462
    %v4464 = vadd.f32 %v4148, %v4150
    %v4465 = vadd.f32 %v4464, %v4152
    %v4466 = vadd.f32 %v4465, %v4154
    %v4467 = vadd.f32 %v4466, %v4156
    %v4468 = vadd.f32 %v4467, %v4158
    %v4469 = vadd.f32 %v4468, %v4160
    %v4470 = vadd.f32 %v4469, %v4162
    %v4471 = vadd.f32 %v4470, %v4164
    %v4472 = vadd.f32 %v4471, %v4166
    %v4473 = vadd.f32 %v4472, %v4168
    %v4474 = vadd.f32 %v4473, %v4170
    %v4475 = vadd.f32 %v4474, %v4172
    %v4476 = vadd.f32 %v4475, %v4174
    %v4477 = vadd.f32 %v4476, %v4176
    %v4478 = vadd.f32 %v4477, %v4178
    %v4479 = vrot.slane %v4478, 4
    %v4480 = vadd.f32 %v4478, %v4479
    %v4481 = vrot.slane %v4480, 2
    %v4482 = vadd.f32 %v4480, %v4481
    %v4483 = vrot.slane %v4482, 1
    %v4484 = vadd.f32 %v4482, %v4483
    %v4485 = vadd.f32 %v4179, %v4181
    %v4486 = vadd.f32 %v4485, %v4183
    %v4487 = vadd.f32 %v4486, %v4185
    %v4488 = vadd.f32 %v4487, %v4187
    %v4489 = vadd.f32 %v4488, %v4189
    %v4490 = vadd.f32 %v4489, %v4191
    %v4491 = vadd.f32 %v4490, %v4193
    %v4492 = vadd.f32 %v4491, %v4195
    %v4493 = vadd.f32 %v4492, %v4197
    %v4494 = vadd.f32 %v4493, %v4199
    %v4495 = vadd.f32 %v4494, %v4201
    %v4496 = vadd.f32 %v4495, %v4203
    %v4497 = vadd.f32 %v4496, %v4205
    %v4498 = vadd.f32 %v4497, %v4207
    %v4499 = vadd.f32 %v4498, %v4209
    %v4500 = vrot.slane %v4499, 4
    %v4501 = vadd.f32 %v4499, %v4500
    %v4502 = vrot.slane %v4501, 2
    %v4503 = vadd.f32 %v4501, %v4502
    %v4504 = vrot.slane %v4503, 1
    %v4505 = vadd.f32 %v4503, %v4504
    %v4506 = vadd.f32 %v4180, %v4182
    %v4507 = vadd.f32 %v4506, %v4184
    %v4508 = vadd.f32 %v4507, %v4186
    %v4509 = vadd.f32 %v4508, %v4188
    %v4510 = vadd.f32 %v4509, %v4190
    %v4511 = vadd.f32 %v4510, %v4192
    %v4512 = vadd.f32 %v4511, %v4194
    %v4513 = vadd.f32 %v4512, %v4196
    %v4514 = vadd.f32 %v4513, %v4198
    %v4515 = vadd.f32 %v4514, %v4200
    %v4516 = vadd.f32 %v4515, %v4202
    %v4517 = vadd.f32 %v4516, %v4204
    %v4518 = vadd.f32 %v4517, %v4206
    %v4519 = vadd.f32 %v4518, %v4208
    %v4520 = vadd.f32 %v4519, %v4210
    %v4521 = vrot.slane %v4520, 4
    %v4522 = vadd.f32 %v4520, %v4521
    %v4523 = vrot.slane %v4522, 2
    %v4524 = vadd.f32 %v4522, %v4523
    %v4525 = vrot.slane %v4524, 1
    %v4526 = vadd.f32 %v4524, %v4525
    %v4527 = vadd.f32 %v4211, %v4213
    %v4528 = vadd.f32 %v4527, %v4215
    %v4529 = vadd.f32 %v4528, %v4217
    %v4530 = vadd.f32 %v4529, %v4219
    %v4531 = vadd.f32 %v4530, %v4221
    %v4532 = vadd.f32 %v4531, %v4223
    %v4533 = vadd.f32 %v4532, %v4225
    %v4534 = vadd.f32 %v4533, %v4227
    %v4535 = vadd.f32 %v4534, %v4229
    %v4536 = vadd.f32 %v4535, %v4231
    %v4537 = vadd.f32 %v4536, %v4233
    %v4538 = vadd.f32 %v4537, %v4235
    %v4539 = vadd.f32 %v4538, %v4237
    %v4540 = vadd.f32 %v4539, %v4239
    %v4541 = vadd.f32 %v4540, %v4241
    %v4542 = vrot.slane %v4541, 4
    %v4543 = vadd.f32 %v4541, %v4542
    %v4544 = vrot.slane %v4543, 2
    %v4545 = vadd.f32 %v4543, %v4544
    %v4546 = vrot.slane %v4545, 1
    %v4547 = vadd.f32 %v4545, %v4546
    %v4548 = vadd.f32 %v4212, %v4214
    %v4549 = vadd.f32 %v4548, %v4216
    %v4550 = vadd.f32 %v4549, %v4218
    %v4551 = vadd.f32 %v4550, %v4220
    %v4552 = vadd.f32 %v4551, %v4222
    %v4553 = vadd.f32 %v4552, %v4224
    %v4554 = vadd.f32 %v4553, %v4226
    %v4555 = vadd.f32 %v4554, %v4228
    %v4556 = vadd.f32 %v4555, %v4230
    %v4557 = vadd.f32 %v4556, %v4232
    %v4558 = vadd.f32 %v4557, %v4234
    %v4559 = vadd.f32 %v4558, %v4236
    %v4560 = vadd.f32 %v4559, %v4238
    %v4561 = vadd.f32 %v4560, %v4240
    %v4562 = vadd.f32 %v4561, %v4242
    %v4563 = vrot.slane %v4562, 4
    %v4564 = vadd.f32 %v4562, %v4563
    %v4565 = vrot.slane %v4564, 2
    %v4566 = vadd.f32 %v4564, %v4565
    %v4567 = vrot.slane %v4566, 1
    %v4568 = vadd.f32 %v4566, %v4567
    %v4569 = vadd.f32 %v4243, %v4245
    %v4570 = vadd.f32 %v4569, %v4247
    %v4571 = vadd.f32 %v4570, %v4249
    %v4572 = vadd.f32 %v4571, %v4251
    %v4573 = vadd.f32 %v4572, %v4253
    %v4574 = vadd.f32 %v4573, %v4255
    %v4575 = vadd.f32 %v4574, %v4257
    %v4576 = vadd.f32 %v4575, %v4259
    %v4577 = vadd.f32 %v4576, %v4261
    %v4578 = vadd.f32 %v4577, %v4263
    %v4579 = vadd.f32 %v4578, %v4265
    %v4580 = vadd.f32 %v4579, %v4267
    %v4581 = vadd.f32 %v4580, %v4269
    %v4582 = vadd.f32 %v4581, %v4271
    %v4583 = vadd.f32 %v4582, %v4273
    %v4584 = vrot.slane %v4583, 4
    %v4585 = vadd.f32 %v4583, %v4584
    %v4586 = vrot.slane %v4585, 2
    %v4587 = vadd.f32 %v4585, %v4586
    %v4588 = vrot.slane %v4587, 1
    %v4589 = vadd.f32 %v4587, %v4588
    %v4590 = vadd.f32 %v4244, %v4246
    %v4591 = vadd.f32 %v4590, %v4248
    %v4592 = vadd.f32 %v4591, %v4250
    %v4593 = vadd.f32 %v4592, %v4252
    %v4594 = vadd.f32 %v4593, %v4254
    %v4595 = vadd.f32 %v4594, %v4256
    %v4596 = vadd.f32 %v4595, %v4258
    %v4597 = vadd.f32 %v4596, %v4260
    %v4598 = vadd.f32 %v4597, %v4262
    %v4599 = vadd.f32 %v4598, %v4264
    %v4600 = vadd.f32 %v4599, %v4266
    %v4601 = vadd.f32 %v4600, %v4268
    %v4602 = vadd.f32 %v4601, %v4270
    %v4603 = vadd.f32 %v4602, %v4272
    %v4604 = vadd.f32 %v4603, %v4274
    %v4605 = vrot.slane %v4604, 4
    %v4606 = vadd.f32 %v4604, %v4605
    %v4607 = vrot.slane %v4606, 2
    %v4608 = vadd.f32 %v4606, %v4607
    %v4609 = vrot.slane %v4608, 1
    %v4610 = vadd.f32 %v4608, %v4609
    %v4611 = vpack.c.bf16 %v4295, %v4295
    %v4612 = vpack.c.bf16 %v4316, %v4316
    %v4613 = vpack.c.bf16 %v4337, %v4337
    %v4614 = vpack.c.bf16 %v4358, %v4358
    %v4615 = vpack.c.bf16 %v4379, %v4379
    %v4616 = vpack.c.bf16 %v4400, %v4400
    %v4617 = vpack.c.bf16 %v4421, %v4421
    %v4618 = vpack.c.bf16 %v4442, %v4442
    %v4619 = vpack.c.bf16 %v4463, %v4463
    %v4620 = vpack.c.bf16 %v4484, %v4484
    %v4621 = vpack.c.bf16 %v4505, %v4505
    %v4622 = vpack.c.bf16 %v4526, %v4526
    %v4623 = vpack.c.bf16 %v4547, %v4547
    %v4624 = vpack.c.bf16 %v4568, %v4568
    %v4625 = vpack.c.bf16 %v4589, %v4589
    %v4626 = vpack.c.bf16 %v4610, %v4610
    %v4628 = vlaneseq
    %v4629 = vshrl.u32 %v4628, 7
    %v4630 = vsub.s32 0, %v4629
    %v4631 = vrot.slane %v329, %v4630
    %v4632 = vlaneseq
    %v4633 = vshrl.u32 %v4632, 7
    %v4634 = vsub.s32 2, %v4633
    %v4635 = vrot.slane %v329, %v4634
    %v4636 = vlaneseq
    %v4637 = vshrl.u32 %v4636, 7
    %v4638 = vsub.s32 3, %v4637
    %v4639 = vrot.slane %v329, %v4638
    %v4659 = vunpack.c.l.b16 %v4611
    %v4660 = vunpack.c.l.b16 %v4612
    %v4661 = vunpack.c.l.b16 %v4613
    %v4662 = vunpack.c.l.b16 %v4614
    %v4663 = vunpack.c.l.b16 %v4615
    %v4664 = vunpack.c.l.b16 %v4616
    %v4665 = vunpack.c.l.b16 %v4617
    %v4666 = vunpack.c.l.b16 %v4618
    %v4667 = vunpack.c.l.b16 %v4619
    %v4668 = vunpack.c.l.b16 %v4620
    %v4669 = vunpack.c.l.b16 %v4621
    %v4670 = vunpack.c.l.b16 %v4622
    %v4671 = vunpack.c.l.b16 %v4623
    %v4672 = vunpack.c.l.b16 %v4624
    %v4673 = vunpack.c.l.b16 %v4625
    %v4674 = vunpack.c.l.b16 %v4626
    %v4675 = vsel %vm3192, %v4661, %v4659
    %v4676 = vsel %vm3194, %v4663, %v4675
    %v4677 = vsel %vm3196, %v4665, %v4676
    %v4678 = vsel %vm3198, %v4667, %v4677
    %v4679 = vsel %vm3200, %v4669, %v4678
    %v4680 = vsel %vm3202, %v4671, %v4679
    %v4681 = vsel %vm3204, %v4673, %v4680
    %v4682 = vsel %vm3192, %v4662, %v4660
    %v4683 = vsel %vm3194, %v4664, %v4682
    %v4684 = vsel %vm3196, %v4666, %v4683
    %v4685 = vsel %vm3198, %v4668, %v4684
    %v4686 = vsel %vm3200, %v4670, %v4685
    %v4687 = vsel %vm3202, %v4672, %v4686
    %v4688 = vsel %vm3204, %v4674, %v4687
    %v4689 = vpack.c.b16 %v4681, %v4681
    %v4690 = vpack.c.b16 %v4688, %v4688
    %v4757 = vunpack.c.l.b16 %v265
    %v4758 = vunpack.c.h.b16 %v265
    %v4759 = vunpack.c.l.b16 %v266
    %v4760 = vunpack.c.h.b16 %v266
    %v4761 = vunpack.c.l.b16 %v267
    %v4762 = vunpack.c.h.b16 %v267
    %v4763 = vunpack.c.l.b16 %v268
    %v4764 = vunpack.c.h.b16 %v268
    %v4765 = vunpack.c.l.b16 %v269
    %v4766 = vunpack.c.h.b16 %v269
    %v4767 = vunpack.c.l.b16 %v270
    %v4768 = vunpack.c.h.b16 %v270
    %v4769 = vunpack.c.l.b16 %v271
    %v4770 = vunpack.c.h.b16 %v271
    %v4771 = vunpack.c.l.b16 %v272
    %v4772 = vunpack.c.h.b16 %v272
    %v4773 = vunpack.c.l.b16 %v273
    %v4774 = vunpack.c.h.b16 %v273
    %v4775 = vunpack.c.l.b16 %v274
    %v4776 = vunpack.c.h.b16 %v274
    %v4777 = vunpack.c.l.b16 %v275
    %v4778 = vunpack.c.h.b16 %v275
    %v4779 = vunpack.c.l.b16 %v276
    %v4780 = vunpack.c.h.b16 %v276
    %v4781 = vunpack.c.l.b16 %v277
    %v4782 = vunpack.c.h.b16 %v277
    %v4783 = vunpack.c.l.b16 %v278
    %v4784 = vunpack.c.h.b16 %v278
    %v4785 = vunpack.c.l.b16 %v279
    %v4786 = vunpack.c.h.b16 %v279
    %v4787 = vunpack.c.l.b16 %v280
    %v4788 = vunpack.c.h.b16 %v280
    %v4789 = vunpack.c.l.b16 %v281
    %v4790 = vunpack.c.h.b16 %v281
    %v4791 = vunpack.c.l.b16 %v282
    %v4792 = vunpack.c.h.b16 %v282
    %v4793 = vunpack.c.l.b16 %v283
    %v4794 = vunpack.c.h.b16 %v283
    %v4795 = vunpack.c.l.b16 %v284
    %v4796 = vunpack.c.h.b16 %v284
    %v4797 = vunpack.c.l.b16 %v285
    %v4798 = vunpack.c.h.b16 %v285
    %v4799 = vunpack.c.l.b16 %v286
    %v4800 = vunpack.c.h.b16 %v286
    %v4801 = vunpack.c.l.b16 %v287
    %v4802 = vunpack.c.h.b16 %v287
    %v4803 = vunpack.c.l.b16 %v288
    %v4804 = vunpack.c.h.b16 %v288
    %v4805 = vunpack.c.l.b16 %v289
    %v4806 = vunpack.c.h.b16 %v289
    %v4807 = vunpack.c.l.b16 %v290
    %v4808 = vunpack.c.h.b16 %v290
    %v4809 = vunpack.c.l.b16 %v291
    %v4810 = vunpack.c.h.b16 %v291
    %v4811 = vunpack.c.l.b16 %v292
    %v4812 = vunpack.c.h.b16 %v292
    %v4813 = vunpack.c.l.b16 %v293
    %v4814 = vunpack.c.h.b16 %v293
    %v4815 = vunpack.c.l.b16 %v294
    %v4816 = vunpack.c.h.b16 %v294
    %v4817 = vunpack.c.l.b16 %v295
    %v4818 = vunpack.c.h.b16 %v295
    %v4819 = vunpack.c.l.b16 %v296
    %v4820 = vunpack.c.h.b16 %v296
    %v4821 = vunpack.c.l.b16 %v297
    %v4822 = vunpack.c.h.b16 %v297
    %v4823 = vunpack.c.l.b16 %v298
    %v4824 = vunpack.c.h.b16 %v298
    %v4825 = vunpack.c.l.b16 %v299
    %v4826 = vunpack.c.h.b16 %v299
    %v4827 = vunpack.c.l.b16 %v300
    %v4828 = vunpack.c.h.b16 %v300
    %v4829 = vunpack.c.l.b16 %v301
    %v4830 = vunpack.c.h.b16 %v301
    %v4831 = vunpack.c.l.b16 %v302
    %v4832 = vunpack.c.h.b16 %v302
    %v4833 = vunpack.c.l.b16 %v303
    %v4834 = vunpack.c.h.b16 %v303
    %v4835 = vunpack.c.l.b16 %v304
    %v4836 = vunpack.c.h.b16 %v304
    %v4837 = vunpack.c.l.b16 %v305
    %v4838 = vunpack.c.h.b16 %v305
    %v4839 = vunpack.c.l.b16 %v306
    %v4840 = vunpack.c.h.b16 %v306
    %v4841 = vunpack.c.l.b16 %v307
    %v4842 = vunpack.c.h.b16 %v307
    %v4843 = vunpack.c.l.b16 %v308
    %v4844 = vunpack.c.h.b16 %v308
    %v4845 = vunpack.c.l.b16 %v309
    %v4846 = vunpack.c.h.b16 %v309
    %v4847 = vunpack.c.l.b16 %v310
    %v4848 = vunpack.c.h.b16 %v310
    %v4849 = vunpack.c.l.b16 %v311
    %v4850 = vunpack.c.h.b16 %v311
    %v4851 = vunpack.c.l.b16 %v312
    %v4852 = vunpack.c.h.b16 %v312
    %v4853 = vunpack.c.l.b16 %v313
    %v4854 = vunpack.c.h.b16 %v313
    %v4855 = vunpack.c.l.b16 %v314
    %v4856 = vunpack.c.h.b16 %v314
    %v4857 = vunpack.c.l.b16 %v315
    %v4858 = vunpack.c.h.b16 %v315
    %v4859 = vunpack.c.l.b16 %v316
    %v4860 = vunpack.c.h.b16 %v316
    %v4861 = vunpack.c.l.b16 %v317
    %v4862 = vunpack.c.h.b16 %v317
    %v4863 = vunpack.c.l.b16 %v318
    %v4864 = vunpack.c.h.b16 %v318
    %v4865 = vunpack.c.l.b16 %v319
    %v4866 = vunpack.c.h.b16 %v319
    %v4867 = vunpack.c.l.b16 %v320
    %v4868 = vunpack.c.h.b16 %v320
    %v4869 = vunpack.c.l.b16 %v321
    %v4870 = vunpack.c.h.b16 %v321
    %v4871 = vunpack.c.l.b16 %v322
    %v4872 = vunpack.c.h.b16 %v322
    %v4873 = vunpack.c.l.b16 %v323
    %v4874 = vunpack.c.h.b16 %v323
    %v4875 = vunpack.c.l.b16 %v324
    %v4876 = vunpack.c.h.b16 %v324
    %v4877 = vunpack.c.l.b16 %v325
    %v4878 = vunpack.c.h.b16 %v325
    %v4879 = vunpack.c.l.b16 %v326
    %v4880 = vunpack.c.h.b16 %v326
    %v4881 = vunpack.c.l.b16 %v327
    %v4882 = vunpack.c.h.b16 %v327
    %v4883 = vunpack.c.l.b16 %v328
    %v4884 = vunpack.c.h.b16 %v328
    %v4885 = vpack.c.b16 %v4761, %v4757
    %v4886 = vpack.c.b16 %v4762, %v4758
    %v4887 = vpack.c.b16 %v4763, %v4759
    %v4888 = vpack.c.b16 %v4764, %v4760
    %v4889 = vpack.c.b16 %v4769, %v4765
    %v4890 = vpack.c.b16 %v4770, %v4766
    %v4891 = vpack.c.b16 %v4771, %v4767
    %v4892 = vpack.c.b16 %v4772, %v4768
    %v4893 = vpack.c.b16 %v4777, %v4773
    %v4894 = vpack.c.b16 %v4778, %v4774
    %v4895 = vpack.c.b16 %v4779, %v4775
    %v4896 = vpack.c.b16 %v4780, %v4776
    %v4897 = vpack.c.b16 %v4785, %v4781
    %v4898 = vpack.c.b16 %v4786, %v4782
    %v4899 = vpack.c.b16 %v4787, %v4783
    %v4900 = vpack.c.b16 %v4788, %v4784
    %v4901 = vpack.c.b16 %v4793, %v4789
    %v4902 = vpack.c.b16 %v4794, %v4790
    %v4903 = vpack.c.b16 %v4795, %v4791
    %v4904 = vpack.c.b16 %v4796, %v4792
    %v4905 = vpack.c.b16 %v4801, %v4797
    %v4906 = vpack.c.b16 %v4802, %v4798
    %v4907 = vpack.c.b16 %v4803, %v4799
    %v4908 = vpack.c.b16 %v4804, %v4800
    %v4909 = vpack.c.b16 %v4809, %v4805
    %v4910 = vpack.c.b16 %v4810, %v4806
    %v4911 = vpack.c.b16 %v4811, %v4807
    %v4912 = vpack.c.b16 %v4812, %v4808
    %v4913 = vpack.c.b16 %v4817, %v4813
    %v4914 = vpack.c.b16 %v4818, %v4814
    %v4915 = vpack.c.b16 %v4819, %v4815
    %v4916 = vpack.c.b16 %v4820, %v4816
    %v4917 = vpack.c.b16 %v4825, %v4821
    %v4918 = vpack.c.b16 %v4826, %v4822
    %v4919 = vpack.c.b16 %v4827, %v4823
    %v4920 = vpack.c.b16 %v4828, %v4824
    %v4921 = vpack.c.b16 %v4833, %v4829
    %v4922 = vpack.c.b16 %v4834, %v4830
    %v4923 = vpack.c.b16 %v4835, %v4831
    %v4924 = vpack.c.b16 %v4836, %v4832
    %v4925 = vpack.c.b16 %v4841, %v4837
    %v4926 = vpack.c.b16 %v4842, %v4838
    %v4927 = vpack.c.b16 %v4843, %v4839
    %v4928 = vpack.c.b16 %v4844, %v4840
    %v4929 = vpack.c.b16 %v4849, %v4845
    %v4930 = vpack.c.b16 %v4850, %v4846
    %v4931 = vpack.c.b16 %v4851, %v4847
    %v4932 = vpack.c.b16 %v4852, %v4848
    %v4933 = vpack.c.b16 %v4857, %v4853
    %v4934 = vpack.c.b16 %v4858, %v4854
    %v4935 = vpack.c.b16 %v4859, %v4855
    %v4936 = vpack.c.b16 %v4860, %v4856
    %v4937 = vpack.c.b16 %v4865, %v4861
    %v4938 = vpack.c.b16 %v4866, %v4862
    %v4939 = vpack.c.b16 %v4867, %v4863
    %v4940 = vpack.c.b16 %v4868, %v4864
    %v4941 = vpack.c.b16 %v4873, %v4869
    %v4942 = vpack.c.b16 %v4874, %v4870
    %v4943 = vpack.c.b16 %v4875, %v4871
    %v4944 = vpack.c.b16 %v4876, %v4872
    %v4945 = vpack.c.b16 %v4881, %v4877
    %v4946 = vpack.c.b16 %v4882, %v4878
    %v4947 = vpack.c.b16 %v4883, %v4879
    %v4948 = vpack.c.b16 %v4884, %v4880
    %5013 = vmatprep.subr.bf16.mxu0 %v4914
    %5014 = vmatpush1.bf16.msra.mxu0 %v4913
    %5015 = vmatprep.subr.bf16.mxu0 %v4910
    %5016 = vmatpush1.bf16.msra.mxu0 %v4909
    %5017 = vmatprep.subr.bf16.mxu0 %v4906
    %5018 = vmatpush1.bf16.msra.mxu0 %v4905
    %5019 = vmatprep.subr.bf16.mxu0 %v4902
    %5020 = vmatpush1.bf16.msra.mxu0 %v4901
    %5021 = vmatprep.subr.bf16.mxu0 %v4898
    %5022 = vmatpush1.bf16.msra.mxu0 %v4897
    %5023 = vmatprep.subr.bf16.mxu0 %v4894
    %5024 = vmatpush1.bf16.msra.mxu0 %v4893
    %5025 = vmatprep.subr.bf16.mxu0 %v4890
    %5026 = vmatpush1.bf16.msra.mxu0 %v4889
    %5027 = vmatprep.subr.bf16.mxu0 %v4886
    %5028 = vmatpush1.bf16.msra.mxu0 %v4885
    %5029 = vmatprep.subr.bf16.mxu0 %v4946
    %5030 = vmatpush2.bf16.msra.mxu0 %v4945
    %5031 = vmatprep.subr.bf16.mxu0 %v4942
    %5032 = vmatpush2.bf16.msra.mxu0 %v4941
    %5033 = vmatprep.subr.bf16.mxu0 %v4938
    %5034 = vmatpush2.bf16.msra.mxu0 %v4937
    %5035 = vmatprep.subr.bf16.mxu0 %v4934
    %5036 = vmatpush2.bf16.msra.mxu0 %v4933
    %5037 = vmatprep.subr.bf16.mxu0 %v4930
    %5038 = vmatpush2.bf16.msra.mxu0 %v4929
    %5039 = vmatprep.subr.bf16.mxu0 %v4926
    %5040 = vmatpush2.bf16.msra.mxu0 %v4925
    %5041 = vmatprep.subr.bf16.mxu0 %v4922
    %5042 = vmatpush2.bf16.msra.mxu0 %v4921
    %5043 = vmatprep.subr.bf16.mxu0 %v4918
    %5044 = vmatpush2.bf16.msra.mxu0 %v4917
    %5045 = vmatprep.mubr.bf16.mxu0 %v4690
    %5046 = vmatmul.mubr.bf16.gmra.mxu0 %v4689
    %v5047 = vpop.f32.mrf.mxu0
    %v5048 = vadd.f32 %v4631, %v5047
    %v5049 = vpop.f32.mrf.mxu0
    %v5050 = vpop.f32.mrf.mxu0
    %v5051 = vpop.f32.mrf.mxu0
    %5052 = vdwg.mxu0
    %5053 = vmatprep.subr.bf16.mxu0 %v4916
    %5054 = vmatpush1.bf16.msra.mxu0 %v4915
    %5055 = vmatprep.subr.bf16.mxu0 %v4912
    %5056 = vmatpush1.bf16.msra.mxu0 %v4911
    %5057 = vmatprep.subr.bf16.mxu0 %v4908
    %5058 = vmatpush1.bf16.msra.mxu0 %v4907
    %5059 = vmatprep.subr.bf16.mxu0 %v4904
    %5060 = vmatpush1.bf16.msra.mxu0 %v4903
    %5061 = vmatprep.subr.bf16.mxu0 %v4900
    %5062 = vmatpush1.bf16.msra.mxu0 %v4899
    %5063 = vmatprep.subr.bf16.mxu0 %v4896
    %5064 = vmatpush1.bf16.msra.mxu0 %v4895
    %5065 = vmatprep.subr.bf16.mxu0 %v4892
    %5066 = vmatpush1.bf16.msra.mxu0 %v4891
    %5067 = vmatprep.subr.bf16.mxu0 %v4888
    %5068 = vmatpush1.bf16.msra.mxu0 %v4887
    %5069 = vmatprep.subr.bf16.mxu0 %v4948
    %5070 = vmatpush2.bf16.msra.mxu0 %v4947
    %5071 = vmatprep.subr.bf16.mxu0 %v4944
    %5072 = vmatpush2.bf16.msra.mxu0 %v4943
    %5073 = vmatprep.subr.bf16.mxu0 %v4940
    %5074 = vmatpush2.bf16.msra.mxu0 %v4939
    %5075 = vmatprep.subr.bf16.mxu0 %v4936
    %5076 = vmatpush2.bf16.msra.mxu0 %v4935
    %5077 = vmatprep.subr.bf16.mxu0 %v4932
    %5078 = vmatpush2.bf16.msra.mxu0 %v4931
    %5079 = vmatprep.subr.bf16.mxu0 %v4928
    %5080 = vmatpush2.bf16.msra.mxu0 %v4927
    %5081 = vmatprep.subr.bf16.mxu0 %v4924
    %5082 = vmatpush2.bf16.msra.mxu0 %v4923
    %5083 = vmatprep.subr.bf16.mxu0 %v4920
    %5084 = vmatpush2.bf16.msra.mxu0 %v4919
    %5085 = vmatprep.mubr.bf16.mxu0 %v4690
    %5086 = vmatmul.mubr.bf16.gmra.mxu0 %v4689
    %v5087 = vpop.f32.mrf.mxu0
    %v5088 = vadd.f32 %v4635, %v5087
    %v5089 = vpop.f32.mrf.mxu0
    %v5090 = vadd.f32 %v4639, %v5089
    %v5091 = vpop.f32.mrf.mxu0
    %v5092 = vpop.f32.mrf.mxu0
    %5093 = vdwg.mxu0
    %v5094 = vmul.f32 %v5048, 0.5
    %v5095 = vtanh.pop %v5094
    %v5096 = vadd.f32 %v5095, 1.0
    %v5097 = vmul.f32 %v5096, 0.5
    %v5098 = vtanh.pop %v5088
    %v5099 = vmul.f32 %v5090, 0.5
    %v5100 = vtanh.pop %v5099
    %v5101 = vadd.f32 %v5100, 1.0
    %v5102 = vmul.f32 %v5101, 0.5
    %v5103 = vmul.f32 %v5097, %v5098
    %v5104 = vtanh.pop %v5103
    %v5105 = vmul.f32 %v5102, %v5104
    %v5106 = vpack.c.bf16 %v5105, %v5105
    %v5123 = vunpack.c.l.b16 %v247
    %v5124 = vunpack.c.l.b16 %v248
    %v5125 = vunpack.c.l.b16 %v249
    %v5126 = vunpack.c.l.b16 %v250
    %v5127 = vunpack.c.l.b16 %v251
    %v5128 = vunpack.c.l.b16 %v252
    %v5129 = vunpack.c.l.b16 %v253
    %v5130 = vunpack.c.l.b16 %v254
    %v5131 = vunpack.c.l.b16 %v255
    %v5132 = vunpack.c.l.b16 %v256
    %v5133 = vunpack.c.l.b16 %v257
    %v5134 = vunpack.c.l.b16 %v258
    %v5135 = vunpack.c.l.b16 %v259
    %v5136 = vunpack.c.l.b16 %v260
    %v5137 = vunpack.c.l.b16 %v261
    %v5138 = vunpack.c.l.b16 %v262
    %v5139 = vpack.c.b16 %v5124, %v5123
    %v5140 = vpack.c.b16 %v5126, %v5125
    %v5141 = vpack.c.b16 %v5128, %v5127
    %v5142 = vpack.c.b16 %v5130, %v5129
    %v5143 = vpack.c.b16 %v5132, %v5131
    %v5144 = vpack.c.b16 %v5134, %v5133
    %v5145 = vpack.c.b16 %v5136, %v5135
    %v5146 = vpack.c.b16 %v5138, %v5137
    %5155 = vmatprep.subr.bf16.mxu0 0
    %5156 = vmatpush1.bf16.msra.mxu0 %v5146
    %5157 = vmatprep.subr.bf16.mxu0 0
    %5158 = vmatpush1.bf16.msra.mxu0 %v5145
    %5159 = vmatprep.subr.bf16.mxu0 0
    %5160 = vmatpush1.bf16.msra.mxu0 %v5144
    %5161 = vmatprep.subr.bf16.mxu0 0
    %5162 = vmatpush1.bf16.msra.mxu0 %v5143
    %5163 = vmatprep.subr.bf16.mxu0 0
    %5164 = vmatpush1.bf16.msra.mxu0 %v5142
    %5165 = vmatprep.subr.bf16.mxu0 0
    %5166 = vmatpush1.bf16.msra.mxu0 %v5141
    %5167 = vmatprep.subr.bf16.mxu0 0
    %5168 = vmatpush1.bf16.msra.mxu0 %v5140
    %5169 = vmatprep.subr.bf16.mxu0 0
    %5170 = vmatpush1.bf16.msra.mxu0 %v5139
    %5171 = vmatprep.subr.bf16.mxu0 0
    %5172 = vmatpush2.bf16.msra.mxu0 0
    %5173 = vmatprep.subr.bf16.mxu0 0
    %5174 = vmatpush2.bf16.msra.mxu0 0
    %5175 = vmatprep.subr.bf16.mxu0 0
    %5176 = vmatpush2.bf16.msra.mxu0 0
    %5177 = vmatprep.subr.bf16.mxu0 0
    %5178 = vmatpush2.bf16.msra.mxu0 0
    %5179 = vmatprep.subr.bf16.mxu0 0
    %5180 = vmatpush2.bf16.msra.mxu0 0
    %5181 = vmatprep.subr.bf16.mxu0 0
    %5182 = vmatpush2.bf16.msra.mxu0 0
    %5183 = vmatprep.subr.bf16.mxu0 0
    %5184 = vmatpush2.bf16.msra.mxu0 0
    %5185 = vmatprep.subr.bf16.mxu0 0
    %5186 = vmatpush2.bf16.msra.mxu0 0
    %5187 = vmatprep.mubr.bf16.mxu0 0
    %5188 = vmatmul.mubr.bf16.gmra.mxu0 %v5106
    %v5189 = vpop.f32.mrf.mxu0
    %v5190 = vadd.f32 %v1752, %v5189
    %v5191 = vpop.f32.mrf.mxu0
    %v5192 = vpop.f32.mrf.mxu0
    %v5193 = vpop.f32.mrf.mxu0
    %5194 = vdwg.mxu0
    %v5196 = vcombine.high %v5190, %v5190
    %v5198 = vunpack.c.l.s4 1966171168
    %v5199 = vunpack.c.0.s8 %v5198
    %v5200 = vlaneseq
    %v5201 = vshrl.u32 %v5200, 7
    %v5202 = vsub.s32 %v5199, %v5201
    %v5203 = vrot.slane %v5190, %v5202
    %v5205 = vunpack.c.l.s4 1966171168
    %v5206 = vunpack.c.0.s8 %v5205
    %v5207 = vlaneseq
    %v5208 = vshrl.u32 %v5207, 7
    %v5209 = vsub.s32 %v5206, %v5208
    %v5210 = vrot.slane %v5196, %v5209
    %v5211 = vcombine.high %v5203, %v5203
    %v5212 = vcombine.high %v5210, %v5210
    %v5214 = vunpack.c.l.s4 1966171168
    %v5215 = vunpack.c.0.s8 %v5214
    %v5216 = vlaneseq
    %v5217 = vshrl.u32 %v5216, 7
    %v5218 = vsub.s32 %v5215, %v5217
    %v5219 = vrot.slane %v5203, %v5218
    %v5221 = vunpack.c.l.s4 1966171168
    %v5222 = vunpack.c.0.s8 %v5221
    %v5223 = vlaneseq
    %v5224 = vshrl.u32 %v5223, 7
    %v5225 = vsub.s32 %v5222, %v5224
    %v5226 = vrot.slane %v5210, %v5225
    %v5228 = vunpack.c.l.s4 1966171168
    %v5229 = vunpack.c.0.s8 %v5228
    %v5230 = vlaneseq
    %v5231 = vshrl.u32 %v5230, 7
    %v5232 = vsub.s32 %v5229, %v5231
    %v5233 = vrot.slane %v5211, %v5232
    %v5235 = vunpack.c.l.s4 1966171168
    %v5236 = vunpack.c.0.s8 %v5235
    %v5237 = vlaneseq
    %v5238 = vshrl.u32 %v5237, 7
    %v5239 = vsub.s32 %v5236, %v5238
    %v5240 = vrot.slane %v5212, %v5239
    %v5241 = vcombine.high %v5219, %v5219
    %v5242 = vcombine.high %v5226, %v5226
    %v5243 = vcombine.high %v5233, %v5233
    %v5244 = vcombine.high %v5240, %v5240
    %v5245 = vlaneseq
    %v5246 = vshrl.u32 %v5245, 7
    %v5247 = vsub.s32 0, %v5246
    %v5248 = vrot.slane %v5219, %v5247
    %v5249 = vlaneseq
    %v5250 = vshrl.u32 %v5249, 7
    %v5251 = vsub.s32 0, %v5250
    %v5252 = vrot.slane %v5233, %v5251
    %v5253 = vlaneseq
    %v5254 = vshrl.u32 %v5253, 7
    %v5255 = vsub.s32 0, %v5254
    %v5256 = vrot.slane %v5241, %v5255
    %v5257 = vlaneseq
    %v5258 = vshrl.u32 %v5257, 7
    %v5259 = vsub.s32 0, %v5258
    %v5260 = vrot.slane %v5243, %v5259
    %v5261 = vlaneseq
    %v5262 = vshrl.u32 %v5261, 7
    %v5263 = vsub.s32 0, %v5262
    %v5264 = vrot.slane %v5226, %v5263
    %v5265 = vlaneseq
    %v5266 = vshrl.u32 %v5265, 7
    %v5267 = vsub.s32 0, %v5266
    %v5268 = vrot.slane %v5240, %v5267
    %v5269 = vlaneseq
    %v5270 = vshrl.u32 %v5269, 7
    %v5271 = vsub.s32 0, %v5270
    %v5272 = vrot.slane %v5242, %v5271
    %v5273 = vlaneseq
    %v5274 = vshrl.u32 %v5273, 7
    %v5275 = vsub.s32 0, %v5274
    %v5276 = vrot.slane %v5244, %v5275
    %v5285 = vadd.f32 %v1617, %v5248
    %v5286 = vadd.f32 %v1618, %v5248
    %v5287 = vadd.f32 %v1619, %v5248
    %v5288 = vadd.f32 %v1620, %v5248
    %v5289 = vadd.f32 %v1621, %v5248
    %v5290 = vadd.f32 %v1622, %v5248
    %v5291 = vadd.f32 %v1623, %v5248
    %v5292 = vadd.f32 %v1624, %v5248
    %v5293 = vadd.f32 %v1625, %v5248
    %v5294 = vadd.f32 %v1626, %v5248
    %v5295 = vadd.f32 %v1627, %v5248
    %v5296 = vadd.f32 %v1628, %v5248
    %v5297 = vadd.f32 %v1629, %v5248
    %v5298 = vadd.f32 %v1630, %v5248
    %v5299 = vadd.f32 %v1631, %v5248
    %v5300 = vadd.f32 %v1632, %v5248
    %v5301 = vadd.f32 %v1633, %v5252
    %v5302 = vadd.f32 %v1634, %v5252
    %v5303 = vadd.f32 %v1635, %v5252
    %v5304 = vadd.f32 %v1636, %v5252
    %v5305 = vadd.f32 %v1637, %v5252
    %v5306 = vadd.f32 %v1638, %v5252
    %v5307 = vadd.f32 %v1639, %v5252
    %v5308 = vadd.f32 %v1640, %v5252
    %v5309 = vadd.f32 %v1641, %v5252
    %v5310 = vadd.f32 %v1642, %v5252
    %v5311 = vadd.f32 %v1643, %v5252
    %v5312 = vadd.f32 %v1644, %v5252
    %v5313 = vadd.f32 %v1645, %v5252
    %v5314 = vadd.f32 %v1646, %v5252
    %v5315 = vadd.f32 %v1647, %v5252
    %v5316 = vadd.f32 %v1648, %v5252
    %v5317 = vadd.f32 %v1649, %v5256
    %v5318 = vadd.f32 %v1650, %v5256
    %v5319 = vadd.f32 %v1651, %v5256
    %v5320 = vadd.f32 %v1652, %v5256
    %v5321 = vadd.f32 %v1653, %v5256
    %v5322 = vadd.f32 %v1654, %v5256
    %v5323 = vadd.f32 %v1655, %v5256
    %v5324 = vadd.f32 %v1656, %v5256
    %v5325 = vadd.f32 %v1657, %v5256
    %v5326 = vadd.f32 %v1658, %v5256
    %v5327 = vadd.f32 %v1659, %v5256
    %v5328 = vadd.f32 %v1660, %v5256
    %v5329 = vadd.f32 %v1661, %v5256
    %v5330 = vadd.f32 %v1662, %v5256
    %v5331 = vadd.f32 %v1663, %v5256
    %v5332 = vadd.f32 %v1664, %v5256
    %v5333 = vadd.f32 %v1665, %v5260
    %v5334 = vadd.f32 %v1666, %v5260
    %v5335 = vadd.f32 %v1667, %v5260
    %v5336 = vadd.f32 %v1668, %v5260
    %v5337 = vadd.f32 %v1669, %v5260
    %v5338 = vadd.f32 %v1670, %v5260
    %v5339 = vadd.f32 %v1671, %v5260
    %v5340 = vadd.f32 %v1672, %v5260
    %v5341 = vadd.f32 %v1673, %v5260
    %v5342 = vadd.f32 %v1674, %v5260
    %v5343 = vadd.f32 %v1675, %v5260
    %v5344 = vadd.f32 %v1676, %v5260
    %v5345 = vadd.f32 %v1677, %v5260
    %v5346 = vadd.f32 %v1678, %v5260
    %v5347 = vadd.f32 %v1679, %v5260
    %v5348 = vadd.f32 %v1680, %v5260
    %v5349 = vadd.f32 %v1681, %v5264
    %v5350 = vadd.f32 %v1682, %v5264
    %v5351 = vadd.f32 %v1683, %v5264
    %v5352 = vadd.f32 %v1684, %v5264
    %v5353 = vadd.f32 %v1685, %v5264
    %v5354 = vadd.f32 %v1686, %v5264
    %v5355 = vadd.f32 %v1687, %v5264
    %v5356 = vadd.f32 %v1688, %v5264
    %v5357 = vadd.f32 %v1689, %v5264
    %v5358 = vadd.f32 %v1690, %v5264
    %v5359 = vadd.f32 %v1691, %v5264
    %v5360 = vadd.f32 %v1692, %v5264
    %v5361 = vadd.f32 %v1693, %v5264
    %v5362 = vadd.f32 %v1694, %v5264
    %v5363 = vadd.f32 %v1695, %v5264
    %v5364 = vadd.f32 %v1696, %v5264
    %v5365 = vadd.f32 %v1697, %v5268
    %v5366 = vadd.f32 %v1698, %v5268
    %v5367 = vadd.f32 %v1699, %v5268
    %v5368 = vadd.f32 %v1700, %v5268
    %v5369 = vadd.f32 %v1701, %v5268
    %v5370 = vadd.f32 %v1702, %v5268
    %v5371 = vadd.f32 %v1703, %v5268
    %v5372 = vadd.f32 %v1704, %v5268
    %v5373 = vadd.f32 %v1705, %v5268
    %v5374 = vadd.f32 %v1706, %v5268
    %v5375 = vadd.f32 %v1707, %v5268
    %v5376 = vadd.f32 %v1708, %v5268
    %v5377 = vadd.f32 %v1709, %v5268
    %v5378 = vadd.f32 %v1710, %v5268
    %v5379 = vadd.f32 %v1711, %v5268
    %v5380 = vadd.f32 %v1712, %v5268
    %v5381 = vadd.f32 %v1713, %v5272
    %v5382 = vadd.f32 %v1714, %v5272
    %v5383 = vadd.f32 %v1715, %v5272
    %v5384 = vadd.f32 %v1716, %v5272
    %v5385 = vadd.f32 %v1717, %v5272
    %v5386 = vadd.f32 %v1718, %v5272
    %v5387 = vadd.f32 %v1719, %v5272
    %v5388 = vadd.f32 %v1720, %v5272
    %v5389 = vadd.f32 %v1721, %v5272
    %v5390 = vadd.f32 %v1722, %v5272
    %v5391 = vadd.f32 %v1723, %v5272
    %v5392 = vadd.f32 %v1724, %v5272
    %v5393 = vadd.f32 %v1725, %v5272
    %v5394 = vadd.f32 %v1726, %v5272
    %v5395 = vadd.f32 %v1727, %v5272
    %v5396 = vadd.f32 %v1728, %v5272
    %v5397 = vadd.f32 %v1729, %v5276
    %v5398 = vadd.f32 %v1730, %v5276
    %v5399 = vadd.f32 %v1731, %v5276
    %v5400 = vadd.f32 %v1732, %v5276
    %v5401 = vadd.f32 %v1733, %v5276
    %v5402 = vadd.f32 %v1734, %v5276
    %v5403 = vadd.f32 %v1735, %v5276
    %v5404 = vadd.f32 %v1736, %v5276
    %v5405 = vadd.f32 %v1737, %v5276
    %v5406 = vadd.f32 %v1738, %v5276
    %v5407 = vadd.f32 %v1739, %v5276
    %v5408 = vadd.f32 %v1740, %v5276
    %v5409 = vadd.f32 %v1741, %v5276
    %v5410 = vadd.f32 %v1742, %v5276
    %v5411 = vadd.f32 %v1743, %v5276
    %v5412 = vadd.f32 %v1744, %v5276
    %v5413 = vtanh.pop %v5285
    %v5414 = vtanh.pop %v5286
    %v5415 = vtanh.pop %v5287
    %v5416 = vtanh.pop %v5288
    %v5417 = vtanh.pop %v5289
    %v5418 = vtanh.pop %v5290
    %v5419 = vtanh.pop %v5291
    %v5420 = vtanh.pop %v5292
    %v5421 = vtanh.pop %v5293
    %v5422 = vtanh.pop %v5294
    %v5423 = vtanh.pop %v5295
    %v5424 = vtanh.pop %v5296
    %v5425 = vtanh.pop %v5297
    %v5426 = vtanh.pop %v5298
    %v5427 = vtanh.pop %v5299
    %v5428 = vtanh.pop %v5300
    %v5429 = vtanh.pop %v5301
    %v5430 = vtanh.pop %v5302
    %v5431 = vtanh.pop %v5303
    %v5432 = vtanh.pop %v5304
    %v5433 = vtanh.pop %v5305
    %v5434 = vtanh.pop %v5306
    %v5435 = vtanh.pop %v5307
    %v5436 = vtanh.pop %v5308
    %v5437 = vtanh.pop %v5309
    %v5438 = vtanh.pop %v5310
    %v5439 = vtanh.pop %v5311
    %v5440 = vtanh.pop %v5312
    %v5441 = vtanh.pop %v5313
    %v5442 = vtanh.pop %v5314
    %v5443 = vtanh.pop %v5315
    %v5444 = vtanh.pop %v5316
    %v5445 = vtanh.pop %v5317
    %v5446 = vtanh.pop %v5318
    %v5447 = vtanh.pop %v5319
    %v5448 = vtanh.pop %v5320
    %v5449 = vtanh.pop %v5321
    %v5450 = vtanh.pop %v5322
    %v5451 = vtanh.pop %v5323
    %v5452 = vtanh.pop %v5324
    %v5453 = vtanh.pop %v5325
    %v5454 = vtanh.pop %v5326
    %v5455 = vtanh.pop %v5327
    %v5456 = vtanh.pop %v5328
    %v5457 = vtanh.pop %v5329
    %v5458 = vtanh.pop %v5330
    %v5459 = vtanh.pop %v5331
    %v5460 = vtanh.pop %v5332
    %v5461 = vtanh.pop %v5333
    %v5462 = vtanh.pop %v5334
    %v5463 = vtanh.pop %v5335
    %v5464 = vtanh.pop %v5336
    %v5465 = vtanh.pop %v5337
    %v5466 = vtanh.pop %v5338
    %v5467 = vtanh.pop %v5339
    %v5468 = vtanh.pop %v5340
    %v5469 = vtanh.pop %v5341
    %v5470 = vtanh.pop %v5342
    %v5471 = vtanh.pop %v5343
    %v5472 = vtanh.pop %v5344
    %v5473 = vtanh.pop %v5345
    %v5474 = vtanh.pop %v5346
    %v5475 = vtanh.pop %v5347
    %v5476 = vtanh.pop %v5348
    %v5477 = vtanh.pop %v5349
    %v5478 = vtanh.pop %v5350
    %v5479 = vtanh.pop %v5351
    %v5480 = vtanh.pop %v5352
    %v5481 = vtanh.pop %v5353
    %v5482 = vtanh.pop %v5354
    %v5483 = vtanh.pop %v5355
    %v5484 = vtanh.pop %v5356
    %v5485 = vtanh.pop %v5357
    %v5486 = vtanh.pop %v5358
    %v5487 = vtanh.pop %v5359
    %v5488 = vtanh.pop %v5360
    %v5489 = vtanh.pop %v5361
    %v5490 = vtanh.pop %v5362
    %v5491 = vtanh.pop %v5363
    %v5492 = vtanh.pop %v5364
    %v5493 = vtanh.pop %v5365
    %v5494 = vtanh.pop %v5366
    %v5495 = vtanh.pop %v5367
    %v5496 = vtanh.pop %v5368
    %v5497 = vtanh.pop %v5369
    %v5498 = vtanh.pop %v5370
    %v5499 = vtanh.pop %v5371
    %v5500 = vtanh.pop %v5372
    %v5501 = vtanh.pop %v5373
    %v5502 = vtanh.pop %v5374
    %v5503 = vtanh.pop %v5375
    %v5504 = vtanh.pop %v5376
    %v5505 = vtanh.pop %v5377
    %v5506 = vtanh.pop %v5378
    %v5507 = vtanh.pop %v5379
    %v5508 = vtanh.pop %v5380
    %v5509 = vtanh.pop %v5381
    %v5510 = vtanh.pop %v5382
    %v5511 = vtanh.pop %v5383
    %v5512 = vtanh.pop %v5384
    %v5513 = vtanh.pop %v5385
    %v5514 = vtanh.pop %v5386
    %v5515 = vtanh.pop %v5387
    %v5516 = vtanh.pop %v5388
    %v5517 = vtanh.pop %v5389
    %v5518 = vtanh.pop %v5390
    %v5519 = vtanh.pop %v5391
    %v5520 = vtanh.pop %v5392
    %v5521 = vtanh.pop %v5393
    %v5522 = vtanh.pop %v5394
    %v5523 = vtanh.pop %v5395
    %v5524 = vtanh.pop %v5396
    %v5525 = vtanh.pop %v5397
    %v5526 = vtanh.pop %v5398
    %v5527 = vtanh.pop %v5399
    %v5528 = vtanh.pop %v5400
    %v5529 = vtanh.pop %v5401
    %v5530 = vtanh.pop %v5402
    %v5531 = vtanh.pop %v5403
    %v5532 = vtanh.pop %v5404
    %v5533 = vtanh.pop %v5405
    %v5534 = vtanh.pop %v5406
    %v5535 = vtanh.pop %v5407
    %v5536 = vtanh.pop %v5408
    %v5537 = vtanh.pop %v5409
    %v5538 = vtanh.pop %v5410
    %v5539 = vtanh.pop %v5411
    %v5540 = vtanh.pop %v5412
    %v5541 = vmul.f32 %v5413, %v2014
    %v5542 = vmul.f32 %v5414, %v2014
    %v5543 = vmul.f32 %v5415, %v2014
    %v5544 = vmul.f32 %v5416, %v2014
    %v5545 = vmul.f32 %v5417, %v2014
    %v5546 = vmul.f32 %v5418, %v2014
    %v5547 = vmul.f32 %v5419, %v2014
    %v5548 = vmul.f32 %v5420, %v2014
    %v5549 = vmul.f32 %v5421, %v2014
    %v5550 = vmul.f32 %v5422, %v2014
    %v5551 = vmul.f32 %v5423, %v2014
    %v5552 = vmul.f32 %v5424, %v2014
    %v5553 = vmul.f32 %v5425, %v2014
    %v5554 = vmul.f32 %v5426, %v2014
    %v5555 = vmul.f32 %v5427, %v2014
    %v5556 = vmul.f32 %v5428, %v2014
    %v5557 = vmul.f32 %v5429, %v2014
    %v5558 = vmul.f32 %v5430, %v2014
    %v5559 = vmul.f32 %v5431, %v2014
    %v5560 = vmul.f32 %v5432, %v2014
    %v5561 = vmul.f32 %v5433, %v2014
    %v5562 = vmul.f32 %v5434, %v2014
    %v5563 = vmul.f32 %v5435, %v2014
    %v5564 = vmul.f32 %v5436, %v2014
    %v5565 = vmul.f32 %v5437, %v2014
    %v5566 = vmul.f32 %v5438, %v2014
    %v5567 = vmul.f32 %v5439, %v2014
    %v5568 = vmul.f32 %v5440, %v2014
    %v5569 = vmul.f32 %v5441, %v2014
    %v5570 = vmul.f32 %v5442, %v2014
    %v5571 = vmul.f32 %v5443, %v2014
    %v5572 = vmul.f32 %v5444, %v2014
    %v5573 = vmul.f32 %v5445, %v2014
    %v5574 = vmul.f32 %v5446, %v2014
    %v5575 = vmul.f32 %v5447, %v2014
    %v5576 = vmul.f32 %v5448, %v2014
    %v5577 = vmul.f32 %v5449, %v2014
    %v5578 = vmul.f32 %v5450, %v2014
    %v5579 = vmul.f32 %v5451, %v2014
    %v5580 = vmul.f32 %v5452, %v2014
    %v5581 = vmul.f32 %v5453, %v2014
    %v5582 = vmul.f32 %v5454, %v2014
    %v5583 = vmul.f32 %v5455, %v2014
    %v5584 = vmul.f32 %v5456, %v2014
    %v5585 = vmul.f32 %v5457, %v2014
    %v5586 = vmul.f32 %v5458, %v2014
    %v5587 = vmul.f32 %v5459, %v2014
    %v5588 = vmul.f32 %v5460, %v2014
    %v5589 = vmul.f32 %v5461, %v2014
    %v5590 = vmul.f32 %v5462, %v2014
    %v5591 = vmul.f32 %v5463, %v2014
    %v5592 = vmul.f32 %v5464, %v2014
    %v5593 = vmul.f32 %v5465, %v2014
    %v5594 = vmul.f32 %v5466, %v2014
    %v5595 = vmul.f32 %v5467, %v2014
    %v5596 = vmul.f32 %v5468, %v2014
    %v5597 = vmul.f32 %v5469, %v2014
    %v5598 = vmul.f32 %v5470, %v2014
    %v5599 = vmul.f32 %v5471, %v2014
    %v5600 = vmul.f32 %v5472, %v2014
    %v5601 = vmul.f32 %v5473, %v2014
    %v5602 = vmul.f32 %v5474, %v2014
    %v5603 = vmul.f32 %v5475, %v2014
    %v5604 = vmul.f32 %v5476, %v2014
    %v5605 = vmul.f32 %v5477, %v2014
    %v5606 = vmul.f32 %v5478, %v2014
    %v5607 = vmul.f32 %v5479, %v2014
    %v5608 = vmul.f32 %v5480, %v2014
    %v5609 = vmul.f32 %v5481, %v2014
    %v5610 = vmul.f32 %v5482, %v2014
    %v5611 = vmul.f32 %v5483, %v2014
    %v5612 = vmul.f32 %v5484, %v2014
    %v5613 = vmul.f32 %v5485, %v2014
    %v5614 = vmul.f32 %v5486, %v2014
    %v5615 = vmul.f32 %v5487, %v2014
    %v5616 = vmul.f32 %v5488, %v2014
    %v5617 = vmul.f32 %v5489, %v2014
    %v5618 = vmul.f32 %v5490, %v2014
    %v5619 = vmul.f32 %v5491, %v2014
    %v5620 = vmul.f32 %v5492, %v2014
    %v5621 = vmul.f32 %v5493, %v2014
    %v5622 = vmul.f32 %v5494, %v2014
    %v5623 = vmul.f32 %v5495, %v2014
    %v5624 = vmul.f32 %v5496, %v2014
    %v5625 = vmul.f32 %v5497, %v2014
    %v5626 = vmul.f32 %v5498, %v2014
    %v5627 = vmul.f32 %v5499, %v2014
    %v5628 = vmul.f32 %v5500, %v2014
    %v5629 = vmul.f32 %v5501, %v2014
    %v5630 = vmul.f32 %v5502, %v2014
    %v5631 = vmul.f32 %v5503, %v2014
    %v5632 = vmul.f32 %v5504, %v2014
    %v5633 = vmul.f32 %v5505, %v2014
    %v5634 = vmul.f32 %v5506, %v2014
    %v5635 = vmul.f32 %v5507, %v2014
    %v5636 = vmul.f32 %v5508, %v2014
    %v5637 = vmul.f32 %v5509, %v2014
    %v5638 = vmul.f32 %v5510, %v2014
    %v5639 = vmul.f32 %v5511, %v2014
    %v5640 = vmul.f32 %v5512, %v2014
    %v5641 = vmul.f32 %v5513, %v2014
    %v5642 = vmul.f32 %v5514, %v2014
    %v5643 = vmul.f32 %v5515, %v2014
    %v5644 = vmul.f32 %v5516, %v2014
    %v5645 = vmul.f32 %v5517, %v2014
    %v5646 = vmul.f32 %v5518, %v2014
    %v5647 = vmul.f32 %v5519, %v2014
    %v5648 = vmul.f32 %v5520, %v2014
    %v5649 = vmul.f32 %v5521, %v2014
    %v5650 = vmul.f32 %v5522, %v2014
    %v5651 = vmul.f32 %v5523, %v2014
    %v5652 = vmul.f32 %v5524, %v2014
    %v5653 = vmul.f32 %v5525, %v2014
    %v5654 = vmul.f32 %v5526, %v2014
    %v5655 = vmul.f32 %v5527, %v2014
    %v5656 = vmul.f32 %v5528, %v2014
    %v5657 = vmul.f32 %v5529, %v2014
    %v5658 = vmul.f32 %v5530, %v2014
    %v5659 = vmul.f32 %v5531, %v2014
    %v5660 = vmul.f32 %v5532, %v2014
    %v5661 = vmul.f32 %v5533, %v2014
    %v5662 = vmul.f32 %v5534, %v2014
    %v5663 = vmul.f32 %v5535, %v2014
    %v5664 = vmul.f32 %v5536, %v2014
    %v5665 = vmul.f32 %v5537, %v2014
    %v5666 = vmul.f32 %v5538, %v2014
    %v5667 = vmul.f32 %v5539, %v2014
    %v5668 = vmul.f32 %v5540, %v2014
    %5669 = vadd.xlane.f32.xlu0 %v5541
    %v5670 = vpop.xlane.xlu0 %5669
    %5671 = vadd.xlane.f32.xlu0 %v5542
    %v5672 = vpop.xlane.xlu0 %5671
    %5673 = vadd.xlane.f32.xlu0 %v5543
    %v5674 = vpop.xlane.xlu0 %5673
    %5675 = vadd.xlane.f32.xlu0 %v5544
    %v5676 = vpop.xlane.xlu0 %5675
    %5677 = vadd.xlane.f32.xlu0 %v5545
    %v5678 = vpop.xlane.xlu0 %5677
    %5679 = vadd.xlane.f32.xlu0 %v5546
    %v5680 = vpop.xlane.xlu0 %5679
    %5681 = vadd.xlane.f32.xlu0 %v5547
    %v5682 = vpop.xlane.xlu0 %5681
    %5683 = vadd.xlane.f32.xlu0 %v5548
    %v5684 = vpop.xlane.xlu0 %5683
    %5685 = vadd.xlane.f32.xlu0 %v5549
    %v5686 = vpop.xlane.xlu0 %5685
    %5687 = vadd.xlane.f32.xlu0 %v5550
    %v5688 = vpop.xlane.xlu0 %5687
    %5689 = vadd.xlane.f32.xlu0 %v5551
    %v5690 = vpop.xlane.xlu0 %5689
    %5691 = vadd.xlane.f32.xlu0 %v5552
    %v5692 = vpop.xlane.xlu0 %5691
    %5693 = vadd.xlane.f32.xlu0 %v5553
    %v5694 = vpop.xlane.xlu0 %5693
    %5695 = vadd.xlane.f32.xlu0 %v5554
    %v5696 = vpop.xlane.xlu0 %5695
    %5697 = vadd.xlane.f32.xlu0 %v5555
    %v5698 = vpop.xlane.xlu0 %5697
    %5699 = vadd.xlane.f32.xlu0 %v5556
    %v5700 = vpop.xlane.xlu0 %5699
    %5701 = vadd.xlane.f32.xlu0 %v5557
    %v5702 = vpop.xlane.xlu0 %5701
    %5703 = vadd.xlane.f32.xlu0 %v5558
    %v5704 = vpop.xlane.xlu0 %5703
    %5705 = vadd.xlane.f32.xlu0 %v5559
    %v5706 = vpop.xlane.xlu0 %5705
    %5707 = vadd.xlane.f32.xlu0 %v5560
    %v5708 = vpop.xlane.xlu0 %5707
    %5709 = vadd.xlane.f32.xlu0 %v5561
    %v5710 = vpop.xlane.xlu0 %5709
    %5711 = vadd.xlane.f32.xlu0 %v5562
    %v5712 = vpop.xlane.xlu0 %5711
    %5713 = vadd.xlane.f32.xlu0 %v5563
    %v5714 = vpop.xlane.xlu0 %5713
    %5715 = vadd.xlane.f32.xlu0 %v5564
    %v5716 = vpop.xlane.xlu0 %5715
    %5717 = vadd.xlane.f32.xlu0 %v5565
    %v5718 = vpop.xlane.xlu0 %5717
    %5719 = vadd.xlane.f32.xlu0 %v5566
    %v5720 = vpop.xlane.xlu0 %5719
    %5721 = vadd.xlane.f32.xlu0 %v5567
    %v5722 = vpop.xlane.xlu0 %5721
    %5723 = vadd.xlane.f32.xlu0 %v5568
    %v5724 = vpop.xlane.xlu0 %5723
    %5725 = vadd.xlane.f32.xlu0 %v5569
    %v5726 = vpop.xlane.xlu0 %5725
    %5727 = vadd.xlane.f32.xlu0 %v5570
    %v5728 = vpop.xlane.xlu0 %5727
    %5729 = vadd.xlane.f32.xlu0 %v5571
    %v5730 = vpop.xlane.xlu0 %5729
    %5731 = vadd.xlane.f32.xlu0 %v5572
    %v5732 = vpop.xlane.xlu0 %5731
    %5733 = vadd.xlane.f32.xlu0 %v5573
    %v5734 = vpop.xlane.xlu0 %5733
    %5735 = vadd.xlane.f32.xlu0 %v5574
    %v5736 = vpop.xlane.xlu0 %5735
    %5737 = vadd.xlane.f32.xlu0 %v5575
    %v5738 = vpop.xlane.xlu0 %5737
    %5739 = vadd.xlane.f32.xlu0 %v5576
    %v5740 = vpop.xlane.xlu0 %5739
    %5741 = vadd.xlane.f32.xlu0 %v5577
    %v5742 = vpop.xlane.xlu0 %5741
    %5743 = vadd.xlane.f32.xlu0 %v5578
    %v5744 = vpop.xlane.xlu0 %5743
    %5745 = vadd.xlane.f32.xlu0 %v5579
    %v5746 = vpop.xlane.xlu0 %5745
    %5747 = vadd.xlane.f32.xlu0 %v5580
    %v5748 = vpop.xlane.xlu0 %5747
    %5749 = vadd.xlane.f32.xlu0 %v5581
    %v5750 = vpop.xlane.xlu0 %5749
    %5751 = vadd.xlane.f32.xlu0 %v5582
    %v5752 = vpop.xlane.xlu0 %5751
    %5753 = vadd.xlane.f32.xlu0 %v5583
    %v5754 = vpop.xlane.xlu0 %5753
    %5755 = vadd.xlane.f32.xlu0 %v5584
    %v5756 = vpop.xlane.xlu0 %5755
    %5757 = vadd.xlane.f32.xlu0 %v5585
    %v5758 = vpop.xlane.xlu0 %5757
    %5759 = vadd.xlane.f32.xlu0 %v5586
    %v5760 = vpop.xlane.xlu0 %5759
    %5761 = vadd.xlane.f32.xlu0 %v5587
    %v5762 = vpop.xlane.xlu0 %5761
    %5763 = vadd.xlane.f32.xlu0 %v5588
    %v5764 = vpop.xlane.xlu0 %5763
    %5765 = vadd.xlane.f32.xlu0 %v5589
    %v5766 = vpop.xlane.xlu0 %5765
    %5767 = vadd.xlane.f32.xlu0 %v5590
    %v5768 = vpop.xlane.xlu0 %5767
    %5769 = vadd.xlane.f32.xlu0 %v5591
    %v5770 = vpop.xlane.xlu0 %5769
    %5771 = vadd.xlane.f32.xlu0 %v5592
    %v5772 = vpop.xlane.xlu0 %5771
    %5773 = vadd.xlane.f32.xlu0 %v5593
    %v5774 = vpop.xlane.xlu0 %5773
    %5775 = vadd.xlane.f32.xlu0 %v5594
    %v5776 = vpop.xlane.xlu0 %5775
    %5777 = vadd.xlane.f32.xlu0 %v5595
    %v5778 = vpop.xlane.xlu0 %5777
    %5779 = vadd.xlane.f32.xlu0 %v5596
    %v5780 = vpop.xlane.xlu0 %5779
    %5781 = vadd.xlane.f32.xlu0 %v5597
    %v5782 = vpop.xlane.xlu0 %5781
    %5783 = vadd.xlane.f32.xlu0 %v5598
    %v5784 = vpop.xlane.xlu0 %5783
    %5785 = vadd.xlane.f32.xlu0 %v5599
    %v5786 = vpop.xlane.xlu0 %5785
    %5787 = vadd.xlane.f32.xlu0 %v5600
    %v5788 = vpop.xlane.xlu0 %5787
    %5789 = vadd.xlane.f32.xlu0 %v5601
    %v5790 = vpop.xlane.xlu0 %5789
    %5791 = vadd.xlane.f32.xlu0 %v5602
    %v5792 = vpop.xlane.xlu0 %5791
    %5793 = vadd.xlane.f32.xlu0 %v5603
    %v5794 = vpop.xlane.xlu0 %5793
    %5795 = vadd.xlane.f32.xlu0 %v5604
    %v5796 = vpop.xlane.xlu0 %5795
    %5797 = vadd.xlane.f32.xlu0 %v5605
    %v5798 = vpop.xlane.xlu0 %5797
    %5799 = vadd.xlane.f32.xlu0 %v5606
    %v5800 = vpop.xlane.xlu0 %5799
    %5801 = vadd.xlane.f32.xlu0 %v5607
    %v5802 = vpop.xlane.xlu0 %5801
    %5803 = vadd.xlane.f32.xlu0 %v5608
    %v5804 = vpop.xlane.xlu0 %5803
    %5805 = vadd.xlane.f32.xlu0 %v5609
    %v5806 = vpop.xlane.xlu0 %5805
    %5807 = vadd.xlane.f32.xlu0 %v5610
    %v5808 = vpop.xlane.xlu0 %5807
    %5809 = vadd.xlane.f32.xlu0 %v5611
    %v5810 = vpop.xlane.xlu0 %5809
    %5811 = vadd.xlane.f32.xlu0 %v5612
    %v5812 = vpop.xlane.xlu0 %5811
    %5813 = vadd.xlane.f32.xlu0 %v5613
    %v5814 = vpop.xlane.xlu0 %5813
    %5815 = vadd.xlane.f32.xlu0 %v5614
    %v5816 = vpop.xlane.xlu0 %5815
    %5817 = vadd.xlane.f32.xlu0 %v5615
    %v5818 = vpop.xlane.xlu0 %5817
    %5819 = vadd.xlane.f32.xlu0 %v5616
    %v5820 = vpop.xlane.xlu0 %5819
    %5821 = vadd.xlane.f32.xlu0 %v5617
    %v5822 = vpop.xlane.xlu0 %5821
    %5823 = vadd.xlane.f32.xlu0 %v5618
    %v5824 = vpop.xlane.xlu0 %5823
    %5825 = vadd.xlane.f32.xlu0 %v5619
    %v5826 = vpop.xlane.xlu0 %5825
    %5827 = vadd.xlane.f32.xlu0 %v5620
    %v5828 = vpop.xlane.xlu0 %5827
    %5829 = vadd.xlane.f32.xlu0 %v5621
    %v5830 = vpop.xlane.xlu0 %5829
    %5831 = vadd.xlane.f32.xlu0 %v5622
    %v5832 = vpop.xlane.xlu0 %5831
    %5833 = vadd.xlane.f32.xlu0 %v5623
    %v5834 = vpop.xlane.xlu0 %5833
    %5835 = vadd.xlane.f32.xlu0 %v5624
    %v5836 = vpop.xlane.xlu0 %5835
    %5837 = vadd.xlane.f32.xlu0 %v5625
    %v5838 = vpop.xlane.xlu0 %5837
    %5839 = vadd.xlane.f32.xlu0 %v5626
    %v5840 = vpop.xlane.xlu0 %5839
    %5841 = vadd.xlane.f32.xlu0 %v5627
    %v5842 = vpop.xlane.xlu0 %5841
    %5843 = vadd.xlane.f32.xlu0 %v5628
    %v5844 = vpop.xlane.xlu0 %5843
    %5845 = vadd.xlane.f32.xlu0 %v5629
    %v5846 = vpop.xlane.xlu0 %5845
    %5847 = vadd.xlane.f32.xlu0 %v5630
    %v5848 = vpop.xlane.xlu0 %5847
    %5849 = vadd.xlane.f32.xlu0 %v5631
    %v5850 = vpop.xlane.xlu0 %5849
    %5851 = vadd.xlane.f32.xlu0 %v5632
    %v5852 = vpop.xlane.xlu0 %5851
    %5853 = vadd.xlane.f32.xlu0 %v5633
    %v5854 = vpop.xlane.xlu0 %5853
    %5855 = vadd.xlane.f32.xlu0 %v5634
    %v5856 = vpop.xlane.xlu0 %5855
    %5857 = vadd.xlane.f32.xlu0 %v5635
    %v5858 = vpop.xlane.xlu0 %5857
    %5859 = vadd.xlane.f32.xlu0 %v5636
    %v5860 = vpop.xlane.xlu0 %5859
    %5861 = vadd.xlane.f32.xlu0 %v5637
    %v5862 = vpop.xlane.xlu0 %5861
    %5863 = vadd.xlane.f32.xlu0 %v5638
    %v5864 = vpop.xlane.xlu0 %5863
    %5865 = vadd.xlane.f32.xlu0 %v5639
    %v5866 = vpop.xlane.xlu0 %5865
    %5867 = vadd.xlane.f32.xlu0 %v5640
    %v5868 = vpop.xlane.xlu0 %5867
    %5869 = vadd.xlane.f32.xlu0 %v5641
    %v5870 = vpop.xlane.xlu0 %5869
    %5871 = vadd.xlane.f32.xlu0 %v5642
    %v5872 = vpop.xlane.xlu0 %5871
    %5873 = vadd.xlane.f32.xlu0 %v5643
    %v5874 = vpop.xlane.xlu0 %5873
    %5875 = vadd.xlane.f32.xlu0 %v5644
    %v5876 = vpop.xlane.xlu0 %5875
    %5877 = vadd.xlane.f32.xlu0 %v5645
    %v5878 = vpop.xlane.xlu0 %5877
    %5879 = vadd.xlane.f32.xlu0 %v5646
    %v5880 = vpop.xlane.xlu0 %5879
    %5881 = vadd.xlane.f32.xlu0 %v5647
    %v5882 = vpop.xlane.xlu0 %5881
    %5883 = vadd.xlane.f32.xlu0 %v5648
    %v5884 = vpop.xlane.xlu0 %5883
    %5885 = vadd.xlane.f32.xlu0 %v5649
    %v5886 = vpop.xlane.xlu0 %5885
    %5887 = vadd.xlane.f32.xlu0 %v5650
    %v5888 = vpop.xlane.xlu0 %5887
    %5889 = vadd.xlane.f32.xlu0 %v5651
    %v5890 = vpop.xlane.xlu0 %5889
    %5891 = vadd.xlane.f32.xlu0 %v5652
    %v5892 = vpop.xlane.xlu0 %5891
    %5893 = vadd.xlane.f32.xlu0 %v5653
    %v5894 = vpop.xlane.xlu0 %5893
    %5895 = vadd.xlane.f32.xlu0 %v5654
    %v5896 = vpop.xlane.xlu0 %5895
    %5897 = vadd.xlane.f32.xlu0 %v5655
    %v5898 = vpop.xlane.xlu0 %5897
    %5899 = vadd.xlane.f32.xlu0 %v5656
    %v5900 = vpop.xlane.xlu0 %5899
    %5901 = vadd.xlane.f32.xlu0 %v5657
    %v5902 = vpop.xlane.xlu0 %5901
    %5903 = vadd.xlane.f32.xlu0 %v5658
    %v5904 = vpop.xlane.xlu0 %5903
    %5905 = vadd.xlane.f32.xlu0 %v5659
    %v5906 = vpop.xlane.xlu0 %5905
    %5907 = vadd.xlane.f32.xlu0 %v5660
    %v5908 = vpop.xlane.xlu0 %5907
    %5909 = vadd.xlane.f32.xlu0 %v5661
    %v5910 = vpop.xlane.xlu0 %5909
    %5911 = vadd.xlane.f32.xlu0 %v5662
    %v5912 = vpop.xlane.xlu0 %5911
    %5913 = vadd.xlane.f32.xlu0 %v5663
    %v5914 = vpop.xlane.xlu0 %5913
    %5915 = vadd.xlane.f32.xlu0 %v5664
    %v5916 = vpop.xlane.xlu0 %5915
    %5917 = vadd.xlane.f32.xlu0 %v5665
    %v5918 = vpop.xlane.xlu0 %5917
    %5919 = vadd.xlane.f32.xlu0 %v5666
    %v5920 = vpop.xlane.xlu0 %5919
    %5921 = vadd.xlane.f32.xlu0 %v5667
    %v5922 = vpop.xlane.xlu0 %5921
    %5923 = vadd.xlane.f32.xlu0 %v5668
    %v5924 = vpop.xlane.xlu0 %5923
    %v6053 = vlaneseq
    %v6054 = vshrl.u32 %v6053, 7
    %v6055 = vsub.s32 %v1746, %v6054
    %v6056 = vrot.slane %v5670, %v6055
    %v6057 = vlaneseq
    %v6058 = vshrl.u32 %v6057, 7
    %v6059 = vsub.s32 %v2534, %v6058
    %v6060 = vrot.slane %v5672, %v6059
    %v6061 = vsel %vm2539, %v6060, %v6056
    %v6062 = vlaneseq
    %v6063 = vshrl.u32 %v6062, 7
    %v6064 = vsub.s32 %v2541, %v6063
    %v6065 = vrot.slane %v5674, %v6064
    %v6066 = vsel %vm2546, %v6065, %v6061
    %v6067 = vlaneseq
    %v6068 = vshrl.u32 %v6067, 7
    %v6069 = vsub.s32 %v2548, %v6068
    %v6070 = vrot.slane %v5676, %v6069
    %v6071 = vsel %vm2553, %v6070, %v6066
    %v6072 = vlaneseq
    %v6073 = vshrl.u32 %v6072, 7
    %v6074 = vsub.s32 %v2555, %v6073
    %v6075 = vrot.slane %v5678, %v6074
    %v6076 = vsel %vm2560, %v6075, %v6071
    %v6077 = vlaneseq
    %v6078 = vshrl.u32 %v6077, 7
    %v6079 = vsub.s32 %v2562, %v6078
    %v6080 = vrot.slane %v5680, %v6079
    %v6081 = vsel %vm2567, %v6080, %v6076
    %v6082 = vlaneseq
    %v6083 = vshrl.u32 %v6082, 7
    %v6084 = vsub.s32 %v2569, %v6083
    %v6085 = vrot.slane %v5682, %v6084
    %v6086 = vsel %vm2574, %v6085, %v6081
    %v6087 = vlaneseq
    %v6088 = vshrl.u32 %v6087, 7
    %v6089 = vsub.s32 %v2576, %v6088
    %v6090 = vrot.slane %v5684, %v6089
    %v6091 = vsel %vm2581, %v6090, %v6086
    %v6092 = vlaneseq
    %v6093 = vshrl.u32 %v6092, 7
    %v6094 = vsub.s32 %v2583, %v6093
    %v6095 = vrot.slane %v5686, %v6094
    %v6096 = vsel %vm2588, %v6095, %v6091
    %v6097 = vlaneseq
    %v6098 = vshrl.u32 %v6097, 7
    %v6099 = vsub.s32 %v2590, %v6098
    %v6100 = vrot.slane %v5688, %v6099
    %v6101 = vsel %vm2595, %v6100, %v6096
    %v6102 = vlaneseq
    %v6103 = vshrl.u32 %v6102, 7
    %v6104 = vsub.s32 %v2597, %v6103
    %v6105 = vrot.slane %v5690, %v6104
    %v6106 = vsel %vm2602, %v6105, %v6101
    %v6107 = vlaneseq
    %v6108 = vshrl.u32 %v6107, 7
    %v6109 = vsub.s32 %v2604, %v6108
    %v6110 = vrot.slane %v5692, %v6109
    %v6111 = vsel %vm2609, %v6110, %v6106
    %v6112 = vlaneseq
    %v6113 = vshrl.u32 %v6112, 7
    %v6114 = vsub.s32 %v2611, %v6113
    %v6115 = vrot.slane %v5694, %v6114
    %v6116 = vsel %vm2616, %v6115, %v6111
    %v6117 = vlaneseq
    %v6118 = vshrl.u32 %v6117, 7
    %v6119 = vsub.s32 %v2618, %v6118
    %v6120 = vrot.slane %v5696, %v6119
    %v6121 = vsel %vm2623, %v6120, %v6116
    %v6122 = vlaneseq
    %v6123 = vshrl.u32 %v6122, 7
    %v6124 = vsub.s32 %v2625, %v6123
    %v6125 = vrot.slane %v5698, %v6124
    %v6126 = vsel %vm2630, %v6125, %v6121
    %v6127 = vlaneseq
    %v6128 = vshrl.u32 %v6127, 7
    %v6129 = vsub.s32 %v2632, %v6128
    %v6130 = vrot.slane %v5700, %v6129
    %v6131 = vsel %vm2637, %v6130, %v6126
    %v6132 = vlaneseq
    %v6133 = vshrl.u32 %v6132, 7
    %v6134 = vsub.s32 %v1746, %v6133
    %v6135 = vrot.slane %v5702, %v6134
    %v6136 = vlaneseq
    %v6137 = vshrl.u32 %v6136, 7
    %v6138 = vsub.s32 %v2534, %v6137
    %v6139 = vrot.slane %v5704, %v6138
    %v6140 = vsel %vm2539, %v6139, %v6135
    %v6141 = vlaneseq
    %v6142 = vshrl.u32 %v6141, 7
    %v6143 = vsub.s32 %v2541, %v6142
    %v6144 = vrot.slane %v5706, %v6143
    %v6145 = vsel %vm2546, %v6144, %v6140
    %v6146 = vlaneseq
    %v6147 = vshrl.u32 %v6146, 7
    %v6148 = vsub.s32 %v2548, %v6147
    %v6149 = vrot.slane %v5708, %v6148
    %v6150 = vsel %vm2553, %v6149, %v6145
    %v6151 = vlaneseq
    %v6152 = vshrl.u32 %v6151, 7
    %v6153 = vsub.s32 %v2555, %v6152
    %v6154 = vrot.slane %v5710, %v6153
    %v6155 = vsel %vm2560, %v6154, %v6150
    %v6156 = vlaneseq
    %v6157 = vshrl.u32 %v6156, 7
    %v6158 = vsub.s32 %v2562, %v6157
    %v6159 = vrot.slane %v5712, %v6158
    %v6160 = vsel %vm2567, %v6159, %v6155
    %v6161 = vlaneseq
    %v6162 = vshrl.u32 %v6161, 7
    %v6163 = vsub.s32 %v2569, %v6162
    %v6164 = vrot.slane %v5714, %v6163
    %v6165 = vsel %vm2574, %v6164, %v6160
    %v6166 = vlaneseq
    %v6167 = vshrl.u32 %v6166, 7
    %v6168 = vsub.s32 %v2576, %v6167
    %v6169 = vrot.slane %v5716, %v6168
    %v6170 = vsel %vm2581, %v6169, %v6165
    %v6171 = vlaneseq
    %v6172 = vshrl.u32 %v6171, 7
    %v6173 = vsub.s32 %v2583, %v6172
    %v6174 = vrot.slane %v5718, %v6173
    %v6175 = vsel %vm2588, %v6174, %v6170
    %v6176 = vlaneseq
    %v6177 = vshrl.u32 %v6176, 7
    %v6178 = vsub.s32 %v2590, %v6177
    %v6179 = vrot.slane %v5720, %v6178
    %v6180 = vsel %vm2595, %v6179, %v6175
    %v6181 = vlaneseq
    %v6182 = vshrl.u32 %v6181, 7
    %v6183 = vsub.s32 %v2597, %v6182
    %v6184 = vrot.slane %v5722, %v6183
    %v6185 = vsel %vm2602, %v6184, %v6180
    %v6186 = vlaneseq
    %v6187 = vshrl.u32 %v6186, 7
    %v6188 = vsub.s32 %v2604, %v6187
    %v6189 = vrot.slane %v5724, %v6188
    %v6190 = vsel %vm2609, %v6189, %v6185
    %v6191 = vlaneseq
    %v6192 = vshrl.u32 %v6191, 7
    %v6193 = vsub.s32 %v2611, %v6192
    %v6194 = vrot.slane %v5726, %v6193
    %v6195 = vsel %vm2616, %v6194, %v6190
    %v6196 = vlaneseq
    %v6197 = vshrl.u32 %v6196, 7
    %v6198 = vsub.s32 %v2618, %v6197
    %v6199 = vrot.slane %v5728, %v6198
    %v6200 = vsel %vm2623, %v6199, %v6195
    %v6201 = vlaneseq
    %v6202 = vshrl.u32 %v6201, 7
    %v6203 = vsub.s32 %v2625, %v6202
    %v6204 = vrot.slane %v5730, %v6203
    %v6205 = vsel %vm2630, %v6204, %v6200
    %v6206 = vlaneseq
    %v6207 = vshrl.u32 %v6206, 7
    %v6208 = vsub.s32 %v2632, %v6207
    %v6209 = vrot.slane %v5732, %v6208
    %v6210 = vsel %vm2637, %v6209, %v6205
    %v6211 = vlaneseq
    %v6212 = vshrl.u32 %v6211, 7
    %v6213 = vsub.s32 %v1746, %v6212
    %v6214 = vrot.slane %v5734, %v6213
    %v6215 = vlaneseq
    %v6216 = vshrl.u32 %v6215, 7
    %v6217 = vsub.s32 %v2534, %v6216
    %v6218 = vrot.slane %v5736, %v6217
    %v6219 = vsel %vm2539, %v6218, %v6214
    %v6220 = vlaneseq
    %v6221 = vshrl.u32 %v6220, 7
    %v6222 = vsub.s32 %v2541, %v6221
    %v6223 = vrot.slane %v5738, %v6222
    %v6224 = vsel %vm2546, %v6223, %v6219
    %v6225 = vlaneseq
    %v6226 = vshrl.u32 %v6225, 7
    %v6227 = vsub.s32 %v2548, %v6226
    %v6228 = vrot.slane %v5740, %v6227
    %v6229 = vsel %vm2553, %v6228, %v6224
    %v6230 = vlaneseq
    %v6231 = vshrl.u32 %v6230, 7
    %v6232 = vsub.s32 %v2555, %v6231
    %v6233 = vrot.slane %v5742, %v6232
    %v6234 = vsel %vm2560, %v6233, %v6229
    %v6235 = vlaneseq
    %v6236 = vshrl.u32 %v6235, 7
    %v6237 = vsub.s32 %v2562, %v6236
    %v6238 = vrot.slane %v5744, %v6237
    %v6239 = vsel %vm2567, %v6238, %v6234
    %v6240 = vlaneseq
    %v6241 = vshrl.u32 %v6240, 7
    %v6242 = vsub.s32 %v2569, %v6241
    %v6243 = vrot.slane %v5746, %v6242
    %v6244 = vsel %vm2574, %v6243, %v6239
    %v6245 = vlaneseq
    %v6246 = vshrl.u32 %v6245, 7
    %v6247 = vsub.s32 %v2576, %v6246
    %v6248 = vrot.slane %v5748, %v6247
    %v6249 = vsel %vm2581, %v6248, %v6244
    %v6250 = vlaneseq
    %v6251 = vshrl.u32 %v6250, 7
    %v6252 = vsub.s32 %v2583, %v6251
    %v6253 = vrot.slane %v5750, %v6252
    %v6254 = vsel %vm2588, %v6253, %v6249
    %v6255 = vlaneseq
    %v6256 = vshrl.u32 %v6255, 7
    %v6257 = vsub.s32 %v2590, %v6256
    %v6258 = vrot.slane %v5752, %v6257
    %v6259 = vsel %vm2595, %v6258, %v6254
    %v6260 = vlaneseq
    %v6261 = vshrl.u32 %v6260, 7
    %v6262 = vsub.s32 %v2597, %v6261
    %v6263 = vrot.slane %v5754, %v6262
    %v6264 = vsel %vm2602, %v6263, %v6259
    %v6265 = vlaneseq
    %v6266 = vshrl.u32 %v6265, 7
    %v6267 = vsub.s32 %v2604, %v6266
    %v6268 = vrot.slane %v5756, %v6267
    %v6269 = vsel %vm2609, %v6268, %v6264
    %v6270 = vlaneseq
    %v6271 = vshrl.u32 %v6270, 7
    %v6272 = vsub.s32 %v2611, %v6271
    %v6273 = vrot.slane %v5758, %v6272
    %v6274 = vsel %vm2616, %v6273, %v6269
    %v6275 = vlaneseq
    %v6276 = vshrl.u32 %v6275, 7
    %v6277 = vsub.s32 %v2618, %v6276
    %v6278 = vrot.slane %v5760, %v6277
    %v6279 = vsel %vm2623, %v6278, %v6274
    %v6280 = vlaneseq
    %v6281 = vshrl.u32 %v6280, 7
    %v6282 = vsub.s32 %v2625, %v6281
    %v6283 = vrot.slane %v5762, %v6282
    %v6284 = vsel %vm2630, %v6283, %v6279
    %v6285 = vlaneseq
    %v6286 = vshrl.u32 %v6285, 7
    %v6287 = vsub.s32 %v2632, %v6286
    %v6288 = vrot.slane %v5764, %v6287
    %v6289 = vsel %vm2637, %v6288, %v6284
    %v6290 = vlaneseq
    %v6291 = vshrl.u32 %v6290, 7
    %v6292 = vsub.s32 %v1746, %v6291
    %v6293 = vrot.slane %v5766, %v6292
    %v6294 = vlaneseq
    %v6295 = vshrl.u32 %v6294, 7
    %v6296 = vsub.s32 %v2534, %v6295
    %v6297 = vrot.slane %v5768, %v6296
    %v6298 = vsel %vm2539, %v6297, %v6293
    %v6299 = vlaneseq
    %v6300 = vshrl.u32 %v6299, 7
    %v6301 = vsub.s32 %v2541, %v6300
    %v6302 = vrot.slane %v5770, %v6301
    %v6303 = vsel %vm2546, %v6302, %v6298
    %v6304 = vlaneseq
    %v6305 = vshrl.u32 %v6304, 7
    %v6306 = vsub.s32 %v2548, %v6305
    %v6307 = vrot.slane %v5772, %v6306
    %v6308 = vsel %vm2553, %v6307, %v6303
    %v6309 = vlaneseq
    %v6310 = vshrl.u32 %v6309, 7
    %v6311 = vsub.s32 %v2555, %v6310
    %v6312 = vrot.slane %v5774, %v6311
    %v6313 = vsel %vm2560, %v6312, %v6308
    %v6314 = vlaneseq
    %v6315 = vshrl.u32 %v6314, 7
    %v6316 = vsub.s32 %v2562, %v6315
    %v6317 = vrot.slane %v5776, %v6316
    %v6318 = vsel %vm2567, %v6317, %v6313
    %v6319 = vlaneseq
    %v6320 = vshrl.u32 %v6319, 7
    %v6321 = vsub.s32 %v2569, %v6320
    %v6322 = vrot.slane %v5778, %v6321
    %v6323 = vsel %vm2574, %v6322, %v6318
    %v6324 = vlaneseq
    %v6325 = vshrl.u32 %v6324, 7
    %v6326 = vsub.s32 %v2576, %v6325
    %v6327 = vrot.slane %v5780, %v6326
    %v6328 = vsel %vm2581, %v6327, %v6323
    %v6329 = vlaneseq
    %v6330 = vshrl.u32 %v6329, 7
    %v6331 = vsub.s32 %v2583, %v6330
    %v6332 = vrot.slane %v5782, %v6331
    %v6333 = vsel %vm2588, %v6332, %v6328
    %v6334 = vlaneseq
    %v6335 = vshrl.u32 %v6334, 7
    %v6336 = vsub.s32 %v2590, %v6335
    %v6337 = vrot.slane %v5784, %v6336
    %v6338 = vsel %vm2595, %v6337, %v6333
    %v6339 = vlaneseq
    %v6340 = vshrl.u32 %v6339, 7
    %v6341 = vsub.s32 %v2597, %v6340
    %v6342 = vrot.slane %v5786, %v6341
    %v6343 = vsel %vm2602, %v6342, %v6338
    %v6344 = vlaneseq
    %v6345 = vshrl.u32 %v6344, 7
    %v6346 = vsub.s32 %v2604, %v6345
    %v6347 = vrot.slane %v5788, %v6346
    %v6348 = vsel %vm2609, %v6347, %v6343
    %v6349 = vlaneseq
    %v6350 = vshrl.u32 %v6349, 7
    %v6351 = vsub.s32 %v2611, %v6350
    %v6352 = vrot.slane %v5790, %v6351
    %v6353 = vsel %vm2616, %v6352, %v6348
    %v6354 = vlaneseq
    %v6355 = vshrl.u32 %v6354, 7
    %v6356 = vsub.s32 %v2618, %v6355
    %v6357 = vrot.slane %v5792, %v6356
    %v6358 = vsel %vm2623, %v6357, %v6353
    %v6359 = vlaneseq
    %v6360 = vshrl.u32 %v6359, 7
    %v6361 = vsub.s32 %v2625, %v6360
    %v6362 = vrot.slane %v5794, %v6361
    %v6363 = vsel %vm2630, %v6362, %v6358
    %v6364 = vlaneseq
    %v6365 = vshrl.u32 %v6364, 7
    %v6366 = vsub.s32 %v2632, %v6365
    %v6367 = vrot.slane %v5796, %v6366
    %v6368 = vsel %vm2637, %v6367, %v6363
    %v6369 = vlaneseq
    %v6370 = vshrl.u32 %v6369, 7
    %v6371 = vsub.s32 %v1746, %v6370
    %v6372 = vrot.slane %v5798, %v6371
    %v6373 = vlaneseq
    %v6374 = vshrl.u32 %v6373, 7
    %v6375 = vsub.s32 %v2534, %v6374
    %v6376 = vrot.slane %v5800, %v6375
    %v6377 = vsel %vm2539, %v6376, %v6372
    %v6378 = vlaneseq
    %v6379 = vshrl.u32 %v6378, 7
    %v6380 = vsub.s32 %v2541, %v6379
    %v6381 = vrot.slane %v5802, %v6380
    %v6382 = vsel %vm2546, %v6381, %v6377
    %v6383 = vlaneseq
    %v6384 = vshrl.u32 %v6383, 7
    %v6385 = vsub.s32 %v2548, %v6384
    %v6386 = vrot.slane %v5804, %v6385
    %v6387 = vsel %vm2553, %v6386, %v6382
    %v6388 = vlaneseq
    %v6389 = vshrl.u32 %v6388, 7
    %v6390 = vsub.s32 %v2555, %v6389
    %v6391 = vrot.slane %v5806, %v6390
    %v6392 = vsel %vm2560, %v6391, %v6387
    %v6393 = vlaneseq
    %v6394 = vshrl.u32 %v6393, 7
    %v6395 = vsub.s32 %v2562, %v6394
    %v6396 = vrot.slane %v5808, %v6395
    %v6397 = vsel %vm2567, %v6396, %v6392
    %v6398 = vlaneseq
    %v6399 = vshrl.u32 %v6398, 7
    %v6400 = vsub.s32 %v2569, %v6399
    %v6401 = vrot.slane %v5810, %v6400
    %v6402 = vsel %vm2574, %v6401, %v6397
    %v6403 = vlaneseq
    %v6404 = vshrl.u32 %v6403, 7
    %v6405 = vsub.s32 %v2576, %v6404
    %v6406 = vrot.slane %v5812, %v6405
    %v6407 = vsel %vm2581, %v6406, %v6402
    %v6408 = vlaneseq
    %v6409 = vshrl.u32 %v6408, 7
    %v6410 = vsub.s32 %v2583, %v6409
    %v6411 = vrot.slane %v5814, %v6410
    %v6412 = vsel %vm2588, %v6411, %v6407
    %v6413 = vlaneseq
    %v6414 = vshrl.u32 %v6413, 7
    %v6415 = vsub.s32 %v2590, %v6414
    %v6416 = vrot.slane %v5816, %v6415
    %v6417 = vsel %vm2595, %v6416, %v6412
    %v6418 = vlaneseq
    %v6419 = vshrl.u32 %v6418, 7
    %v6420 = vsub.s32 %v2597, %v6419
    %v6421 = vrot.slane %v5818, %v6420
    %v6422 = vsel %vm2602, %v6421, %v6417
    %v6423 = vlaneseq
    %v6424 = vshrl.u32 %v6423, 7
    %v6425 = vsub.s32 %v2604, %v6424
    %v6426 = vrot.slane %v5820, %v6425
    %v6427 = vsel %vm2609, %v6426, %v6422
    %v6428 = vlaneseq
    %v6429 = vshrl.u32 %v6428, 7
    %v6430 = vsub.s32 %v2611, %v6429
    %v6431 = vrot.slane %v5822, %v6430
    %v6432 = vsel %vm2616, %v6431, %v6427
    %v6433 = vlaneseq
    %v6434 = vshrl.u32 %v6433, 7
    %v6435 = vsub.s32 %v2618, %v6434
    %v6436 = vrot.slane %v5824, %v6435
    %v6437 = vsel %vm2623, %v6436, %v6432
    %v6438 = vlaneseq
    %v6439 = vshrl.u32 %v6438, 7
    %v6440 = vsub.s32 %v2625, %v6439
    %v6441 = vrot.slane %v5826, %v6440
    %v6442 = vsel %vm2630, %v6441, %v6437
    %v6443 = vlaneseq
    %v6444 = vshrl.u32 %v6443, 7
    %v6445 = vsub.s32 %v2632, %v6444
    %v6446 = vrot.slane %v5828, %v6445
    %v6447 = vsel %vm2637, %v6446, %v6442
    %v6448 = vlaneseq
    %v6449 = vshrl.u32 %v6448, 7
    %v6450 = vsub.s32 %v1746, %v6449
    %v6451 = vrot.slane %v5830, %v6450
    %v6452 = vlaneseq
    %v6453 = vshrl.u32 %v6452, 7
    %v6454 = vsub.s32 %v2534, %v6453
    %v6455 = vrot.slane %v5832, %v6454
    %v6456 = vsel %vm2539, %v6455, %v6451
    %v6457 = vlaneseq
    %v6458 = vshrl.u32 %v6457, 7
    %v6459 = vsub.s32 %v2541, %v6458
    %v6460 = vrot.slane %v5834, %v6459
    %v6461 = vsel %vm2546, %v6460, %v6456
    %v6462 = vlaneseq
    %v6463 = vshrl.u32 %v6462, 7
    %v6464 = vsub.s32 %v2548, %v6463
    %v6465 = vrot.slane %v5836, %v6464
    %v6466 = vsel %vm2553, %v6465, %v6461
    %v6467 = vlaneseq
    %v6468 = vshrl.u32 %v6467, 7
    %v6469 = vsub.s32 %v2555, %v6468
    %v6470 = vrot.slane %v5838, %v6469
    %v6471 = vsel %vm2560, %v6470, %v6466
    %v6472 = vlaneseq
    %v6473 = vshrl.u32 %v6472, 7
    %v6474 = vsub.s32 %v2562, %v6473
    %v6475 = vrot.slane %v5840, %v6474
    %v6476 = vsel %vm2567, %v6475, %v6471
    %v6477 = vlaneseq
    %v6478 = vshrl.u32 %v6477, 7
    %v6479 = vsub.s32 %v2569, %v6478
    %v6480 = vrot.slane %v5842, %v6479
    %v6481 = vsel %vm2574, %v6480, %v6476
    %v6482 = vlaneseq
    %v6483 = vshrl.u32 %v6482, 7
    %v6484 = vsub.s32 %v2576, %v6483
    %v6485 = vrot.slane %v5844, %v6484
    %v6486 = vsel %vm2581, %v6485, %v6481
    %v6487 = vlaneseq
    %v6488 = vshrl.u32 %v6487, 7
    %v6489 = vsub.s32 %v2583, %v6488
    %v6490 = vrot.slane %v5846, %v6489
    %v6491 = vsel %vm2588, %v6490, %v6486
    %v6492 = vlaneseq
    %v6493 = vshrl.u32 %v6492, 7
    %v6494 = vsub.s32 %v2590, %v6493
    %v6495 = vrot.slane %v5848, %v6494
    %v6496 = vsel %vm2595, %v6495, %v6491
    %v6497 = vlaneseq
    %v6498 = vshrl.u32 %v6497, 7
    %v6499 = vsub.s32 %v2597, %v6498
    %v6500 = vrot.slane %v5850, %v6499
    %v6501 = vsel %vm2602, %v6500, %v6496
    %v6502 = vlaneseq
    %v6503 = vshrl.u32 %v6502, 7
    %v6504 = vsub.s32 %v2604, %v6503
    %v6505 = vrot.slane %v5852, %v6504
    %v6506 = vsel %vm2609, %v6505, %v6501
    %v6507 = vlaneseq
    %v6508 = vshrl.u32 %v6507, 7
    %v6509 = vsub.s32 %v2611, %v6508
    %v6510 = vrot.slane %v5854, %v6509
    %v6511 = vsel %vm2616, %v6510, %v6506
    %v6512 = vlaneseq
    %v6513 = vshrl.u32 %v6512, 7
    %v6514 = vsub.s32 %v2618, %v6513
    %v6515 = vrot.slane %v5856, %v6514
    %v6516 = vsel %vm2623, %v6515, %v6511
    %v6517 = vlaneseq
    %v6518 = vshrl.u32 %v6517, 7
    %v6519 = vsub.s32 %v2625, %v6518
    %v6520 = vrot.slane %v5858, %v6519
    %v6521 = vsel %vm2630, %v6520, %v6516
    %v6522 = vlaneseq
    %v6523 = vshrl.u32 %v6522, 7
    %v6524 = vsub.s32 %v2632, %v6523
    %v6525 = vrot.slane %v5860, %v6524
    %v6526 = vsel %vm2637, %v6525, %v6521
    %v6527 = vlaneseq
    %v6528 = vshrl.u32 %v6527, 7
    %v6529 = vsub.s32 %v1746, %v6528
    %v6530 = vrot.slane %v5862, %v6529
    %v6531 = vlaneseq
    %v6532 = vshrl.u32 %v6531, 7
    %v6533 = vsub.s32 %v2534, %v6532
    %v6534 = vrot.slane %v5864, %v6533
    %v6535 = vsel %vm2539, %v6534, %v6530
    %v6536 = vlaneseq
    %v6537 = vshrl.u32 %v6536, 7
    %v6538 = vsub.s32 %v2541, %v6537
    %v6539 = vrot.slane %v5866, %v6538
    %v6540 = vsel %vm2546, %v6539, %v6535
    %v6541 = vlaneseq
    %v6542 = vshrl.u32 %v6541, 7
    %v6543 = vsub.s32 %v2548, %v6542
    %v6544 = vrot.slane %v5868, %v6543
    %v6545 = vsel %vm2553, %v6544, %v6540
    %v6546 = vlaneseq
    %v6547 = vshrl.u32 %v6546, 7
    %v6548 = vsub.s32 %v2555, %v6547
    %v6549 = vrot.slane %v5870, %v6548
    %v6550 = vsel %vm2560, %v6549, %v6545
    %v6551 = vlaneseq
    %v6552 = vshrl.u32 %v6551, 7
    %v6553 = vsub.s32 %v2562, %v6552
    %v6554 = vrot.slane %v5872, %v6553
    %v6555 = vsel %vm2567, %v6554, %v6550
    %v6556 = vlaneseq
    %v6557 = vshrl.u32 %v6556, 7
    %v6558 = vsub.s32 %v2569, %v6557
    %v6559 = vrot.slane %v5874, %v6558
    %v6560 = vsel %vm2574, %v6559, %v6555
    %v6561 = vlaneseq
    %v6562 = vshrl.u32 %v6561, 7
    %v6563 = vsub.s32 %v2576, %v6562
    %v6564 = vrot.slane %v5876, %v6563
    %v6565 = vsel %vm2581, %v6564, %v6560
    %v6566 = vlaneseq
    %v6567 = vshrl.u32 %v6566, 7
    %v6568 = vsub.s32 %v2583, %v6567
    %v6569 = vrot.slane %v5878, %v6568
    %v6570 = vsel %vm2588, %v6569, %v6565
    %v6571 = vlaneseq
    %v6572 = vshrl.u32 %v6571, 7
    %v6573 = vsub.s32 %v2590, %v6572
    %v6574 = vrot.slane %v5880, %v6573
    %v6575 = vsel %vm2595, %v6574, %v6570
    %v6576 = vlaneseq
    %v6577 = vshrl.u32 %v6576, 7
    %v6578 = vsub.s32 %v2597, %v6577
    %v6579 = vrot.slane %v5882, %v6578
    %v6580 = vsel %vm2602, %v6579, %v6575
    %v6581 = vlaneseq
    %v6582 = vshrl.u32 %v6581, 7
    %v6583 = vsub.s32 %v2604, %v6582
    %v6584 = vrot.slane %v5884, %v6583
    %v6585 = vsel %vm2609, %v6584, %v6580
    %v6586 = vlaneseq
    %v6587 = vshrl.u32 %v6586, 7
    %v6588 = vsub.s32 %v2611, %v6587
    %v6589 = vrot.slane %v5886, %v6588
    %v6590 = vsel %vm2616, %v6589, %v6585
    %v6591 = vlaneseq
    %v6592 = vshrl.u32 %v6591, 7
    %v6593 = vsub.s32 %v2618, %v6592
    %v6594 = vrot.slane %v5888, %v6593
    %v6595 = vsel %vm2623, %v6594, %v6590
    %v6596 = vlaneseq
    %v6597 = vshrl.u32 %v6596, 7
    %v6598 = vsub.s32 %v2625, %v6597
    %v6599 = vrot.slane %v5890, %v6598
    %v6600 = vsel %vm2630, %v6599, %v6595
    %v6601 = vlaneseq
    %v6602 = vshrl.u32 %v6601, 7
    %v6603 = vsub.s32 %v2632, %v6602
    %v6604 = vrot.slane %v5892, %v6603
    %v6605 = vsel %vm2637, %v6604, %v6600
    %v6606 = vlaneseq
    %v6607 = vshrl.u32 %v6606, 7
    %v6608 = vsub.s32 %v1746, %v6607
    %v6609 = vrot.slane %v5894, %v6608
    %v6610 = vlaneseq
    %v6611 = vshrl.u32 %v6610, 7
    %v6612 = vsub.s32 %v2534, %v6611
    %v6613 = vrot.slane %v5896, %v6612
    %v6614 = vsel %vm2539, %v6613, %v6609
    %v6615 = vlaneseq
    %v6616 = vshrl.u32 %v6615, 7
    %v6617 = vsub.s32 %v2541, %v6616
    %v6618 = vrot.slane %v5898, %v6617
    %v6619 = vsel %vm2546, %v6618, %v6614
    %v6620 = vlaneseq
    %v6621 = vshrl.u32 %v6620, 7
    %v6622 = vsub.s32 %v2548, %v6621
    %v6623 = vrot.slane %v5900, %v6622
    %v6624 = vsel %vm2553, %v6623, %v6619
    %v6625 = vlaneseq
    %v6626 = vshrl.u32 %v6625, 7
    %v6627 = vsub.s32 %v2555, %v6626
    %v6628 = vrot.slane %v5902, %v6627
    %v6629 = vsel %vm2560, %v6628, %v6624
    %v6630 = vlaneseq
    %v6631 = vshrl.u32 %v6630, 7
    %v6632 = vsub.s32 %v2562, %v6631
    %v6633 = vrot.slane %v5904, %v6632
    %v6634 = vsel %vm2567, %v6633, %v6629
    %v6635 = vlaneseq
    %v6636 = vshrl.u32 %v6635, 7
    %v6637 = vsub.s32 %v2569, %v6636
    %v6638 = vrot.slane %v5906, %v6637
    %v6639 = vsel %vm2574, %v6638, %v6634
    %v6640 = vlaneseq
    %v6641 = vshrl.u32 %v6640, 7
    %v6642 = vsub.s32 %v2576, %v6641
    %v6643 = vrot.slane %v5908, %v6642
    %v6644 = vsel %vm2581, %v6643, %v6639
    %v6645 = vlaneseq
    %v6646 = vshrl.u32 %v6645, 7
    %v6647 = vsub.s32 %v2583, %v6646
    %v6648 = vrot.slane %v5910, %v6647
    %v6649 = vsel %vm2588, %v6648, %v6644
    %v6650 = vlaneseq
    %v6651 = vshrl.u32 %v6650, 7
    %v6652 = vsub.s32 %v2590, %v6651
    %v6653 = vrot.slane %v5912, %v6652
    %v6654 = vsel %vm2595, %v6653, %v6649
    %v6655 = vlaneseq
    %v6656 = vshrl.u32 %v6655, 7
    %v6657 = vsub.s32 %v2597, %v6656
    %v6658 = vrot.slane %v5914, %v6657
    %v6659 = vsel %vm2602, %v6658, %v6654
    %v6660 = vlaneseq
    %v6661 = vshrl.u32 %v6660, 7
    %v6662 = vsub.s32 %v2604, %v6661
    %v6663 = vrot.slane %v5916, %v6662
    %v6664 = vsel %vm2609, %v6663, %v6659
    %v6665 = vlaneseq
    %v6666 = vshrl.u32 %v6665, 7
    %v6667 = vsub.s32 %v2611, %v6666
    %v6668 = vrot.slane %v5918, %v6667
    %v6669 = vsel %vm2616, %v6668, %v6664
    %v6670 = vlaneseq
    %v6671 = vshrl.u32 %v6670, 7
    %v6672 = vsub.s32 %v2618, %v6671
    %v6673 = vrot.slane %v5920, %v6672
    %v6674 = vsel %vm2623, %v6673, %v6669
    %v6675 = vlaneseq
    %v6676 = vshrl.u32 %v6675, 7
    %v6677 = vsub.s32 %v2625, %v6676
    %v6678 = vrot.slane %v5922, %v6677
    %v6679 = vsel %vm2630, %v6678, %v6674
    %v6680 = vlaneseq
    %v6681 = vshrl.u32 %v6680, 7
    %v6682 = vsub.s32 %v2632, %v6681
    %v6683 = vrot.slane %v5924, %v6682
    %v6684 = vsel %vm2637, %v6683, %v6679
    %v6685 = vsel %vm3192, %v6210, %v6131
    %v6686 = vsel %vm3194, %v6289, %v6685
    %v6687 = vsel %vm3196, %v6368, %v6686
    %v6688 = vsel %vm3198, %v6447, %v6687
    %v6689 = vsel %vm3200, %v6526, %v6688
    %v6690 = vsel %vm3202, %v6605, %v6689
    %v6691 = vsel %vm3204, %v6684, %v6690
    %v6693 = vsel %vm2401, %v6691, -inf
    %6694 = vmax.xlane.f32.xlu0 %v6693
    %v6695 = vpop.xlane.xlu0 %6694
    %v6696 = vsub.f32 %v6693, %v6695
    %v6697 = vmul.f32 %v6696, 1.442695
    %v6698 = vpow.pop %v6697
    %6699 = vadd.xlane.f32.xlu0 %v6698
    %v6700 = vpop.xlane.xlu0 %6699
    %v6701 = vrcp.pop %v6700
    %v6702 = vmul.f32 %v6698, %v6701
    %6703 = vst [vmem:[#allocation10] sm:$0xff] %v3216
    %s6704 = scalar_lea.vmem [#allocation10], 8
    %6705 = vst [vmem:[%s6704] sm:$0xff] %v6702
    // Predicated region
    $region50: #{tpu_custom_call.1} parent=1 // pred_check
      _
    $region51: #{tpu_custom_call.1} parent=1 // pred_check_branch
      %6707 = sbr.rel (0) target = $region53
    $region52: #{tpu_custom_call.1} parent=1 // pred_region
      %s6709 = ssub.s32 256, 256
      %6710 = vsyncadd [#allocation4], %s6709
      %s6711 = sshll.u32 [#allocation10], 4
      %s6712 = int_to_ptr.vmem [resolvable:$true] %s6711
      %6717 = dma.vmem_to_hbm [thread:$0]  %s6712, 256, %s8, [#allocation4], 128, 128, 8
    $region53: #{tpu_custom_call.1} parent=1 // pred_fallthru
      _
    // Predicated region
    $region54: #{tpu_custom_call.1} parent=1 // pred_check
      _
    $region55: #{tpu_custom_call.1} parent=1 // pred_check_branch
      %6719 = sbr.rel (0) target = $region57
    $region56: #{tpu_custom_call.1} parent=1 // pred_region
      %6720 = dma.done [#allocation4], 256
    $region57: #{tpu_custom_call.1} parent=1 // pred_fallthru
      _
    %6721 = vsyncpa [#allocation3], 1
    %6722 = vsyncpa [#allocation6], 1
    %6723 = vsyncpa [#allocation9], 1
    %6724 = vsyncpa [#allocation4], 1

</llo_original>
